<compile_context>
chip_gen: v7x
topology: tpu7x:2x2x1
jax: 0.10.0
libtpu: 0.0.40
codegen_flags: <defaults>
</compile_context>

<pallas_src>
import jax
import jax.numpy as jnp
from jax import lax
from jax.experimental import pallas as pl
from jax.experimental.pallas import tpu as pltpu


# ----------------------------------------------------------------------------
# Pallas kernel (no grid: whole problem is tiny and resident)
# ----------------------------------------------------------------------------
def _traj_kernel(
    # inputs
    x_ref, len_ref, wih_ref, bih_ref, whh_f_ref, whh_b_ref,
    w1a_ref, w1b_ref, b1_ref,
    w2_hbm, b2_ref, w3_hbm, b3_ref,
    wbr1_hbm, bbr1_ref, wbr2_hbm, bbr2_ref, wbr3_ref, bbr3_ref,
    # output
    out_ref,
    # scratch
    w2_buf, w3_buf, wbr1_buf, wbr2_buf, gx_buf, dma_sem,
):
    TB = x_ref.shape[0]
    B = len_ref.shape[0]
    T = TB // B
    H = whh_f_ref.shape[0]
    G = 4 * H                       # per-direction gate width
    N1 = wbr2_buf.shape[0]          # 512 = width of fused branch level-1

    # ---- kick off the big-weight DMAs; they overlap the LSTM recurrence ----
    cp_w2 = pltpu.make_async_copy(w2_hbm, w2_buf, dma_sem.at[0])
    cp_w3 = pltpu.make_async_copy(w3_hbm, w3_buf, dma_sem.at[1])
    cp_wbr1 = pltpu.make_async_copy(wbr1_hbm, wbr1_buf, dma_sem.at[2])
    cp_wbr2 = pltpu.make_async_copy(wbr2_hbm, wbr2_buf, dma_sem.at[3])
    cp_w2.start()
    cp_w3.start()
    cp_wbr1.start()
    cp_wbr2.start()

    lens = len_ref[...]             # (B, 1) int32

    # ---- LSTM input projection, both directions fused into one MXU push ----
    # gx layout: lanes [0:4H) = fwd gates (i,f,g,o), [4H:8H) = bwd gates.
    gx_buf[...] = (jnp.dot(x_ref[...], wih_ref[...],
                           preferred_element_type=jnp.float32) + bih_ref[...])

    def lstm_step(gx_t, h, c, whh):
        # one fused recurrent dot: (B,H) @ (H,4H); gate extraction is 32-lane
        # slices afterwards (XLU lane moves, off the MXU critical path).
        gates = gx_t + jnp.dot(h, whh, preferred_element_type=jnp.float32)
        i = jax.nn.sigmoid(gates[:, 0 * H:1 * H])
        f = jax.nn.sigmoid(gates[:, 1 * H:2 * H])
        g = jnp.tanh(gates[:, 2 * H:3 * H])
        o = jax.nn.sigmoid(gates[:, 3 * H:4 * H])
        c_new = f * c + i * g
        h_new = o * jnp.tanh(c_new)
        return h_new, c_new

    zeros = jnp.zeros((B, H), jnp.float32)
    h_f, c_f, h_b, c_b = zeros, zeros, zeros, zeros

    # Fused bidirectional recurrence, fully unrolled (T static & small).
    for t in range(T):
        s = T - 1 - t
        gxf = gx_buf[t * B:(t + 1) * B, 0:G]          # per-step loads (vld slots)
        gxb = gx_buf[s * B:(s + 1) * B, G:2 * G]
        hfn, cfn = lstm_step(gxf, h_f, c_f, whh_f_ref[...])
        hbn, cbn = lstm_step(gxb, h_b, c_b, whh_b_ref[...])
        m_f = t < lens              # (B,1): step t valid for forward dir
        m_b = s < lens              # (B,1): step s valid for backward dir
        h_f = jnp.where(m_f, hfn, h_f)
        c_f = jnp.where(m_f, cfn, c_f)
        h_b = jnp.where(m_b, hbn, h_b)
        c_b = jnp.where(m_b, cbn, c_b)

    # ---- MLP trunk (bf16 weights, f32 accumulation) ----
    # linear_1 without concat(h_f, h_b): weight split into two halves.
    h1 = (jnp.dot(h_f.astype(jnp.bfloat16), w1a_ref[...],
                  preferred_element_type=jnp.float32)
          + jnp.dot(h_b.astype(jnp.bfloat16), w1b_ref[...],
                    preferred_element_type=jnp.float32)
          + b1_ref[...])
    h1 = jnp.maximum(h1, 0.0)

    cp_w2.wait()
    h2 = jnp.maximum(
        jnp.dot(h1.astype(jnp.bfloat16), w2_buf[...],
                preferred_element_type=jnp.float32) + b2_ref[...], 0.0)

    cp_w3.wait()
    h3 = jnp.maximum(
        jnp.dot(h2.astype(jnp.bfloat16), w3_buf[...],
                preferred_element_type=jnp.float32) + b3_ref[...], 0.0)
    h3_bf = h3.astype(jnp.bfloat16)

    # ---- fused branch level 1: [branch_t_1 | branch_r_1 | beta | pad] ----
    cp_wbr1.wait()
    br1_full = (jnp.dot(h3_bf, wbr1_buf[...],
                        preferred_element_type=jnp.float32) + bbr1_ref[...])
    beta = br1_full[:, N1:N1 + 1]                 # beta head, no ReLU
    br1 = jnp.maximum(br1_full[:, 0:N1], 0.0)

    # ---- fused (block-diagonal) level 2: [branch_t_2 | branch_r_2] ----
    cp_wbr2.wait()
    br2 = jnp.maximum(
        jnp.dot(br1.astype(jnp.bfloat16), wbr2_buf[...],
                preferred_element_type=jnp.float32) + bbr2_ref[...], 0.0)

    # ---- fused level 3 -> (B, 8): [trans, rot*4, 0, 0, 0] ----
    y8 = (jnp.dot(br2.astype(jnp.bfloat16), wbr3_ref[...],
                  preferred_element_type=jnp.float32) + bbr3_ref[...])

    # F.normalize(p=2, dim=1, eps=1e-12) on the rotation lanes (cols 1..4),
    # then drop beta into lane 5 — all with lane masks, single output store.
    lane = lax.broadcasted_iota(jnp.int32, (1, y8.shape[1]), 1)
    is_rot = jnp.logical_and(lane >= 1, lane <= 4)
    sq = jnp.where(is_rot, y8 * y8, 0.0)
    norm = jnp.sqrt(jnp.sum(sq, axis=1, keepdims=True))
    inv = 1.0 / jnp.maximum(norm, 1e-12)
    y8 = y8 * jnp.where(is_rot, inv, 1.0)
    y8 = jnp.where(lane == 5, beta, y8)
    out_ref[...] = y8


# ----------------------------------------------------------------------------
# Wrapper
# ----------------------------------------------------------------------------
@jax.jit
def traj_forward(x, lengths, packed):
    """x: (B, T, D) float32 (batch_first); lengths: (B,) int32 (all >= 1)."""
    B, T, D = x.shape
    H = packed['whh_f'].shape[0]
    # time-major flatten: rows [t*B, (t+1)*B) correspond to timestep t.
    x2 = jnp.transpose(x, (1, 0, 2)).reshape(T * B, D).astype(jnp.float32)
    lens = lengths.astype(jnp.int32).reshape(B, 1)

    operands = (
        x2, lens,
        packed['wih'], packed['bih'], packed['whh_f'], packed['whh_b'],
        packed['w1a'], packed['w1b'], packed['b1'],
        packed['w2'], packed['b2'], packed['w3'], packed['b3'],
        packed['wbr1'], packed['bbr1'], packed['wbr2'], packed['bbr2'],
        packed['wbr3'], packed['bbr3'],
    )
    vmem = pl.BlockSpec(memory_space=pltpu.MemorySpace.VMEM)
    hbm = pl.BlockSpec(memory_space=pl.ANY)
    hbm_idx = {9, 11, 13, 15}          # w2, w3, wbr1, wbr2 stay in HBM
    in_specs = [hbm if i in hbm_idx else vmem for i in range(len(operands))]

    # Advisory cost estimate so XLA overlaps surrounding ops with this call.
    nbr1 = packed['wbr1'].shape[1]
    flops = 2 * (T * B * D * 8 * H + T * 2 * B * H * 4 * H
                 + B * (2 * H * 256 + 256 * 1024 + 1024 * 512
                        + 512 * nbr1 + 512 * 256 + 256 * 8))
    transcendentals = T * 2 * B * 5 * H
    bytes_accessed = int(sum(a.size * a.dtype.itemsize for a in operands)
                         + B * 8 * 4)

    y = pl.pallas_call(
        _traj_kernel,
        out_shape=jax.ShapeDtypeStruct((B, 8), jnp.float32),
        in_specs=in_specs,
        out_specs=vmem,
        scratch_shapes=[
            pltpu.VMEM(packed['w2'].shape, jnp.bfloat16),
            pltpu.VMEM(packed['w3'].shape, jnp.bfloat16),
            pltpu.VMEM(packed['wbr1'].shape, jnp.bfloat16),
            pltpu.VMEM(packed['wbr2'].shape, jnp.bfloat16),
            pltpu.VMEM((T * B, 8 * H), jnp.float32),
            pltpu.SemaphoreType.DMA((4,)),
        ],
        cost_estimate=pl.CostEstimate(
            flops=flops, transcendentals=transcendentals,
            bytes_accessed=bytes_accessed),
    )(*operands)

    return y[:, 0:5], y[:, 5:6]


# ----------------------------------------------------------------------------
# Parameter init (PyTorch layout) + packing into the kernel's fused layout
# ----------------------------------------------------------------------------
def init_params(key, input_size, hidden_dim):
    H, D = hidden_dim, input_size
    ks = jax.random.split(key, 20)
    ki = iter(ks)

    def u(k, shape, bound):
        return jax.random.uniform(k, shape, jnp.float32, -bound, bound)

    def lin_init(k, fan_out, fan_in):
        k1, k2 = jax.random.split(k)
        s = 1.0 / (fan_in ** 0.5)
        return u(k1, (fan_out, fan_in), s), u(k2, (fan_out,), s)

    s_l = 1.0 / (H ** 0.5)
    p = {}
    # LSTM, PyTorch layout: weight_ih (4H, D), weight_hh (4H, H), two biases.
    p['w_ih_f'] = u(next(ki), (4 * H, D), s_l)
    p['w_hh_f'] = u(next(ki), (4 * H, H), s_l)
    p['b_ih_f'] = u(next(ki), (4 * H,), s_l)
    p['b_hh_f'] = u(next(ki), (4 * H,), s_l)
    p['w_ih_b'] = u(next(ki), (4 * H, D), s_l)
    p['w_hh_b'] = u(next(ki), (4 * H, H), s_l)
    p['b_ih_b'] = u(next(ki), (4 * H,), s_l)
    p['b_hh_b'] = u(next(ki), (4 * H,), s_l)

    p['linear_1_w'], p['linear_1_b'] = lin_init(next(ki), 256, 2 * H)
    p['linear_2_w'], p['linear_2_b'] = lin_init(next(ki), 1024, 256)
    p['linear_3_w'], p['linear_3_b'] = lin_init(next(ki), 512, 1024)
    p['branch_t_1_w'], p['branch_t_1_b'] = lin_init(next(ki), 256, 512)
    p['branch_t_2_w'], p['branch_t_2_b'] = lin_init(next(ki), 128, 256)
    p['branch_t_3_w'], p['branch_t_3_b'] = lin_init(next(ki), 1, 128)
    p['branch_r_1_w'], p['branch_r_1_b'] = lin_init(next(ki), 256, 512)
    p['branch_r_2_w'], p['branch_r_2_b'] = lin_init(next(ki), 128, 256)
    p['branch_r_3_w'], p['branch_r_3_b'] = lin_init(next(ki), 4, 128)
    p['branch_beta_w'], p['branch_beta_b'] = lin_init(next(ki), 1, 512)
    return p


def pack_params(p, hidden_dim):
    """One-time preprocessing: transpose, gate fusion, branch fusion, bf16 cast."""
    H = hidden_dim
    bf16, f32 = jnp.bfloat16, jnp.float32

    # LSTM: (D,4H)/(H,4H) per direction, gates [i,f,g,o] along lanes,
    # both biases summed; input weights of both directions concatenated.
    wih_f = p['w_ih_f'].T.astype(f32)
    wih_b = p['w_ih_b'].T.astype(f32)
    b_f = (p['b_ih_f'] + p['b_hh_f']).astype(f32)
    b_b = (p['b_ih_b'] + p['b_hh_b']).astype(f32)

    packed = {}
    packed['wih'] = jnp.concatenate([wih_f, wih_b], axis=1)          # (D, 8H)
    packed['bih'] = jnp.concatenate([b_f, b_b]).reshape(1, 8 * H)    # (1, 8H)
    packed['whh_f'] = p['w_hh_f'].T.astype(f32)                      # (H, 4H)
    packed['whh_b'] = p['w_hh_b'].T.astype(f32)                      # (H, 4H)

    # linear_1 split by input half so the kernel avoids concat(h_f, h_b).
    w1 = p['linear_1_w']                                             # (256, 2H)
    packed['w1a'] = w1[:, :H].T.astype(bf16)                         # (H, 256)
    packed['w1b'] = w1[:, H:].T.astype(bf16)                         # (H, 256)
    packed['b1'] = p['linear_1_b'].reshape(1, -1).astype(f32)

    packed['w2'] = p['linear_2_w'].T.astype(bf16)                    # (256,1024)
    packed['b2'] = p['linear_2_b'].reshape(1, -1).astype(f32)
    packed['w3'] = p['linear_3_w'].T.astype(bf16)                    # (1024,512)
    packed['b3'] = p['linear_3_b'].reshape(1, -1).astype(f32)

    # Fused branch level 1 + beta column, padded to a 128-lane multiple:
    # cols 0:256 branch_t_1, 256:512 branch_r_1, col 512 branch_beta, rest 0.
    wbr1 = jnp.zeros((512, 640), f32)
    wbr1 = wbr1.at[:, 0:256].set(p['branch_t_1_w'].T)
    wbr1 = wbr1.at[:, 256:512].set(p['branch_r_1_w'].T)
    wbr1 = wbr1.at[:, 512:513].set(p['branch_beta_w'].T)
    packed['wbr1'] = wbr1.astype(bf16)
    bbr1 = jnp.zeros((1, 640), f32)
    bbr1 = bbr1.at[0, 0:256].set(p['branch_t_1_b'])
    bbr1 = bbr1.at[0, 256:512].set(p['branch_r_1_b'])
    bbr1 = bbr1.at[0, 512].set(p['branch_beta_b'][0])
    packed['bbr1'] = bbr1

    # Fused block-diagonal level 2: (512, 256) -> [branch_t_2 | branch_r_2]
    wbr2 = jnp.zeros((512, 256), f32)
    wbr2 = wbr2.at[0:256, 0:128].set(p['branch_t_2_w'].T)
    wbr2 = wbr2.at[256:512, 128:256].set(p['branch_r_2_w'].T)
    packed['wbr2'] = wbr2.astype(bf16)
    packed['bbr2'] = jnp.concatenate(
        [p['branch_t_2_b'], p['branch_r_2_b']]).reshape(1, -1).astype(f32)

    # Fused level 3: (256, 8) -> [trans | rot(4) | 0 0 0]
    wbr3 = jnp.zeros((256, 8), f32)
    wbr3 = wbr3.at[0:128, 0:1].set(p['branch_t_3_w'].T)
    wbr3 = wbr3.at[128:256, 1:5].set(p['branch_r_3_w'].T)
    packed['wbr3'] = wbr3.astype(bf16)
    bbr3 = jnp.zeros((1, 8), f32)
    bbr3 = bbr3.at[0, 0].set(p['branch_t_3_b'][0])
    bbr3 = bbr3.at[0, 1:5].set(p['branch_r_3_b'])
    packed['bbr3'] = bbr3

    return packed


# ----------------------------------------------------------------------------
# Pure-JAX reference (PyTorch-shaped params; bf16 rounding mirrors the kernel)
# ----------------------------------------------------------------------------
def reference_forward(x, lengths, p, hidden_dim):
    H = hidden_dim
    B, T, _ = x.shape
    lens = lengths.astype(jnp.int32)

    def lstm_dir(wih, whh, bih, bhh, reverse):
        b = bih + bhh
        h = jnp.zeros((B, H), jnp.float32)
        c = jnp.zeros((B, H), jnp.float32)
        order = range(T - 1, -1, -1) if reverse else range(T)
        for t in order:
            xt = x[:, t, :]
            gates = xt @ wih.T + h @ whh.T + b
            i = jax.nn.sigmoid(gates[:, 0 * H:1 * H])
            f = jax.nn.sigmoid(gates[:, 1 * H:2 * H])
            g = jnp.tanh(gates[:, 2 * H:3 * H])
            o = jax.nn.sigmoid(gates[:, 3 * H:4 * H])
            cn = f * c + i * g
            hn = o * jnp.tanh(cn)
            m = (t < lens)[:, None]
            h = jnp.where(m, hn, h)
            c = jnp.where(m, cn, c)
        return h

    h_f = lstm_dir(p['w_ih_f'], p['w_hh_f'], p['b_ih_f'], p['b_hh_f'], False)
    h_b = lstm_dir(p['w_ih_b'], p['w_hh_b'], p['b_ih_b'], p['b_hh_b'], True)
    rnn_out = jnp.concatenate([h_f, h_b], axis=1)

    def lin(xv, w, bvec, relu=True):
        xv = xv.astype(jnp.bfloat16).astype(jnp.float32)
        w = w.astype(jnp.bfloat16).astype(jnp.float32)
        y = xv @ w.T + bvec
        return jnp.maximum(y, 0.0) if relu else y

    hid = lin(rnn_out, p['linear_1_w'], p['linear_1_b'])
    hid = lin(hid, p['linear_2_w'], p['linear_2_b'])
    hid = lin(hid, p['linear_3_w'], p['linear_3_b'])
    ht = lin(hid, p['branch_t_1_w'], p['branch_t_1_b'])
    ht = lin(ht, p['branch_t_2_w'], p['branch_t_2_b'])
    trans = lin(ht, p['branch_t_3_w'], p['branch_t_3_b'], relu=False)
    hr = lin(hid, p['branch_r_1_w'], p['branch_r_1_b'])
    hr = lin(hr, p['branch_r_2_w'], p['branch_r_2_b'])
    rot = lin(hr, p['branch_r_3_w'], p['branch_r_3_b'], relu=False)
    norm = jnp.sqrt(jnp.sum(rot * rot, axis=1, keepdims=True))
    rot = rot / jnp.maximum(norm, 1e-12)
    beta = lin(hid, p['branch_beta_w'], p['branch_beta_b'], relu=False)
    return jnp.concatenate([trans, rot], axis=1), beta


# ----------------------------------------------------------------------------
if __name__ == "__main__":
    key = jax.random.PRNGKey(0)
    k_x, k_p = jax.random.split(key)

    B, T, D, H = 4, 8, 4, 32   # small shapes consistent with the module
    x = jax.random.normal(k_x, (B, T, D), jnp.float32)
    # sorted descending, like pack_padded_sequence; all lengths must be >= 1
    lengths = jnp.array([8, 6, 5, 3], dtype=jnp.int32)

    raw_params = init_params(k_p, input_size=D, hidden_dim=H)
    packed = pack_params(raw_params, H)   # one-time weight preprocessing

    out, beta = traj_forward(x, lengths, packed)
    jax.block_until_ready((out, beta))

    assert out.shape == (B, 5) and beta.shape == (B, 1)
    assert bool(jnp.all(jnp.isfinite(out))) and bool(jnp.all(jnp.isfinite(beta)))

    # rotation quaternion part must be unit-norm after F.normalize
    qnorm = jnp.linalg.norm(out[:, 1:5], axis=1)
    assert bool(jnp.all(jnp.abs(qnorm - 1.0) < 1e-3))

    # numerical check against a pure-JAX reference on the original params
    ref_out, ref_beta = reference_forward(x, lengths, raw_params, H)
    assert bool(jnp.allclose(out, ref_out, atol=2e-2, rtol=2e-2))
    assert bool(jnp.allclose(beta, ref_beta, atol=2e-2, rtol=2e-2))

    print("KERNEL_OK")
</pallas_src>

<mosaic_0001>
module attributes {stable_mosaic.version = 11 : i64} {
  func.func @_traj_kernel(%arg0: memref<32x4xf32, #tpu.memory_space<vmem>>, %arg1: memref<4x1xi32, #tpu.memory_space<vmem>>, %arg2: memref<4x256xf32, #tpu.memory_space<vmem>>, %arg3: memref<1x256xf32, #tpu.memory_space<vmem>>, %arg4: memref<32x128xf32, #tpu.memory_space<vmem>>, %arg5: memref<32x128xf32, #tpu.memory_space<vmem>>, %arg6: memref<32x256xbf16, #tpu.memory_space<vmem>>, %arg7: memref<32x256xbf16, #tpu.memory_space<vmem>>, %arg8: memref<1x256xf32, #tpu.memory_space<vmem>>, %arg9: memref<256x1024xbf16, #tpu.memory_space<any>>, %arg10: memref<1x1024xf32, #tpu.memory_space<vmem>>, %arg11: memref<1024x512xbf16, #tpu.memory_space<any>>, %arg12: memref<1x512xf32, #tpu.memory_space<vmem>>, %arg13: memref<512x640xbf16, #tpu.memory_space<any>>, %arg14: memref<1x640xf32, #tpu.memory_space<vmem>>, %arg15: memref<512x256xbf16, #tpu.memory_space<any>>, %arg16: memref<1x256xf32, #tpu.memory_space<vmem>>, %arg17: memref<256x8xbf16, #tpu.memory_space<vmem>>, %arg18: memref<1x8xf32, #tpu.memory_space<vmem>>, %arg19: memref<4x8xf32, #tpu.memory_space<vmem>>, %arg20: memref<256x1024xbf16, #tpu.memory_space<vmem>>, %arg21: memref<1024x512xbf16, #tpu.memory_space<vmem>>, %arg22: memref<512x640xbf16, #tpu.memory_space<vmem>>, %arg23: memref<512x256xbf16, #tpu.memory_space<vmem>>, %arg24: memref<32x256xf32, #tpu.memory_space<vmem>>, %arg25: memref<4x!tpu.dma_semaphore, #tpu.memory_space<semaphore_mem>>) attributes {dimension_semantics = [], scalar_prefetch = 0 : i64, scratch_operands = 6 : i64, tpu.core_type = #tpu.core_type<tc>} {
    %c0_i32 = arith.constant 0 : i32
    %0 = tpu.memref_slice %arg25[%c0_i32] : memref<4x!tpu.dma_semaphore, #tpu.memory_space<semaphore_mem>> -> memref<1x!tpu.dma_semaphore, #tpu.memory_space<semaphore_mem>>
    %1 = tpu.memref_squeeze %0 : memref<1x!tpu.dma_semaphore, #tpu.memory_space<semaphore_mem>> -> memref<!tpu.dma_semaphore, #tpu.memory_space<semaphore_mem>>
    tpu.enqueue_dma source(%arg9 : memref<256x1024xbf16, #tpu.memory_space<any>>) target(%arg20 : memref<256x1024xbf16, #tpu.memory_space<vmem>>) target_semaphore(%1 : memref<!tpu.dma_semaphore, #tpu.memory_space<semaphore_mem>>)
    %c1_i32 = arith.constant 1 : i32
    %2 = tpu.memref_slice %arg25[%c1_i32] : memref<4x!tpu.dma_semaphore, #tpu.memory_space<semaphore_mem>> -> memref<1x!tpu.dma_semaphore, #tpu.memory_space<semaphore_mem>>
    %3 = tpu.memref_squeeze %2 : memref<1x!tpu.dma_semaphore, #tpu.memory_space<semaphore_mem>> -> memref<!tpu.dma_semaphore, #tpu.memory_space<semaphore_mem>>
    tpu.enqueue_dma source(%arg11 : memref<1024x512xbf16, #tpu.memory_space<any>>) target(%arg21 : memref<1024x512xbf16, #tpu.memory_space<vmem>>) target_semaphore(%3 : memref<!tpu.dma_semaphore, #tpu.memory_space<semaphore_mem>>)
    %c2_i32 = arith.constant 2 : i32
    %4 = tpu.memref_slice %arg25[%c2_i32] : memref<4x!tpu.dma_semaphore, #tpu.memory_space<semaphore_mem>> -> memref<1x!tpu.dma_semaphore, #tpu.memory_space<semaphore_mem>>
    %5 = tpu.memref_squeeze %4 : memref<1x!tpu.dma_semaphore, #tpu.memory_space<semaphore_mem>> -> memref<!tpu.dma_semaphore, #tpu.memory_space<semaphore_mem>>
    tpu.enqueue_dma source(%arg13 : memref<512x640xbf16, #tpu.memory_space<any>>) target(%arg22 : memref<512x640xbf16, #tpu.memory_space<vmem>>) target_semaphore(%5 : memref<!tpu.dma_semaphore, #tpu.memory_space<semaphore_mem>>)
    %c3_i32 = arith.constant 3 : i32
    %6 = tpu.memref_slice %arg25[%c3_i32] : memref<4x!tpu.dma_semaphore, #tpu.memory_space<semaphore_mem>> -> memref<1x!tpu.dma_semaphore, #tpu.memory_space<semaphore_mem>>
    %7 = tpu.memref_squeeze %6 : memref<1x!tpu.dma_semaphore, #tpu.memory_space<semaphore_mem>> -> memref<!tpu.dma_semaphore, #tpu.memory_space<semaphore_mem>>
    tpu.enqueue_dma source(%arg15 : memref<512x256xbf16, #tpu.memory_space<any>>) target(%arg23 : memref<512x256xbf16, #tpu.memory_space<vmem>>) target_semaphore(%7 : memref<!tpu.dma_semaphore, #tpu.memory_space<semaphore_mem>>)
    %c0 = arith.constant 0 : index
    %c0_0 = arith.constant 0 : index
    %8 = vector.load %arg1[%c0, %c0_0] : memref<4x1xi32, #tpu.memory_space<vmem>>, vector<4x1xi32>
    %c0_1 = arith.constant 0 : index
    %c0_2 = arith.constant 0 : index
    %9 = vector.load %arg0[%c0_1, %c0_2] : memref<32x4xf32, #tpu.memory_space<vmem>>, vector<32x4xf32>
    %c0_3 = arith.constant 0 : index
    %c0_4 = arith.constant 0 : index
    %10 = vector.load %arg2[%c0_3, %c0_4] : memref<4x256xf32, #tpu.memory_space<vmem>>, vector<4x256xf32>
    %cst = arith.constant dense<0.000000e+00> : vector<32x256xf32>
    %11 = tpu.matmul %9, %10, %cst {dimension_numbers = #tpu.dot_dimension_numbers<[1], [0], [0], [1], [0, 0, 1, 1], [], []>} : vector<32x4xf32>, vector<4x256xf32>, vector<32x256xf32> -> vector<32x256xf32>
    %c0_5 = arith.constant 0 : index
    %c0_6 = arith.constant 0 : index
    %12 = vector.load %arg3[%c0_5, %c0_6] : memref<1x256xf32, #tpu.memory_space<vmem>>, vector<1x256xf32>
    %13 = vector.broadcast %12 : vector<1x256xf32> to vector<32x256xf32>
    %14 = arith.addf %11, %13 : vector<32x256xf32>
    %c0_7 = arith.constant 0 : index
    %c0_8 = arith.constant 0 : index
    %15 = vector.load %arg24[%c0_7, %c0_8] : memref<32x256xf32, #tpu.memory_space<vmem>>, vector<32x256xf32>
    tpu.vector_store %arg24[%c0_7, %c0_8], %14 {strides = array<i32>} : memref<32x256xf32, #tpu.memory_space<vmem>>, vector<32x256xf32>,
    %cst_9 = arith.constant 0.000000e+00 : f32
    %16 = vector.broadcast %cst_9 : f32 to vector<4x32xf32>
    %c0_10 = arith.constant 0 : index
    %c0_11 = arith.constant 0 : index
    %17 = vector.load %arg24[%c0_10, %c0_11] : memref<32x256xf32, #tpu.memory_space<vmem>>, vector<4x128xf32>
    %c28 = arith.constant 28 : index
    %c128 = arith.constant 128 : index
    %18 = vector.load %arg24[%c28, %c128] : memref<32x256xf32, #tpu.memory_space<vmem>>, vector<4x128xf32>
    %c0_12 = arith.constant 0 : index
    %c0_13 = arith.constant 0 : index
    %19 = vector.load %arg4[%c0_12, %c0_13] : memref<32x128xf32, #tpu.memory_space<vmem>>, vector<32x128xf32>
    %cst_14 = arith.constant dense<0.000000e+00> : vector<4x128xf32>
    %20 = tpu.matmul %16, %19, %cst_14 {dimension_numbers = #tpu.dot_dimension_numbers<[1], [0], [0], [1], [0, 0, 1, 1], [], []>} : vector<4x32xf32>, vector<32x128xf32>, vector<4x128xf32> -> vector<4x128xf32>
    %21 = arith.addf %17, %20 : vector<4x128xf32>
    %22 = vector.extract_strided_slice %21 {offsets = [0, 0], sizes = [4, 32], strides = [1, 1]} : vector<4x128xf32> to vector<4x32xf32>
    %23 = arith.negf %22 : vector<4x32xf32>
    %24 = math.exp %23 : vector<4x32xf32>
    %cst_15 = arith.constant 1.000000e+00 : f32
    %25 = vector.broadcast %cst_15 : f32 to vector<4x32xf32>
    %26 = arith.addf %25, %24 : vector<4x32xf32>
    %27 = arith.divf %25, %26 : vector<4x32xf32>
    %28 = vector.extract_strided_slice %21 {offsets = [0, 32], sizes = [4, 32], strides = [1, 1]} : vector<4x128xf32> to vector<4x32xf32>
    %29 = arith.negf %28 : vector<4x32xf32>
    %30 = math.exp %29 : vector<4x32xf32>
    %cst_16 = arith.constant 1.000000e+00 : f32
    %31 = vector.broadcast %cst_16 : f32 to vector<4x32xf32>
    %32 = arith.addf %31, %30 : vector<4x32xf32>
    %33 = arith.divf %31, %32 : vector<4x32xf32>
    %34 = vector.extract_strided_slice %21 {offsets = [0, 64], sizes = [4, 32], strides = [1, 1]} : vector<4x128xf32> to vector<4x32xf32>
    %35 = math.tanh %34 : vector<4x32xf32>
    %36 = vector.extract_strided_slice %21 {offsets = [0, 96], sizes = [4, 32], strides = [1, 1]} : vector<4x128xf32> to vector<4x32xf32>
    %37 = arith.negf %36 : vector<4x32xf32>
    %38 = math.exp %37 : vector<4x32xf32>
    %cst_17 = arith.constant 1.000000e+00 : f32
    %39 = vector.broadcast %cst_17 : f32 to vector<4x32xf32>
    %40 = arith.addf %39, %38 : vector<4x32xf32>
    %41 = arith.divf %39, %40 : vector<4x32xf32>
    %42 = arith.mulf %33, %16 : vector<4x32xf32>
    %43 = arith.mulf %27, %35 : vector<4x32xf32>
    %44 = arith.addf %42, %43 : vector<4x32xf32>
    %45 = math.tanh %44 : vector<4x32xf32>
    %46 = arith.mulf %41, %45 : vector<4x32xf32>
    %c0_18 = arith.constant 0 : index
    %c0_19 = arith.constant 0 : index
    %47 = vector.load %arg5[%c0_18, %c0_19] : memref<32x128xf32, #tpu.memory_space<vmem>>, vector<32x128xf32>
    %cst_20 = arith.constant dense<0.000000e+00> : vector<4x128xf32>
    %48 = tpu.matmul %16, %47, %cst_20 {dimension_numbers = #tpu.dot_dimension_numbers<[1], [0], [0], [1], [0, 0, 1, 1], [], []>} : vector<4x32xf32>, vector<32x128xf32>, vector<4x128xf32> -> vector<4x128xf32>
    %49 = arith.addf %18, %48 : vector<4x128xf32>
    %50 = vector.extract_strided_slice %49 {offsets = [0, 0], sizes = [4, 32], strides = [1, 1]} : vector<4x128xf32> to vector<4x32xf32>
    %51 = arith.negf %50 : vector<4x32xf32>
    %52 = math.exp %51 : vector<4x32xf32>
    %cst_21 = arith.constant 1.000000e+00 : f32
    %53 = vector.broadcast %cst_21 : f32 to vector<4x32xf32>
    %54 = arith.addf %53, %52 : vector<4x32xf32>
    %55 = arith.divf %53, %54 : vector<4x32xf32>
    %56 = vector.extract_strided_slice %49 {offsets = [0, 32], sizes = [4, 32], strides = [1, 1]} : vector<4x128xf32> to vector<4x32xf32>
    %57 = arith.negf %56 : vector<4x32xf32>
    %58 = math.exp %57 : vector<4x32xf32>
    %cst_22 = arith.constant 1.000000e+00 : f32
    %59 = vector.broadcast %cst_22 : f32 to vector<4x32xf32>
    %60 = arith.addf %59, %58 : vector<4x32xf32>
    %61 = arith.divf %59, %60 : vector<4x32xf32>
    %62 = vector.extract_strided_slice %49 {offsets = [0, 64], sizes = [4, 32], strides = [1, 1]} : vector<4x128xf32> to vector<4x32xf32>
    %63 = math.tanh %62 : vector<4x32xf32>
    %64 = vector.extract_strided_slice %49 {offsets = [0, 96], sizes = [4, 32], strides = [1, 1]} : vector<4x128xf32> to vector<4x32xf32>
    %65 = arith.negf %64 : vector<4x32xf32>
    %66 = math.exp %65 : vector<4x32xf32>
    %cst_23 = arith.constant 1.000000e+00 : f32
    %67 = vector.broadcast %cst_23 : f32 to vector<4x32xf32>
    %68 = arith.addf %67, %66 : vector<4x32xf32>
    %69 = arith.divf %67, %68 : vector<4x32xf32>
    %70 = arith.mulf %61, %16 : vector<4x32xf32>
    %71 = arith.mulf %55, %63 : vector<4x32xf32>
    %72 = arith.addf %70, %71 : vector<4x32xf32>
    %73 = math.tanh %72 : vector<4x32xf32>
    %74 = arith.mulf %69, %73 : vector<4x32xf32>
    %c0_i32_24 = arith.constant 0 : i32
    %75 = vector.broadcast %c0_i32_24 : i32 to vector<4x1xi32>
    %76 = arith.cmpi sgt, %8, %75 : vector<4x1xi32>
    %c7_i32 = arith.constant 7 : i32
    %77 = vector.broadcast %c7_i32 : i32 to vector<4x1xi32>
    %78 = arith.cmpi sgt, %8, %77 : vector<4x1xi32>
    %79 = vector.shape_cast %76 : vector<4x1xi1> to vector<4x1xi1>
    %80 = vector.broadcast %79 : vector<4x1xi1> to vector<4x32xi1>
    %81 = arith.select %80, %46, %16 : vector<4x32xi1>, vector<4x32xf32>
    %82 = vector.shape_cast %76 : vector<4x1xi1> to vector<4x1xi1>
    %83 = vector.broadcast %82 : vector<4x1xi1> to vector<4x32xi1>
    %84 = arith.select %83, %44, %16 : vector<4x32xi1>, vector<4x32xf32>
    %85 = vector.shape_cast %78 : vector<4x1xi1> to vector<4x1xi1>
    %86 = vector.broadcast %85 : vector<4x1xi1> to vector<4x32xi1>
    %87 = arith.select %86, %74, %16 : vector<4x32xi1>, vector<4x32xf32>
    %88 = vector.shape_cast %78 : vector<4x1xi1> to vector<4x1xi1>
    %89 = vector.broadcast %88 : vector<4x1xi1> to vector<4x32xi1>
    %90 = arith.select %89, %72, %16 : vector<4x32xi1>, vector<4x32xf32>
    %c4 = arith.constant 4 : index
    %c0_25 = arith.constant 0 : index
    %91 = vector.load %arg24[%c4, %c0_25] : memref<32x256xf32, #tpu.memory_space<vmem>>, vector<4x128xf32>
    %c24 = arith.constant 24 : index
    %c128_26 = arith.constant 128 : index
    %92 = vector.load %arg24[%c24, %c128_26] : memref<32x256xf32, #tpu.memory_space<vmem>>, vector<4x128xf32>
    %c0_27 = arith.constant 0 : index
    %c0_28 = arith.constant 0 : index
    %93 = vector.load %arg4[%c0_27, %c0_28] : memref<32x128xf32, #tpu.memory_space<vmem>>, vector<32x128xf32>
    %cst_29 = arith.constant dense<0.000000e+00> : vector<4x128xf32>
    %94 = tpu.matmul %81, %93, %cst_29 {dimension_numbers = #tpu.dot_dimension_numbers<[1], [0], [0], [1], [0, 0, 1, 1], [], []>} : vector<4x32xf32>, vector<32x128xf32>, vector<4x128xf32> -> vector<4x128xf32>
    %95 = arith.addf %91, %94 : vector<4x128xf32>
    %96 = vector.extract_strided_slice %95 {offsets = [0, 0], sizes = [4, 32], strides = [1, 1]} : vector<4x128xf32> to vector<4x32xf32>
    %97 = arith.negf %96 : vector<4x32xf32>
    %98 = math.exp %97 : vector<4x32xf32>
    %cst_30 = arith.constant 1.000000e+00 : f32
    %99 = vector.broadcast %cst_30 : f32 to vector<4x32xf32>
    %100 = arith.addf %99, %98 : vector<4x32xf32>
    %101 = arith.divf %99, %100 : vector<4x32xf32>
    %102 = vector.extract_strided_slice %95 {offsets = [0, 32], sizes = [4, 32], strides = [1, 1]} : vector<4x128xf32> to vector<4x32xf32>
    %103 = arith.negf %102 : vector<4x32xf32>
    %104 = math.exp %103 : vector<4x32xf32>
    %cst_31 = arith.constant 1.000000e+00 : f32
    %105 = vector.broadcast %cst_31 : f32 to vector<4x32xf32>
    %106 = arith.addf %105, %104 : vector<4x32xf32>
    %107 = arith.divf %105, %106 : vector<4x32xf32>
    %108 = vector.extract_strided_slice %95 {offsets = [0, 64], sizes = [4, 32], strides = [1, 1]} : vector<4x128xf32> to vector<4x32xf32>
    %109 = math.tanh %108 : vector<4x32xf32>
    %110 = vector.extract_strided_slice %95 {offsets = [0, 96], sizes = [4, 32], strides = [1, 1]} : vector<4x128xf32> to vector<4x32xf32>
    %111 = arith.negf %110 : vector<4x32xf32>
    %112 = math.exp %111 : vector<4x32xf32>
    %cst_32 = arith.constant 1.000000e+00 : f32
    %113 = vector.broadcast %cst_32 : f32 to vector<4x32xf32>
    %114 = arith.addf %113, %112 : vector<4x32xf32>
    %115 = arith.divf %113, %114 : vector<4x32xf32>
    %116 = arith.mulf %107, %84 : vector<4x32xf32>
    %117 = arith.mulf %101, %109 : vector<4x32xf32>
    %118 = arith.addf %116, %117 : vector<4x32xf32>
    %119 = math.tanh %118 : vector<4x32xf32>
    %120 = arith.mulf %115, %119 : vector<4x32xf32>
    %c0_33 = arith.constant 0 : index
    %c0_34 = arith.constant 0 : index
    %121 = vector.load %arg5[%c0_33, %c0_34] : memref<32x128xf32, #tpu.memory_space<vmem>>, vector<32x128xf32>
    %cst_35 = arith.constant dense<0.000000e+00> : vector<4x128xf32>
    %122 = tpu.matmul %87, %121, %cst_35 {dimension_numbers = #tpu.dot_dimension_numbers<[1], [0], [0], [1], [0, 0, 1, 1], [], []>} : vector<4x32xf32>, vector<32x128xf32>, vector<4x128xf32> -> vector<4x128xf32>
    %123 = arith.addf %92, %122 : vector<4x128xf32>
    %124 = vector.extract_strided_slice %123 {offsets = [0, 0], sizes = [4, 32], strides = [1, 1]} : vector<4x128xf32> to vector<4x32xf32>
    %125 = arith.negf %124 : vector<4x32xf32>
    %126 = math.exp %125 : vector<4x32xf32>
    %cst_36 = arith.constant 1.000000e+00 : f32
    %127 = vector.broadcast %cst_36 : f32 to vector<4x32xf32>
    %128 = arith.addf %127, %126 : vector<4x32xf32>
    %129 = arith.divf %127, %128 : vector<4x32xf32>
    %130 = vector.extract_strided_slice %123 {offsets = [0, 32], sizes = [4, 32], strides = [1, 1]} : vector<4x128xf32> to vector<4x32xf32>
    %131 = arith.negf %130 : vector<4x32xf32>
    %132 = math.exp %131 : vector<4x32xf32>
    %cst_37 = arith.constant 1.000000e+00 : f32
    %133 = vector.broadcast %cst_37 : f32 to vector<4x32xf32>
    %134 = arith.addf %133, %132 : vector<4x32xf32>
    %135 = arith.divf %133, %134 : vector<4x32xf32>
    %136 = vector.extract_strided_slice %123 {offsets = [0, 64], sizes = [4, 32], strides = [1, 1]} : vector<4x128xf32> to vector<4x32xf32>
    %137 = math.tanh %136 : vector<4x32xf32>
    %138 = vector.extract_strided_slice %123 {offsets = [0, 96], sizes = [4, 32], strides = [1, 1]} : vector<4x128xf32> to vector<4x32xf32>
    %139 = arith.negf %138 : vector<4x32xf32>
    %140 = math.exp %139 : vector<4x32xf32>
    %cst_38 = arith.constant 1.000000e+00 : f32
    %141 = vector.broadcast %cst_38 : f32 to vector<4x32xf32>
    %142 = arith.addf %141, %140 : vector<4x32xf32>
    %143 = arith.divf %141, %142 : vector<4x32xf32>
    %144 = arith.mulf %135, %90 : vector<4x32xf32>
    %145 = arith.mulf %129, %137 : vector<4x32xf32>
    %146 = arith.addf %144, %145 : vector<4x32xf32>
    %147 = math.tanh %146 : vector<4x32xf32>
    %148 = arith.mulf %143, %147 : vector<4x32xf32>
    %c1_i32_39 = arith.constant 1 : i32
    %149 = vector.broadcast %c1_i32_39 : i32 to vector<4x1xi32>
    %150 = arith.cmpi sgt, %8, %149 : vector<4x1xi32>
    %c6_i32 = arith.constant 6 : i32
    %151 = vector.broadcast %c6_i32 : i32 to vector<4x1xi32>
    %152 = arith.cmpi sgt, %8, %151 : vector<4x1xi32>
    %153 = vector.shape_cast %150 : vector<4x1xi1> to vector<4x1xi1>
    %154 = vector.broadcast %153 : vector<4x1xi1> to vector<4x32xi1>
    %155 = arith.select %154, %120, %81 : vector<4x32xi1>, vector<4x32xf32>
    %156 = vector.shape_cast %150 : vector<4x1xi1> to vector<4x1xi1>
    %157 = vector.broadcast %156 : vector<4x1xi1> to vector<4x32xi1>
    %158 = arith.select %157, %118, %84 : vector<4x32xi1>, vector<4x32xf32>
    %159 = vector.shape_cast %152 : vector<4x1xi1> to vector<4x1xi1>
    %160 = vector.broadcast %159 : vector<4x1xi1> to vector<4x32xi1>
    %161 = arith.select %160, %148, %87 : vector<4x32xi1>, vector<4x32xf32>
    %162 = vector.shape_cast %152 : vector<4x1xi1> to vector<4x1xi1>
    %163 = vector.broadcast %162 : vector<4x1xi1> to vector<4x32xi1>
    %164 = arith.select %163, %146, %90 : vector<4x32xi1>, vector<4x32xf32>
    %c8 = arith.constant 8 : index
    %c0_40 = arith.constant 0 : index
    %165 = vector.load %arg24[%c8, %c0_40] : memref<32x256xf32, #tpu.memory_space<vmem>>, vector<4x128xf32>
    %c20 = arith.constant 20 : index
    %c128_41 = arith.constant 128 : index
    %166 = vector.load %arg24[%c20, %c128_41] : memref<32x256xf32, #tpu.memory_space<vmem>>, vector<4x128xf32>
    %c0_42 = arith.constant 0 : index
    %c0_43 = arith.constant 0 : index
    %167 = vector.load %arg4[%c0_42, %c0_43] : memref<32x128xf32, #tpu.memory_space<vmem>>, vector<32x128xf32>
    %cst_44 = arith.constant dense<0.000000e+00> : vector<4x128xf32>
    %168 = tpu.matmul %155, %167, %cst_44 {dimension_numbers = #tpu.dot_dimension_numbers<[1], [0], [0], [1], [0, 0, 1, 1], [], []>} : vector<4x32xf32>, vector<32x128xf32>, vector<4x128xf32> -> vector<4x128xf32>
    %169 = arith.addf %165, %168 : vector<4x128xf32>
    %170 = vector.extract_strided_slice %169 {offsets = [0, 0], sizes = [4, 32], strides = [1, 1]} : vector<4x128xf32> to vector<4x32xf32>
    %171 = arith.negf %170 : vector<4x32xf32>
    %172 = math.exp %171 : vector<4x32xf32>
    %cst_45 = arith.constant 1.000000e+00 : f32
    %173 = vector.broadcast %cst_45 : f32 to vector<4x32xf32>
    %174 = arith.addf %173, %172 : vector<4x32xf32>
    %175 = arith.divf %173, %174 : vector<4x32xf32>
    %176 = vector.extract_strided_slice %169 {offsets = [0, 32], sizes = [4, 32], strides = [1, 1]} : vector<4x128xf32> to vector<4x32xf32>
    %177 = arith.negf %176 : vector<4x32xf32>
    %178 = math.exp %177 : vector<4x32xf32>
    %cst_46 = arith.constant 1.000000e+00 : f32
    %179 = vector.broadcast %cst_46 : f32 to vector<4x32xf32>
    %180 = arith.addf %179, %178 : vector<4x32xf32>
    %181 = arith.divf %179, %180 : vector<4x32xf32>
    %182 = vector.extract_strided_slice %169 {offsets = [0, 64], sizes = [4, 32], strides = [1, 1]} : vector<4x128xf32> to vector<4x32xf32>
    %183 = math.tanh %182 : vector<4x32xf32>
    %184 = vector.extract_strided_slice %169 {offsets = [0, 96], sizes = [4, 32], strides = [1, 1]} : vector<4x128xf32> to vector<4x32xf32>
    %185 = arith.negf %184 : vector<4x32xf32>
    %186 = math.exp %185 : vector<4x32xf32>
    %cst_47 = arith.constant 1.000000e+00 : f32
    %187 = vector.broadcast %cst_47 : f32 to vector<4x32xf32>
    %188 = arith.addf %187, %186 : vector<4x32xf32>
    %189 = arith.divf %187, %188 : vector<4x32xf32>
    %190 = arith.mulf %181, %158 : vector<4x32xf32>
    %191 = arith.mulf %175, %183 : vector<4x32xf32>
    %192 = arith.addf %190, %191 : vector<4x32xf32>
    %193 = math.tanh %192 : vector<4x32xf32>
    %194 = arith.mulf %189, %193 : vector<4x32xf32>
    %c0_48 = arith.constant 0 : index
    %c0_49 = arith.constant 0 : index
    %195 = vector.load %arg5[%c0_48, %c0_49] : memref<32x128xf32, #tpu.memory_space<vmem>>, vector<32x128xf32>
    %cst_50 = arith.constant dense<0.000000e+00> : vector<4x128xf32>
    %196 = tpu.matmul %161, %195, %cst_50 {dimension_numbers = #tpu.dot_dimension_numbers<[1], [0], [0], [1], [0, 0, 1, 1], [], []>} : vector<4x32xf32>, vector<32x128xf32>, vector<4x128xf32> -> vector<4x128xf32>
    %197 = arith.addf %166, %196 : vector<4x128xf32>
    %198 = vector.extract_strided_slice %197 {offsets = [0, 0], sizes = [4, 32], strides = [1, 1]} : vector<4x128xf32> to vector<4x32xf32>
    %199 = arith.negf %198 : vector<4x32xf32>
    %200 = math.exp %199 : vector<4x32xf32>
    %cst_51 = arith.constant 1.000000e+00 : f32
    %201 = vector.broadcast %cst_51 : f32 to vector<4x32xf32>
    %202 = arith.addf %201, %200 : vector<4x32xf32>
    %203 = arith.divf %201, %202 : vector<4x32xf32>
    %204 = vector.extract_strided_slice %197 {offsets = [0, 32], sizes = [4, 32], strides = [1, 1]} : vector<4x128xf32> to vector<4x32xf32>
    %205 = arith.negf %204 : vector<4x32xf32>
    %206 = math.exp %205 : vector<4x32xf32>
    %cst_52 = arith.constant 1.000000e+00 : f32
    %207 = vector.broadcast %cst_52 : f32 to vector<4x32xf32>
    %208 = arith.addf %207, %206 : vector<4x32xf32>
    %209 = arith.divf %207, %208 : vector<4x32xf32>
    %210 = vector.extract_strided_slice %197 {offsets = [0, 64], sizes = [4, 32], strides = [1, 1]} : vector<4x128xf32> to vector<4x32xf32>
    %211 = math.tanh %210 : vector<4x32xf32>
    %212 = vector.extract_strided_slice %197 {offsets = [0, 96], sizes = [4, 32], strides = [1, 1]} : vector<4x128xf32> to vector<4x32xf32>
    %213 = arith.negf %212 : vector<4x32xf32>
    %214 = math.exp %213 : vector<4x32xf32>
    %cst_53 = arith.constant 1.000000e+00 : f32
    %215 = vector.broadcast %cst_53 : f32 to vector<4x32xf32>
    %216 = arith.addf %215, %214 : vector<4x32xf32>
    %217 = arith.divf %215, %216 : vector<4x32xf32>
    %218 = arith.mulf %209, %164 : vector<4x32xf32>
    %219 = arith.mulf %203, %211 : vector<4x32xf32>
    %220 = arith.addf %218, %219 : vector<4x32xf32>
    %221 = math.tanh %220 : vector<4x32xf32>
    %222 = arith.mulf %217, %221 : vector<4x32xf32>
    %c2_i32_54 = arith.constant 2 : i32
    %223 = vector.broadcast %c2_i32_54 : i32 to vector<4x1xi32>
    %224 = arith.cmpi sgt, %8, %223 : vector<4x1xi32>
    %c5_i32 = arith.constant 5 : i32
    %225 = vector.broadcast %c5_i32 : i32 to vector<4x1xi32>
    %226 = arith.cmpi sgt, %8, %225 : vector<4x1xi32>
    %227 = vector.shape_cast %224 : vector<4x1xi1> to vector<4x1xi1>
    %228 = vector.broadcast %227 : vector<4x1xi1> to vector<4x32xi1>
    %229 = arith.select %228, %194, %155 : vector<4x32xi1>, vector<4x32xf32>
    %230 = vector.shape_cast %224 : vector<4x1xi1> to vector<4x1xi1>
    %231 = vector.broadcast %230 : vector<4x1xi1> to vector<4x32xi1>
    %232 = arith.select %231, %192, %158 : vector<4x32xi1>, vector<4x32xf32>
    %233 = vector.shape_cast %226 : vector<4x1xi1> to vector<4x1xi1>
    %234 = vector.broadcast %233 : vector<4x1xi1> to vector<4x32xi1>
    %235 = arith.select %234, %222, %161 : vector<4x32xi1>, vector<4x32xf32>
    %236 = vector.shape_cast %226 : vector<4x1xi1> to vector<4x1xi1>
    %237 = vector.broadcast %236 : vector<4x1xi1> to vector<4x32xi1>
    %238 = arith.select %237, %220, %164 : vector<4x32xi1>, vector<4x32xf32>
    %c12 = arith.constant 12 : index
    %c0_55 = arith.constant 0 : index
    %239 = vector.load %arg24[%c12, %c0_55] : memref<32x256xf32, #tpu.memory_space<vmem>>, vector<4x128xf32>
    %c16 = arith.constant 16 : index
    %c128_56 = arith.constant 128 : index
    %240 = vector.load %arg24[%c16, %c128_56] : memref<32x256xf32, #tpu.memory_space<vmem>>, vector<4x128xf32>
    %c0_57 = arith.constant 0 : index
    %c0_58 = arith.constant 0 : index
    %241 = vector.load %arg4[%c0_57, %c0_58] : memref<32x128xf32, #tpu.memory_space<vmem>>, vector<32x128xf32>
    %cst_59 = arith.constant dense<0.000000e+00> : vector<4x128xf32>
    %242 = tpu.matmul %229, %241, %cst_59 {dimension_numbers = #tpu.dot_dimension_numbers<[1], [0], [0], [1], [0, 0, 1, 1], [], []>} : vector<4x32xf32>, vector<32x128xf32>, vector<4x128xf32> -> vector<4x128xf32>
    %243 = arith.addf %239, %242 : vector<4x128xf32>
    %244 = vector.extract_strided_slice %243 {offsets = [0, 0], sizes = [4, 32], strides = [1, 1]} : vector<4x128xf32> to vector<4x32xf32>
    %245 = arith.negf %244 : vector<4x32xf32>
    %246 = math.exp %245 : vector<4x32xf32>
    %cst_60 = arith.constant 1.000000e+00 : f32
    %247 = vector.broadcast %cst_60 : f32 to vector<4x32xf32>
    %248 = arith.addf %247, %246 : vector<4x32xf32>
    %249 = arith.divf %247, %248 : vector<4x32xf32>
    %250 = vector.extract_strided_slice %243 {offsets = [0, 32], sizes = [4, 32], strides = [1, 1]} : vector<4x128xf32> to vector<4x32xf32>
    %251 = arith.negf %250 : vector<4x32xf32>
    %252 = math.exp %251 : vector<4x32xf32>
    %cst_61 = arith.constant 1.000000e+00 : f32
    %253 = vector.broadcast %cst_61 : f32 to vector<4x32xf32>
    %254 = arith.addf %253, %252 : vector<4x32xf32>
    %255 = arith.divf %253, %254 : vector<4x32xf32>
    %256 = vector.extract_strided_slice %243 {offsets = [0, 64], sizes = [4, 32], strides = [1, 1]} : vector<4x128xf32> to vector<4x32xf32>
    %257 = math.tanh %256 : vector<4x32xf32>
    %258 = vector.extract_strided_slice %243 {offsets = [0, 96], sizes = [4, 32], strides = [1, 1]} : vector<4x128xf32> to vector<4x32xf32>
    %259 = arith.negf %258 : vector<4x32xf32>
    %260 = math.exp %259 : vector<4x32xf32>
    %cst_62 = arith.constant 1.000000e+00 : f32
    %261 = vector.broadcast %cst_62 : f32 to vector<4x32xf32>
    %262 = arith.addf %261, %260 : vector<4x32xf32>
    %263 = arith.divf %261, %262 : vector<4x32xf32>
    %264 = arith.mulf %255, %232 : vector<4x32xf32>
    %265 = arith.mulf %249, %257 : vector<4x32xf32>
    %266 = arith.addf %264, %265 : vector<4x32xf32>
    %267 = math.tanh %266 : vector<4x32xf32>
    %268 = arith.mulf %263, %267 : vector<4x32xf32>
    %c0_63 = arith.constant 0 : index
    %c0_64 = arith.constant 0 : index
    %269 = vector.load %arg5[%c0_63, %c0_64] : memref<32x128xf32, #tpu.memory_space<vmem>>, vector<32x128xf32>
    %cst_65 = arith.constant dense<0.000000e+00> : vector<4x128xf32>
    %270 = tpu.matmul %235, %269, %cst_65 {dimension_numbers = #tpu.dot_dimension_numbers<[1], [0], [0], [1], [0, 0, 1, 1], [], []>} : vector<4x32xf32>, vector<32x128xf32>, vector<4x128xf32> -> vector<4x128xf32>
    %271 = arith.addf %240, %270 : vector<4x128xf32>
    %272 = vector.extract_strided_slice %271 {offsets = [0, 0], sizes = [4, 32], strides = [1, 1]} : vector<4x128xf32> to vector<4x32xf32>
    %273 = arith.negf %272 : vector<4x32xf32>
    %274 = math.exp %273 : vector<4x32xf32>
    %cst_66 = arith.constant 1.000000e+00 : f32
    %275 = vector.broadcast %cst_66 : f32 to vector<4x32xf32>
    %276 = arith.addf %275, %274 : vector<4x32xf32>
    %277 = arith.divf %275, %276 : vector<4x32xf32>
    %278 = vector.extract_strided_slice %271 {offsets = [0, 32], sizes = [4, 32], strides = [1, 1]} : vector<4x128xf32> to vector<4x32xf32>
    %279 = arith.negf %278 : vector<4x32xf32>
    %280 = math.exp %279 : vector<4x32xf32>
    %cst_67 = arith.constant 1.000000e+00 : f32
    %281 = vector.broadcast %cst_67 : f32 to vector<4x32xf32>
    %282 = arith.addf %281, %280 : vector<4x32xf32>
    %283 = arith.divf %281, %282 : vector<4x32xf32>
    %284 = vector.extract_strided_slice %271 {offsets = [0, 64], sizes = [4, 32], strides = [1, 1]} : vector<4x128xf32> to vector<4x32xf32>
    %285 = math.tanh %284 : vector<4x32xf32>
    %286 = vector.extract_strided_slice %271 {offsets = [0, 96], sizes = [4, 32], strides = [1, 1]} : vector<4x128xf32> to vector<4x32xf32>
    %287 = arith.negf %286 : vector<4x32xf32>
    %288 = math.exp %287 : vector<4x32xf32>
    %cst_68 = arith.constant 1.000000e+00 : f32
    %289 = vector.broadcast %cst_68 : f32 to vector<4x32xf32>
    %290 = arith.addf %289, %288 : vector<4x32xf32>
    %291 = arith.divf %289, %290 : vector<4x32xf32>
    %292 = arith.mulf %283, %238 : vector<4x32xf32>
    %293 = arith.mulf %277, %285 : vector<4x32xf32>
    %294 = arith.addf %292, %293 : vector<4x32xf32>
    %295 = math.tanh %294 : vector<4x32xf32>
    %296 = arith.mulf %291, %295 : vector<4x32xf32>
    %c3_i32_69 = arith.constant 3 : i32
    %297 = vector.broadcast %c3_i32_69 : i32 to vector<4x1xi32>
    %298 = arith.cmpi sgt, %8, %297 : vector<4x1xi32>
    %c4_i32 = arith.constant 4 : i32
    %299 = vector.broadcast %c4_i32 : i32 to vector<4x1xi32>
    %300 = arith.cmpi sgt, %8, %299 : vector<4x1xi32>
    %301 = vector.shape_cast %298 : vector<4x1xi1> to vector<4x1xi1>
    %302 = vector.broadcast %301 : vector<4x1xi1> to vector<4x32xi1>
    %303 = arith.select %302, %268, %229 : vector<4x32xi1>, vector<4x32xf32>
    %304 = vector.shape_cast %298 : vector<4x1xi1> to vector<4x1xi1>
    %305 = vector.broadcast %304 : vector<4x1xi1> to vector<4x32xi1>
    %306 = arith.select %305, %266, %232 : vector<4x32xi1>, vector<4x32xf32>
    %307 = vector.shape_cast %300 : vector<4x1xi1> to vector<4x1xi1>
    %308 = vector.broadcast %307 : vector<4x1xi1> to vector<4x32xi1>
    %309 = arith.select %308, %296, %235 : vector<4x32xi1>, vector<4x32xf32>
    %310 = vector.shape_cast %300 : vector<4x1xi1> to vector<4x1xi1>
    %311 = vector.broadcast %310 : vector<4x1xi1> to vector<4x32xi1>
    %312 = arith.select %311, %294, %238 : vector<4x32xi1>, vector<4x32xf32>
    %c16_70 = arith.constant 16 : index
    %c0_71 = arith.constant 0 : index
    %313 = vector.load %arg24[%c16_70, %c0_71] : memref<32x256xf32, #tpu.memory_space<vmem>>, vector<4x128xf32>
    %c12_72 = arith.constant 12 : index
    %c128_73 = arith.constant 128 : index
    %314 = vector.load %arg24[%c12_72, %c128_73] : memref<32x256xf32, #tpu.memory_space<vmem>>, vector<4x128xf32>
    %c0_74 = arith.constant 0 : index
    %c0_75 = arith.constant 0 : index
    %315 = vector.load %arg4[%c0_74, %c0_75] : memref<32x128xf32, #tpu.memory_space<vmem>>, vector<32x128xf32>
    %cst_76 = arith.constant dense<0.000000e+00> : vector<4x128xf32>
    %316 = tpu.matmul %303, %315, %cst_76 {dimension_numbers = #tpu.dot_dimension_numbers<[1], [0], [0], [1], [0, 0, 1, 1], [], []>} : vector<4x32xf32>, vector<32x128xf32>, vector<4x128xf32> -> vector<4x128xf32>
    %317 = arith.addf %313, %316 : vector<4x128xf32>
    %318 = vector.extract_strided_slice %317 {offsets = [0, 0], sizes = [4, 32], strides = [1, 1]} : vector<4x128xf32> to vector<4x32xf32>
    %319 = arith.negf %318 : vector<4x32xf32>
    %320 = math.exp %319 : vector<4x32xf32>
    %cst_77 = arith.constant 1.000000e+00 : f32
    %321 = vector.broadcast %cst_77 : f32 to vector<4x32xf32>
    %322 = arith.addf %321, %320 : vector<4x32xf32>
    %323 = arith.divf %321, %322 : vector<4x32xf32>
    %324 = vector.extract_strided_slice %317 {offsets = [0, 32], sizes = [4, 32], strides = [1, 1]} : vector<4x128xf32> to vector<4x32xf32>
    %325 = arith.negf %324 : vector<4x32xf32>
    %326 = math.exp %325 : vector<4x32xf32>
    %cst_78 = arith.constant 1.000000e+00 : f32
    %327 = vector.broadcast %cst_78 : f32 to vector<4x32xf32>
    %328 = arith.addf %327, %326 : vector<4x32xf32>
    %329 = arith.divf %327, %328 : vector<4x32xf32>
    %330 = vector.extract_strided_slice %317 {offsets = [0, 64], sizes = [4, 32], strides = [1, 1]} : vector<4x128xf32> to vector<4x32xf32>
    %331 = math.tanh %330 : vector<4x32xf32>
    %332 = vector.extract_strided_slice %317 {offsets = [0, 96], sizes = [4, 32], strides = [1, 1]} : vector<4x128xf32> to vector<4x32xf32>
    %333 = arith.negf %332 : vector<4x32xf32>
    %334 = math.exp %333 : vector<4x32xf32>
    %cst_79 = arith.constant 1.000000e+00 : f32
    %335 = vector.broadcast %cst_79 : f32 to vector<4x32xf32>
    %336 = arith.addf %335, %334 : vector<4x32xf32>
    %337 = arith.divf %335, %336 : vector<4x32xf32>
    %338 = arith.mulf %329, %306 : vector<4x32xf32>
    %339 = arith.mulf %323, %331 : vector<4x32xf32>
    %340 = arith.addf %338, %339 : vector<4x32xf32>
    %341 = math.tanh %340 : vector<4x32xf32>
    %342 = arith.mulf %337, %341 : vector<4x32xf32>
    %c0_80 = arith.constant 0 : index
    %c0_81 = arith.constant 0 : index
    %343 = vector.load %arg5[%c0_80, %c0_81] : memref<32x128xf32, #tpu.memory_space<vmem>>, vector<32x128xf32>
    %cst_82 = arith.constant dense<0.000000e+00> : vector<4x128xf32>
    %344 = tpu.matmul %309, %343, %cst_82 {dimension_numbers = #tpu.dot_dimension_numbers<[1], [0], [0], [1], [0, 0, 1, 1], [], []>} : vector<4x32xf32>, vector<32x128xf32>, vector<4x128xf32> -> vector<4x128xf32>
    %345 = arith.addf %314, %344 : vector<4x128xf32>
    %346 = vector.extract_strided_slice %345 {offsets = [0, 0], sizes = [4, 32], strides = [1, 1]} : vector<4x128xf32> to vector<4x32xf32>
    %347 = arith.negf %346 : vector<4x32xf32>
    %348 = math.exp %347 : vector<4x32xf32>
    %cst_83 = arith.constant 1.000000e+00 : f32
    %349 = vector.broadcast %cst_83 : f32 to vector<4x32xf32>
    %350 = arith.addf %349, %348 : vector<4x32xf32>
    %351 = arith.divf %349, %350 : vector<4x32xf32>
    %352 = vector.extract_strided_slice %345 {offsets = [0, 32], sizes = [4, 32], strides = [1, 1]} : vector<4x128xf32> to vector<4x32xf32>
    %353 = arith.negf %352 : vector<4x32xf32>
    %354 = math.exp %353 : vector<4x32xf32>
    %cst_84 = arith.constant 1.000000e+00 : f32
    %355 = vector.broadcast %cst_84 : f32 to vector<4x32xf32>
    %356 = arith.addf %355, %354 : vector<4x32xf32>
    %357 = arith.divf %355, %356 : vector<4x32xf32>
    %358 = vector.extract_strided_slice %345 {offsets = [0, 64], sizes = [4, 32], strides = [1, 1]} : vector<4x128xf32> to vector<4x32xf32>
    %359 = math.tanh %358 : vector<4x32xf32>
    %360 = vector.extract_strided_slice %345 {offsets = [0, 96], sizes = [4, 32], strides = [1, 1]} : vector<4x128xf32> to vector<4x32xf32>
    %361 = arith.negf %360 : vector<4x32xf32>
    %362 = math.exp %361 : vector<4x32xf32>
    %cst_85 = arith.constant 1.000000e+00 : f32
    %363 = vector.broadcast %cst_85 : f32 to vector<4x32xf32>
    %364 = arith.addf %363, %362 : vector<4x32xf32>
    %365 = arith.divf %363, %364 : vector<4x32xf32>
    %366 = arith.mulf %357, %312 : vector<4x32xf32>
    %367 = arith.mulf %351, %359 : vector<4x32xf32>
    %368 = arith.addf %366, %367 : vector<4x32xf32>
    %369 = math.tanh %368 : vector<4x32xf32>
    %370 = arith.mulf %365, %369 : vector<4x32xf32>
    %c4_i32_86 = arith.constant 4 : i32
    %371 = vector.broadcast %c4_i32_86 : i32 to vector<4x1xi32>
    %372 = arith.cmpi sgt, %8, %371 : vector<4x1xi32>
    %c3_i32_87 = arith.constant 3 : i32
    %373 = vector.broadcast %c3_i32_87 : i32 to vector<4x1xi32>
    %374 = arith.cmpi sgt, %8, %373 : vector<4x1xi32>
    %375 = vector.shape_cast %372 : vector<4x1xi1> to vector<4x1xi1>
    %376 = vector.broadcast %375 : vector<4x1xi1> to vector<4x32xi1>
    %377 = arith.select %376, %342, %303 : vector<4x32xi1>, vector<4x32xf32>
    %378 = vector.shape_cast %372 : vector<4x1xi1> to vector<4x1xi1>
    %379 = vector.broadcast %378 : vector<4x1xi1> to vector<4x32xi1>
    %380 = arith.select %379, %340, %306 : vector<4x32xi1>, vector<4x32xf32>
    %381 = vector.shape_cast %374 : vector<4x1xi1> to vector<4x1xi1>
    %382 = vector.broadcast %381 : vector<4x1xi1> to vector<4x32xi1>
    %383 = arith.select %382, %370, %309 : vector<4x32xi1>, vector<4x32xf32>
    %384 = vector.shape_cast %374 : vector<4x1xi1> to vector<4x1xi1>
    %385 = vector.broadcast %384 : vector<4x1xi1> to vector<4x32xi1>
    %386 = arith.select %385, %368, %312 : vector<4x32xi1>, vector<4x32xf32>
    %c20_88 = arith.constant 20 : index
    %c0_89 = arith.constant 0 : index
    %387 = vector.load %arg24[%c20_88, %c0_89] : memref<32x256xf32, #tpu.memory_space<vmem>>, vector<4x128xf32>
    %c8_90 = arith.constant 8 : index
    %c128_91 = arith.constant 128 : index
    %388 = vector.load %arg24[%c8_90, %c128_91] : memref<32x256xf32, #tpu.memory_space<vmem>>, vector<4x128xf32>
    %c0_92 = arith.constant 0 : index
    %c0_93 = arith.constant 0 : index
    %389 = vector.load %arg4[%c0_92, %c0_93] : memref<32x128xf32, #tpu.memory_space<vmem>>, vector<32x128xf32>
    %cst_94 = arith.constant dense<0.000000e+00> : vector<4x128xf32>
    %390 = tpu.matmul %377, %389, %cst_94 {dimension_numbers = #tpu.dot_dimension_numbers<[1], [0], [0], [1], [0, 0, 1, 1], [], []>} : vector<4x32xf32>, vector<32x128xf32>, vector<4x128xf32> -> vector<4x128xf32>
    %391 = arith.addf %387, %390 : vector<4x128xf32>
    %392 = vector.extract_strided_slice %391 {offsets = [0, 0], sizes = [4, 32], strides = [1, 1]} : vector<4x128xf32> to vector<4x32xf32>
    %393 = arith.negf %392 : vector<4x32xf32>
    %394 = math.exp %393 : vector<4x32xf32>
    %cst_95 = arith.constant 1.000000e+00 : f32
    %395 = vector.broadcast %cst_95 : f32 to vector<4x32xf32>
    %396 = arith.addf %395, %394 : vector<4x32xf32>
    %397 = arith.divf %395, %396 : vector<4x32xf32>
    %398 = vector.extract_strided_slice %391 {offsets = [0, 32], sizes = [4, 32], strides = [1, 1]} : vector<4x128xf32> to vector<4x32xf32>
    %399 = arith.negf %398 : vector<4x32xf32>
    %400 = math.exp %399 : vector<4x32xf32>
    %cst_96 = arith.constant 1.000000e+00 : f32
    %401 = vector.broadcast %cst_96 : f32 to vector<4x32xf32>
    %402 = arith.addf %401, %400 : vector<4x32xf32>
    %403 = arith.divf %401, %402 : vector<4x32xf32>
    %404 = vector.extract_strided_slice %391 {offsets = [0, 64], sizes = [4, 32], strides = [1, 1]} : vector<4x128xf32> to vector<4x32xf32>
    %405 = math.tanh %404 : vector<4x32xf32>
    %406 = vector.extract_strided_slice %391 {offsets = [0, 96], sizes = [4, 32], strides = [1, 1]} : vector<4x128xf32> to vector<4x32xf32>
    %407 = arith.negf %406 : vector<4x32xf32>
    %408 = math.exp %407 : vector<4x32xf32>
    %cst_97 = arith.constant 1.000000e+00 : f32
    %409 = vector.broadcast %cst_97 : f32 to vector<4x32xf32>
    %410 = arith.addf %409, %408 : vector<4x32xf32>
    %411 = arith.divf %409, %410 : vector<4x32xf32>
    %412 = arith.mulf %403, %380 : vector<4x32xf32>
    %413 = arith.mulf %397, %405 : vector<4x32xf32>
    %414 = arith.addf %412, %413 : vector<4x32xf32>
    %415 = math.tanh %414 : vector<4x32xf32>
    %416 = arith.mulf %411, %415 : vector<4x32xf32>
    %c0_98 = arith.constant 0 : index
    %c0_99 = arith.constant 0 : index
    %417 = vector.load %arg5[%c0_98, %c0_99] : memref<32x128xf32, #tpu.memory_space<vmem>>, vector<32x128xf32>
    %cst_100 = arith.constant dense<0.000000e+00> : vector<4x128xf32>
    %418 = tpu.matmul %383, %417, %cst_100 {dimension_numbers = #tpu.dot_dimension_numbers<[1], [0], [0], [1], [0, 0, 1, 1], [], []>} : vector<4x32xf32>, vector<32x128xf32>, vector<4x128xf32> -> vector<4x128xf32>
    %419 = arith.addf %388, %418 : vector<4x128xf32>
    %420 = vector.extract_strided_slice %419 {offsets = [0, 0], sizes = [4, 32], strides = [1, 1]} : vector<4x128xf32> to vector<4x32xf32>
    %421 = arith.negf %420 : vector<4x32xf32>
    %422 = math.exp %421 : vector<4x32xf32>
    %cst_101 = arith.constant 1.000000e+00 : f32
    %423 = vector.broadcast %cst_101 : f32 to vector<4x32xf32>
    %424 = arith.addf %423, %422 : vector<4x32xf32>
    %425 = arith.divf %423, %424 : vector<4x32xf32>
    %426 = vector.extract_strided_slice %419 {offsets = [0, 32], sizes = [4, 32], strides = [1, 1]} : vector<4x128xf32> to vector<4x32xf32>
    %427 = arith.negf %426 : vector<4x32xf32>
    %428 = math.exp %427 : vector<4x32xf32>
    %cst_102 = arith.constant 1.000000e+00 : f32
    %429 = vector.broadcast %cst_102 : f32 to vector<4x32xf32>
    %430 = arith.addf %429, %428 : vector<4x32xf32>
    %431 = arith.divf %429, %430 : vector<4x32xf32>
    %432 = vector.extract_strided_slice %419 {offsets = [0, 64], sizes = [4, 32], strides = [1, 1]} : vector<4x128xf32> to vector<4x32xf32>
    %433 = math.tanh %432 : vector<4x32xf32>
    %434 = vector.extract_strided_slice %419 {offsets = [0, 96], sizes = [4, 32], strides = [1, 1]} : vector<4x128xf32> to vector<4x32xf32>
    %435 = arith.negf %434 : vector<4x32xf32>
    %436 = math.exp %435 : vector<4x32xf32>
    %cst_103 = arith.constant 1.000000e+00 : f32
    %437 = vector.broadcast %cst_103 : f32 to vector<4x32xf32>
    %438 = arith.addf %437, %436 : vector<4x32xf32>
    %439 = arith.divf %437, %438 : vector<4x32xf32>
    %440 = arith.mulf %431, %386 : vector<4x32xf32>
    %441 = arith.mulf %425, %433 : vector<4x32xf32>
    %442 = arith.addf %440, %441 : vector<4x32xf32>
    %443 = math.tanh %442 : vector<4x32xf32>
    %444 = arith.mulf %439, %443 : vector<4x32xf32>
    %c5_i32_104 = arith.constant 5 : i32
    %445 = vector.broadcast %c5_i32_104 : i32 to vector<4x1xi32>
    %446 = arith.cmpi sgt, %8, %445 : vector<4x1xi32>
    %c2_i32_105 = arith.constant 2 : i32
    %447 = vector.broadcast %c2_i32_105 : i32 to vector<4x1xi32>
    %448 = arith.cmpi sgt, %8, %447 : vector<4x1xi32>
    %449 = vector.shape_cast %446 : vector<4x1xi1> to vector<4x1xi1>
    %450 = vector.broadcast %449 : vector<4x1xi1> to vector<4x32xi1>
    %451 = arith.select %450, %416, %377 : vector<4x32xi1>, vector<4x32xf32>
    %452 = vector.shape_cast %446 : vector<4x1xi1> to vector<4x1xi1>
    %453 = vector.broadcast %452 : vector<4x1xi1> to vector<4x32xi1>
    %454 = arith.select %453, %414, %380 : vector<4x32xi1>, vector<4x32xf32>
    %455 = vector.shape_cast %448 : vector<4x1xi1> to vector<4x1xi1>
    %456 = vector.broadcast %455 : vector<4x1xi1> to vector<4x32xi1>
    %457 = arith.select %456, %444, %383 : vector<4x32xi1>, vector<4x32xf32>
    %458 = vector.shape_cast %448 : vector<4x1xi1> to vector<4x1xi1>
    %459 = vector.broadcast %458 : vector<4x1xi1> to vector<4x32xi1>
    %460 = arith.select %459, %442, %386 : vector<4x32xi1>, vector<4x32xf32>
    %c24_106 = arith.constant 24 : index
    %c0_107 = arith.constant 0 : index
    %461 = vector.load %arg24[%c24_106, %c0_107] : memref<32x256xf32, #tpu.memory_space<vmem>>, vector<4x128xf32>
    %c4_108 = arith.constant 4 : index
    %c128_109 = arith.constant 128 : index
    %462 = vector.load %arg24[%c4_108, %c128_109] : memref<32x256xf32, #tpu.memory_space<vmem>>, vector<4x128xf32>
    %c0_110 = arith.constant 0 : index
    %c0_111 = arith.constant 0 : index
    %463 = vector.load %arg4[%c0_110, %c0_111] : memref<32x128xf32, #tpu.memory_space<vmem>>, vector<32x128xf32>
    %cst_112 = arith.constant dense<0.000000e+00> : vector<4x128xf32>
    %464 = tpu.matmul %451, %463, %cst_112 {dimension_numbers = #tpu.dot_dimension_numbers<[1], [0], [0], [1], [0, 0, 1, 1], [], []>} : vector<4x32xf32>, vector<32x128xf32>, vector<4x128xf32> -> vector<4x128xf32>
    %465 = arith.addf %461, %464 : vector<4x128xf32>
    %466 = vector.extract_strided_slice %465 {offsets = [0, 0], sizes = [4, 32], strides = [1, 1]} : vector<4x128xf32> to vector<4x32xf32>
    %467 = arith.negf %466 : vector<4x32xf32>
    %468 = math.exp %467 : vector<4x32xf32>
    %cst_113 = arith.constant 1.000000e+00 : f32
    %469 = vector.broadcast %cst_113 : f32 to vector<4x32xf32>
    %470 = arith.addf %469, %468 : vector<4x32xf32>
    %471 = arith.divf %469, %470 : vector<4x32xf32>
    %472 = vector.extract_strided_slice %465 {offsets = [0, 32], sizes = [4, 32], strides = [1, 1]} : vector<4x128xf32> to vector<4x32xf32>
    %473 = arith.negf %472 : vector<4x32xf32>
    %474 = math.exp %473 : vector<4x32xf32>
    %cst_114 = arith.constant 1.000000e+00 : f32
    %475 = vector.broadcast %cst_114 : f32 to vector<4x32xf32>
    %476 = arith.addf %475, %474 : vector<4x32xf32>
    %477 = arith.divf %475, %476 : vector<4x32xf32>
    %478 = vector.extract_strided_slice %465 {offsets = [0, 64], sizes = [4, 32], strides = [1, 1]} : vector<4x128xf32> to vector<4x32xf32>
    %479 = math.tanh %478 : vector<4x32xf32>
    %480 = vector.extract_strided_slice %465 {offsets = [0, 96], sizes = [4, 32], strides = [1, 1]} : vector<4x128xf32> to vector<4x32xf32>
    %481 = arith.negf %480 : vector<4x32xf32>
    %482 = math.exp %481 : vector<4x32xf32>
    %cst_115 = arith.constant 1.000000e+00 : f32
    %483 = vector.broadcast %cst_115 : f32 to vector<4x32xf32>
    %484 = arith.addf %483, %482 : vector<4x32xf32>
    %485 = arith.divf %483, %484 : vector<4x32xf32>
    %486 = arith.mulf %477, %454 : vector<4x32xf32>
    %487 = arith.mulf %471, %479 : vector<4x32xf32>
    %488 = arith.addf %486, %487 : vector<4x32xf32>
    %489 = math.tanh %488 : vector<4x32xf32>
    %490 = arith.mulf %485, %489 : vector<4x32xf32>
    %c0_116 = arith.constant 0 : index
    %c0_117 = arith.constant 0 : index
    %491 = vector.load %arg5[%c0_116, %c0_117] : memref<32x128xf32, #tpu.memory_space<vmem>>, vector<32x128xf32>
    %cst_118 = arith.constant dense<0.000000e+00> : vector<4x128xf32>
    %492 = tpu.matmul %457, %491, %cst_118 {dimension_numbers = #tpu.dot_dimension_numbers<[1], [0], [0], [1], [0, 0, 1, 1], [], []>} : vector<4x32xf32>, vector<32x128xf32>, vector<4x128xf32> -> vector<4x128xf32>
    %493 = arith.addf %462, %492 : vector<4x128xf32>
    %494 = vector.extract_strided_slice %493 {offsets = [0, 0], sizes = [4, 32], strides = [1, 1]} : vector<4x128xf32> to vector<4x32xf32>
    %495 = arith.negf %494 : vector<4x32xf32>
    %496 = math.exp %495 : vector<4x32xf32>
    %cst_119 = arith.constant 1.000000e+00 : f32
    %497 = vector.broadcast %cst_119 : f32 to vector<4x32xf32>
    %498 = arith.addf %497, %496 : vector<4x32xf32>
    %499 = arith.divf %497, %498 : vector<4x32xf32>
    %500 = vector.extract_strided_slice %493 {offsets = [0, 32], sizes = [4, 32], strides = [1, 1]} : vector<4x128xf32> to vector<4x32xf32>
    %501 = arith.negf %500 : vector<4x32xf32>
    %502 = math.exp %501 : vector<4x32xf32>
    %cst_120 = arith.constant 1.000000e+00 : f32
    %503 = vector.broadcast %cst_120 : f32 to vector<4x32xf32>
    %504 = arith.addf %503, %502 : vector<4x32xf32>
    %505 = arith.divf %503, %504 : vector<4x32xf32>
    %506 = vector.extract_strided_slice %493 {offsets = [0, 64], sizes = [4, 32], strides = [1, 1]} : vector<4x128xf32> to vector<4x32xf32>
    %507 = math.tanh %506 : vector<4x32xf32>
    %508 = vector.extract_strided_slice %493 {offsets = [0, 96], sizes = [4, 32], strides = [1, 1]} : vector<4x128xf32> to vector<4x32xf32>
    %509 = arith.negf %508 : vector<4x32xf32>
    %510 = math.exp %509 : vector<4x32xf32>
    %cst_121 = arith.constant 1.000000e+00 : f32
    %511 = vector.broadcast %cst_121 : f32 to vector<4x32xf32>
    %512 = arith.addf %511, %510 : vector<4x32xf32>
    %513 = arith.divf %511, %512 : vector<4x32xf32>
    %514 = arith.mulf %505, %460 : vector<4x32xf32>
    %515 = arith.mulf %499, %507 : vector<4x32xf32>
    %516 = arith.addf %514, %515 : vector<4x32xf32>
    %517 = math.tanh %516 : vector<4x32xf32>
    %518 = arith.mulf %513, %517 : vector<4x32xf32>
    %c6_i32_122 = arith.constant 6 : i32
    %519 = vector.broadcast %c6_i32_122 : i32 to vector<4x1xi32>
    %520 = arith.cmpi sgt, %8, %519 : vector<4x1xi32>
    %c1_i32_123 = arith.constant 1 : i32
    %521 = vector.broadcast %c1_i32_123 : i32 to vector<4x1xi32>
    %522 = arith.cmpi sgt, %8, %521 : vector<4x1xi32>
    %523 = vector.shape_cast %520 : vector<4x1xi1> to vector<4x1xi1>
    %524 = vector.broadcast %523 : vector<4x1xi1> to vector<4x32xi1>
    %525 = arith.select %524, %490, %451 : vector<4x32xi1>, vector<4x32xf32>
    %526 = vector.shape_cast %520 : vector<4x1xi1> to vector<4x1xi1>
    %527 = vector.broadcast %526 : vector<4x1xi1> to vector<4x32xi1>
    %528 = arith.select %527, %488, %454 : vector<4x32xi1>, vector<4x32xf32>
    %529 = vector.shape_cast %522 : vector<4x1xi1> to vector<4x1xi1>
    %530 = vector.broadcast %529 : vector<4x1xi1> to vector<4x32xi1>
    %531 = arith.select %530, %518, %457 : vector<4x32xi1>, vector<4x32xf32>
    %532 = vector.shape_cast %522 : vector<4x1xi1> to vector<4x1xi1>
    %533 = vector.broadcast %532 : vector<4x1xi1> to vector<4x32xi1>
    %534 = arith.select %533, %516, %460 : vector<4x32xi1>, vector<4x32xf32>
    %c28_124 = arith.constant 28 : index
    %c0_125 = arith.constant 0 : index
    %535 = vector.load %arg24[%c28_124, %c0_125] : memref<32x256xf32, #tpu.memory_space<vmem>>, vector<4x128xf32>
    %c0_126 = arith.constant 0 : index
    %c128_127 = arith.constant 128 : index
    %536 = vector.load %arg24[%c0_126, %c128_127] : memref<32x256xf32, #tpu.memory_space<vmem>>, vector<4x128xf32>
    %c0_128 = arith.constant 0 : index
    %c0_129 = arith.constant 0 : index
    %537 = vector.load %arg4[%c0_128, %c0_129] : memref<32x128xf32, #tpu.memory_space<vmem>>, vector<32x128xf32>
    %cst_130 = arith.constant dense<0.000000e+00> : vector<4x128xf32>
    %538 = tpu.matmul %525, %537, %cst_130 {dimension_numbers = #tpu.dot_dimension_numbers<[1], [0], [0], [1], [0, 0, 1, 1], [], []>} : vector<4x32xf32>, vector<32x128xf32>, vector<4x128xf32> -> vector<4x128xf32>
    %539 = arith.addf %535, %538 : vector<4x128xf32>
    %540 = vector.extract_strided_slice %539 {offsets = [0, 0], sizes = [4, 32], strides = [1, 1]} : vector<4x128xf32> to vector<4x32xf32>
    %541 = arith.negf %540 : vector<4x32xf32>
    %542 = math.exp %541 : vector<4x32xf32>
    %cst_131 = arith.constant 1.000000e+00 : f32
    %543 = vector.broadcast %cst_131 : f32 to vector<4x32xf32>
    %544 = arith.addf %543, %542 : vector<4x32xf32>
    %545 = arith.divf %543, %544 : vector<4x32xf32>
    %546 = vector.extract_strided_slice %539 {offsets = [0, 32], sizes = [4, 32], strides = [1, 1]} : vector<4x128xf32> to vector<4x32xf32>
    %547 = arith.negf %546 : vector<4x32xf32>
    %548 = math.exp %547 : vector<4x32xf32>
    %cst_132 = arith.constant 1.000000e+00 : f32
    %549 = vector.broadcast %cst_132 : f32 to vector<4x32xf32>
    %550 = arith.addf %549, %548 : vector<4x32xf32>
    %551 = arith.divf %549, %550 : vector<4x32xf32>
    %552 = vector.extract_strided_slice %539 {offsets = [0, 64], sizes = [4, 32], strides = [1, 1]} : vector<4x128xf32> to vector<4x32xf32>
    %553 = math.tanh %552 : vector<4x32xf32>
    %554 = vector.extract_strided_slice %539 {offsets = [0, 96], sizes = [4, 32], strides = [1, 1]} : vector<4x128xf32> to vector<4x32xf32>
    %555 = arith.negf %554 : vector<4x32xf32>
    %556 = math.exp %555 : vector<4x32xf32>
    %cst_133 = arith.constant 1.000000e+00 : f32
    %557 = vector.broadcast %cst_133 : f32 to vector<4x32xf32>
    %558 = arith.addf %557, %556 : vector<4x32xf32>
    %559 = arith.divf %557, %558 : vector<4x32xf32>
    %560 = arith.mulf %551, %528 : vector<4x32xf32>
    %561 = arith.mulf %545, %553 : vector<4x32xf32>
    %562 = arith.addf %560, %561 : vector<4x32xf32>
    %563 = math.tanh %562 : vector<4x32xf32>
    %564 = arith.mulf %559, %563 : vector<4x32xf32>
    %c0_134 = arith.constant 0 : index
    %c0_135 = arith.constant 0 : index
    %565 = vector.load %arg5[%c0_134, %c0_135] : memref<32x128xf32, #tpu.memory_space<vmem>>, vector<32x128xf32>
    %cst_136 = arith.constant dense<0.000000e+00> : vector<4x128xf32>
    %566 = tpu.matmul %531, %565, %cst_136 {dimension_numbers = #tpu.dot_dimension_numbers<[1], [0], [0], [1], [0, 0, 1, 1], [], []>} : vector<4x32xf32>, vector<32x128xf32>, vector<4x128xf32> -> vector<4x128xf32>
    %567 = arith.addf %536, %566 : vector<4x128xf32>
    %568 = vector.extract_strided_slice %567 {offsets = [0, 0], sizes = [4, 32], strides = [1, 1]} : vector<4x128xf32> to vector<4x32xf32>
    %569 = arith.negf %568 : vector<4x32xf32>
    %570 = math.exp %569 : vector<4x32xf32>
    %cst_137 = arith.constant 1.000000e+00 : f32
    %571 = vector.broadcast %cst_137 : f32 to vector<4x32xf32>
    %572 = arith.addf %571, %570 : vector<4x32xf32>
    %573 = arith.divf %571, %572 : vector<4x32xf32>
    %574 = vector.extract_strided_slice %567 {offsets = [0, 32], sizes = [4, 32], strides = [1, 1]} : vector<4x128xf32> to vector<4x32xf32>
    %575 = arith.negf %574 : vector<4x32xf32>
    %576 = math.exp %575 : vector<4x32xf32>
    %cst_138 = arith.constant 1.000000e+00 : f32
    %577 = vector.broadcast %cst_138 : f32 to vector<4x32xf32>
    %578 = arith.addf %577, %576 : vector<4x32xf32>
    %579 = arith.divf %577, %578 : vector<4x32xf32>
    %580 = vector.extract_strided_slice %567 {offsets = [0, 64], sizes = [4, 32], strides = [1, 1]} : vector<4x128xf32> to vector<4x32xf32>
    %581 = math.tanh %580 : vector<4x32xf32>
    %582 = vector.extract_strided_slice %567 {offsets = [0, 96], sizes = [4, 32], strides = [1, 1]} : vector<4x128xf32> to vector<4x32xf32>
    %583 = arith.negf %582 : vector<4x32xf32>
    %584 = math.exp %583 : vector<4x32xf32>
    %cst_139 = arith.constant 1.000000e+00 : f32
    %585 = vector.broadcast %cst_139 : f32 to vector<4x32xf32>
    %586 = arith.addf %585, %584 : vector<4x32xf32>
    %587 = arith.divf %585, %586 : vector<4x32xf32>
    %588 = arith.mulf %579, %534 : vector<4x32xf32>
    %589 = arith.mulf %573, %581 : vector<4x32xf32>
    %590 = arith.addf %588, %589 : vector<4x32xf32>
    %591 = math.tanh %590 : vector<4x32xf32>
    %592 = arith.mulf %587, %591 : vector<4x32xf32>
    %c7_i32_140 = arith.constant 7 : i32
    %593 = vector.broadcast %c7_i32_140 : i32 to vector<4x1xi32>
    %594 = arith.cmpi sgt, %8, %593 : vector<4x1xi32>
    %c0_i32_141 = arith.constant 0 : i32
    %595 = vector.broadcast %c0_i32_141 : i32 to vector<4x1xi32>
    %596 = arith.cmpi sgt, %8, %595 : vector<4x1xi32>
    %597 = vector.shape_cast %594 : vector<4x1xi1> to vector<4x1xi1>
    %598 = vector.broadcast %597 : vector<4x1xi1> to vector<4x32xi1>
    %599 = arith.select %598, %564, %525 : vector<4x32xi1>, vector<4x32xf32>
    %600 = vector.shape_cast %596 : vector<4x1xi1> to vector<4x1xi1>
    %601 = vector.broadcast %600 : vector<4x1xi1> to vector<4x32xi1>
    %602 = arith.select %601, %592, %531 : vector<4x32xi1>, vector<4x32xf32>
    %603 = arith.truncf %599 : vector<4x32xf32> to vector<4x32xbf16>
    %c0_142 = arith.constant 0 : index
    %c0_143 = arith.constant 0 : index
    %604 = vector.load %arg6[%c0_142, %c0_143] : memref<32x256xbf16, #tpu.memory_space<vmem>>, vector<32x256xbf16>
    %cst_144 = arith.constant dense<0.000000e+00> : vector<4x256xf32>
    %605 = tpu.matmul %603, %604, %cst_144 {dimension_numbers = #tpu.dot_dimension_numbers<[1], [0], [0], [1], [0, 0, 1, 1], [], []>} : vector<4x32xbf16>, vector<32x256xbf16>, vector<4x256xf32> -> vector<4x256xf32>
    %606 = arith.truncf %602 : vector<4x32xf32> to vector<4x32xbf16>
    %c0_145 = arith.constant 0 : index
    %c0_146 = arith.constant 0 : index
    %607 = vector.load %arg7[%c0_145, %c0_146] : memref<32x256xbf16, #tpu.memory_space<vmem>>, vector<32x256xbf16>
    %cst_147 = arith.constant dense<0.000000e+00> : vector<4x256xf32>
    %608 = tpu.matmul %606, %607, %cst_147 {dimension_numbers = #tpu.dot_dimension_numbers<[1], [0], [0], [1], [0, 0, 1, 1], [], []>} : vector<4x32xbf16>, vector<32x256xbf16>, vector<4x256xf32> -> vector<4x256xf32>
    %609 = arith.addf %605, %608 : vector<4x256xf32>
    %c0_148 = arith.constant 0 : index
    %c0_149 = arith.constant 0 : index
    %610 = vector.load %arg8[%c0_148, %c0_149] : memref<1x256xf32, #tpu.memory_space<vmem>>, vector<1x256xf32>
    %611 = vector.broadcast %610 : vector<1x256xf32> to vector<4x256xf32>
    %612 = arith.addf %609, %611 : vector<4x256xf32>
    %cst_150 = arith.constant 0.000000e+00 : f32
    %613 = vector.broadcast %cst_150 : f32 to vector<4x256xf32>
    %614 = arith.maximumf %612, %613 : vector<4x256xf32>
    %c0_i32_151 = arith.constant 0 : i32
    %615 = tpu.memref_slice %arg25[%c0_i32_151] : memref<4x!tpu.dma_semaphore, #tpu.memory_space<semaphore_mem>> -> memref<1x!tpu.dma_semaphore, #tpu.memory_space<semaphore_mem>>
    %616 = tpu.memref_squeeze %615 : memref<1x!tpu.dma_semaphore, #tpu.memory_space<semaphore_mem>> -> memref<!tpu.dma_semaphore, #tpu.memory_space<semaphore_mem>>
    tpu.wait_dma2 semaphore(%616 : memref<!tpu.dma_semaphore, #tpu.memory_space<semaphore_mem>>) src(%arg9 : memref<256x1024xbf16, #tpu.memory_space<any>>) dst(%arg20 : memref<256x1024xbf16, #tpu.memory_space<vmem>>)
    %617 = arith.truncf %614 : vector<4x256xf32> to vector<4x256xbf16>
    %c0_152 = arith.constant 0 : index
    %c0_153 = arith.constant 0 : index
    %618 = vector.load %arg20[%c0_152, %c0_153] : memref<256x1024xbf16, #tpu.memory_space<vmem>>, vector<256x1024xbf16>
    %cst_154 = arith.constant dense<0.000000e+00> : vector<4x1024xf32>
    %619 = tpu.matmul %617, %618, %cst_154 {dimension_numbers = #tpu.dot_dimension_numbers<[1], [0], [0], [1], [0, 0, 1, 1], [], []>} : vector<4x256xbf16>, vector<256x1024xbf16>, vector<4x1024xf32> -> vector<4x1024xf32>
    %c0_155 = arith.constant 0 : index
    %c0_156 = arith.constant 0 : index
    %620 = vector.load %arg10[%c0_155, %c0_156] : memref<1x1024xf32, #tpu.memory_space<vmem>>, vector<1x1024xf32>
    %621 = vector.broadcast %620 : vector<1x1024xf32> to vector<4x1024xf32>
    %622 = arith.addf %619, %621 : vector<4x1024xf32>
    %cst_157 = arith.constant 0.000000e+00 : f32
    %623 = vector.broadcast %cst_157 : f32 to vector<4x1024xf32>
    %624 = arith.maximumf %622, %623 : vector<4x1024xf32>
    %c1_i32_158 = arith.constant 1 : i32
    %625 = tpu.memref_slice %arg25[%c1_i32_158] : memref<4x!tpu.dma_semaphore, #tpu.memory_space<semaphore_mem>> -> memref<1x!tpu.dma_semaphore, #tpu.memory_space<semaphore_mem>>
    %626 = tpu.memref_squeeze %625 : memref<1x!tpu.dma_semaphore, #tpu.memory_space<semaphore_mem>> -> memref<!tpu.dma_semaphore, #tpu.memory_space<semaphore_mem>>
    tpu.wait_dma2 semaphore(%626 : memref<!tpu.dma_semaphore, #tpu.memory_space<semaphore_mem>>) src(%arg11 : memref<1024x512xbf16, #tpu.memory_space<any>>) dst(%arg21 : memref<1024x512xbf16, #tpu.memory_space<vmem>>)
    %627 = arith.truncf %624 : vector<4x1024xf32> to vector<4x1024xbf16>
    %c0_159 = arith.constant 0 : index
    %c0_160 = arith.constant 0 : index
    %628 = vector.load %arg21[%c0_159, %c0_160] : memref<1024x512xbf16, #tpu.memory_space<vmem>>, vector<1024x512xbf16>
    %cst_161 = arith.constant dense<0.000000e+00> : vector<4x512xf32>
    %629 = tpu.matmul %627, %628, %cst_161 {dimension_numbers = #tpu.dot_dimension_numbers<[1], [0], [0], [1], [0, 0, 1, 1], [], []>} : vector<4x1024xbf16>, vector<1024x512xbf16>, vector<4x512xf32> -> vector<4x512xf32>
    %c0_162 = arith.constant 0 : index
    %c0_163 = arith.constant 0 : index
    %630 = vector.load %arg12[%c0_162, %c0_163] : memref<1x512xf32, #tpu.memory_space<vmem>>, vector<1x512xf32>
    %631 = vector.broadcast %630 : vector<1x512xf32> to vector<4x512xf32>
    %632 = arith.addf %629, %631 : vector<4x512xf32>
    %cst_164 = arith.constant 0.000000e+00 : f32
    %633 = vector.broadcast %cst_164 : f32 to vector<4x512xf32>
    %634 = arith.maximumf %632, %633 : vector<4x512xf32>
    %635 = arith.truncf %634 : vector<4x512xf32> to vector<4x512xbf16>
    %c2_i32_165 = arith.constant 2 : i32
    %636 = tpu.memref_slice %arg25[%c2_i32_165] : memref<4x!tpu.dma_semaphore, #tpu.memory_space<semaphore_mem>> -> memref<1x!tpu.dma_semaphore, #tpu.memory_space<semaphore_mem>>
    %637 = tpu.memref_squeeze %636 : memref<1x!tpu.dma_semaphore, #tpu.memory_space<semaphore_mem>> -> memref<!tpu.dma_semaphore, #tpu.memory_space<semaphore_mem>>
    tpu.wait_dma2 semaphore(%637 : memref<!tpu.dma_semaphore, #tpu.memory_space<semaphore_mem>>) src(%arg13 : memref<512x640xbf16, #tpu.memory_space<any>>) dst(%arg22 : memref<512x640xbf16, #tpu.memory_space<vmem>>)
    %c0_166 = arith.constant 0 : index
    %c0_167 = arith.constant 0 : index
    %638 = vector.load %arg22[%c0_166, %c0_167] : memref<512x640xbf16, #tpu.memory_space<vmem>>, vector<512x640xbf16>
    %cst_168 = arith.constant dense<0.000000e+00> : vector<4x640xf32>
    %639 = tpu.matmul %635, %638, %cst_168 {dimension_numbers = #tpu.dot_dimension_numbers<[1], [0], [0], [1], [0, 0, 1, 1], [], []>} : vector<4x512xbf16>, vector<512x640xbf16>, vector<4x640xf32> -> vector<4x640xf32>
    %c0_169 = arith.constant 0 : index
    %c0_170 = arith.constant 0 : index
    %640 = vector.load %arg14[%c0_169, %c0_170] : memref<1x640xf32, #tpu.memory_space<vmem>>, vector<1x640xf32>
    %641 = vector.broadcast %640 : vector<1x640xf32> to vector<4x640xf32>
    %642 = arith.addf %639, %641 : vector<4x640xf32>
    %643 = vector.extract_strided_slice %642 {offsets = [0, 512], sizes = [4, 1], strides = [1, 1]} : vector<4x640xf32> to vector<4x1xf32>
    %644 = vector.extract_strided_slice %642 {offsets = [0, 0], sizes = [4, 512], strides = [1, 1]} : vector<4x640xf32> to vector<4x512xf32>
    %cst_171 = arith.constant 0.000000e+00 : f32
    %645 = vector.broadcast %cst_171 : f32 to vector<4x512xf32>
    %646 = arith.maximumf %644, %645 : vector<4x512xf32>
    %c3_i32_172 = arith.constant 3 : i32
    %647 = tpu.memref_slice %arg25[%c3_i32_172] : memref<4x!tpu.dma_semaphore, #tpu.memory_space<semaphore_mem>> -> memref<1x!tpu.dma_semaphore, #tpu.memory_space<semaphore_mem>>
    %648 = tpu.memref_squeeze %647 : memref<1x!tpu.dma_semaphore, #tpu.memory_space<semaphore_mem>> -> memref<!tpu.dma_semaphore, #tpu.memory_space<semaphore_mem>>
    tpu.wait_dma2 semaphore(%648 : memref<!tpu.dma_semaphore, #tpu.memory_space<semaphore_mem>>) src(%arg15 : memref<512x256xbf16, #tpu.memory_space<any>>) dst(%arg23 : memref<512x256xbf16, #tpu.memory_space<vmem>>)
    %649 = arith.truncf %646 : vector<4x512xf32> to vector<4x512xbf16>
    %c0_173 = arith.constant 0 : index
    %c0_174 = arith.constant 0 : index
    %650 = vector.load %arg23[%c0_173, %c0_174] : memref<512x256xbf16, #tpu.memory_space<vmem>>, vector<512x256xbf16>
    %cst_175 = arith.constant dense<0.000000e+00> : vector<4x256xf32>
    %651 = tpu.matmul %649, %650, %cst_175 {dimension_numbers = #tpu.dot_dimension_numbers<[1], [0], [0], [1], [0, 0, 1, 1], [], []>} : vector<4x512xbf16>, vector<512x256xbf16>, vector<4x256xf32> -> vector<4x256xf32>
    %c0_176 = arith.constant 0 : index
    %c0_177 = arith.constant 0 : index
    %652 = vector.load %arg16[%c0_176, %c0_177] : memref<1x256xf32, #tpu.memory_space<vmem>>, vector<1x256xf32>
    %653 = vector.broadcast %652 : vector<1x256xf32> to vector<4x256xf32>
    %654 = arith.addf %651, %653 : vector<4x256xf32>
    %cst_178 = arith.constant 0.000000e+00 : f32
    %655 = vector.broadcast %cst_178 : f32 to vector<4x256xf32>
    %656 = arith.maximumf %654, %655 : vector<4x256xf32>
    %657 = arith.truncf %656 : vector<4x256xf32> to vector<4x256xbf16>
    %c0_179 = arith.constant 0 : index
    %c0_180 = arith.constant 0 : index
    %658 = vector.load %arg17[%c0_179, %c0_180] : memref<256x8xbf16, #tpu.memory_space<vmem>>, vector<256x8xbf16>
    %cst_181 = arith.constant dense<0.000000e+00> : vector<4x8xf32>
    %659 = tpu.matmul %657, %658, %cst_181 {dimension_numbers = #tpu.dot_dimension_numbers<[1], [0], [0], [1], [0, 0, 1, 1], [], []>} : vector<4x256xbf16>, vector<256x8xbf16>, vector<4x8xf32> -> vector<4x8xf32>
    %c0_182 = arith.constant 0 : index
    %c0_183 = arith.constant 0 : index
    %660 = vector.load %arg18[%c0_182, %c0_183] : memref<1x8xf32, #tpu.memory_space<vmem>>, vector<1x8xf32>
    %661 = vector.broadcast %660 : vector<1x8xf32> to vector<4x8xf32>
    %662 = arith.addf %659, %661 : vector<4x8xf32>
    %663 = tpu.iota {dimensions = array<i32: 1>} : vector<1x8xi32>
    %c1_i32_184 = arith.constant 1 : i32
    %664 = vector.broadcast %c1_i32_184 : i32 to vector<1x8xi32>
    %665 = arith.cmpi sge, %663, %664 : vector<1x8xi32>
    %c4_i32_185 = arith.constant 4 : i32
    %666 = vector.broadcast %c4_i32_185 : i32 to vector<1x8xi32>
    %667 = arith.cmpi sle, %663, %666 : vector<1x8xi32>
    %668 = arith.andi %665, %667 : vector<1x8xi1>
    %669 = arith.mulf %662, %662 : vector<4x8xf32>
    %cst_186 = arith.constant 0.000000e+00 : f32
    %670 = vector.shape_cast %668 : vector<1x8xi1> to vector<1x8xi1>
    %671 = vector.broadcast %670 : vector<1x8xi1> to vector<4x8xi1>
    %672 = vector.broadcast %cst_186 : f32 to vector<4x8xf32>
    %673 = arith.select %671, %669, %672 : vector<4x8xi1>, vector<4x8xf32>
    %cst_187 = arith.constant dense<0.000000e+00> : vector<4xf32>
    %674 = vector.multi_reduction <add>, %673, %cst_187 [1] : vector<4x8xf32> to vector<4xf32>
    %675 = vector.shape_cast %674 : vector<4xf32> to vector<4x1xf32>
    %676 = math.sqrt %675 : vector<4x1xf32>
    %cst_188 = arith.constant 9.99999996E-13 : f32
    %677 = vector.broadcast %cst_188 : f32 to vector<4x1xf32>
    %678 = arith.maximumf %676, %677 : vector<4x1xf32>
    %cst_189 = arith.constant 1.000000e+00 : f32
    %679 = vector.broadcast %cst_189 : f32 to vector<4x1xf32>
    %680 = arith.divf %679, %678 : vector<4x1xf32>
    %cst_190 = arith.constant 1.000000e+00 : f32
    %681 = vector.shape_cast %668 : vector<1x8xi1> to vector<1x8xi1>
    %682 = vector.broadcast %681 : vector<1x8xi1> to vector<4x8xi1>
    %683 = vector.shape_cast %680 : vector<4x1xf32> to vector<4x1xf32>
    %684 = vector.broadcast %683 : vector<4x1xf32> to vector<4x8xf32>
    %685 = vector.broadcast %cst_190 : f32 to vector<4x8xf32>
    %686 = arith.select %682, %684, %685 : vector<4x8xi1>, vector<4x8xf32>
    %687 = arith.mulf %662, %686 : vector<4x8xf32>
    %c5_i32_191 = arith.constant 5 : i32
    %688 = vector.broadcast %c5_i32_191 : i32 to vector<1x8xi32>
    %689 = arith.cmpi eq, %663, %688 : vector<1x8xi32>
    %690 = vector.shape_cast %689 : vector<1x8xi1> to vector<1x8xi1>
    %691 = vector.broadcast %690 : vector<1x8xi1> to vector<4x8xi1>
    %692 = vector.shape_cast %643 : vector<4x1xf32> to vector<4x1xf32>
    %693 = vector.broadcast %692 : vector<4x1xf32> to vector<4x8xf32>
    %694 = arith.select %691, %693, %687 : vector<4x8xi1>, vector<4x8xf32>
    %c0_192 = arith.constant 0 : index
    %c0_193 = arith.constant 0 : index
    %695 = vector.load %arg19[%c0_192, %c0_193] : memref<4x8xf32, #tpu.memory_space<vmem>>, vector<4x8xf32>
    tpu.vector_store %arg19[%c0_192, %c0_193], %694 {strides = array<i32>} : memref<4x8xf32, #tpu.memory_space<vmem>>, vector<4x8xf32>,
    return
  }
}

</mosaic_0001>

<llo_original>
// kernel: traj_forward.1
$region0: #{traj_forward.1}
  #allocation0 [shape = 'u32[]', space=smem, size = 0x4, offset = 0x4, fixed_abs, tag = 'smem constant byte address 0x4 - core index']
  #allocation1 [shape = 'u32[144,128]{1,0:T(1,128)}', space=vmem, size = 0x12000, scoped, tag = 'internal scratch']
  #allocation2 [shape = 'bf16[256,1024]{1,0:T(16,128)(2,1)}', space=vmem, size = 0x80000, scoped, tag = 'scratch operand']
  #allocation3 [shape = 'bf16[1024,512]{1,0:T(16,128)(2,1)}', space=vmem, size = 0x100000, scoped, tag = 'scratch operand']
  #allocation4 [shape = 'bf16[512,640]{1,0:T(16,128)(2,1)}', space=vmem, size = 0xa0000, scoped, tag = 'scratch operand']
  #allocation5 [shape = 'bf16[512,256]{1,0:T(16,128)(2,1)}', space=vmem, size = 0x40000, scoped, tag = 'scratch operand']
  #allocation6 [shape = 'f32[32,256]{1,0:T(8,128)}', space=vmem, size = 0x8000, scoped, tag = 'scratch operand']
  #allocation7 [shape = 's32[4]{0}', space=sflag, size = 0x10, scoped, tag = 'scratch operand']
  #allocation8 [shape = 's32[]', space=sflag, size = 0x4, offset = 0, fixed_abs, tag = 'sflag constant byte address 0x0 - dummy sync flag']
  #allocation10 [shape = 's32[]', space=sflag, size = 0x4, offset = 0, fixed_abs, tag = 'sflag constant byte address 0x0 - dummy sync flag']
  #allocation12 [shape = 's32[]', space=sflag, size = 0x4, offset = 0, fixed_abs, tag = 'sflag constant byte address 0x0 - dummy sync flag']
  #allocation14 [shape = 's32[]', space=sflag, size = 0x4, offset = 0, fixed_abs, tag = 'sflag constant byte address 0x0 - dummy sync flag']
  %s0 = inlined_call_operand.vmem [shape: f32[32,4], index: 0, kind: input, shape index: {}]
  %s1 = inlined_call_operand.vmem [shape: s32[4,1], index: 1, kind: input, shape index: {}]
  %s2 = inlined_call_operand.vmem [shape: f32[4,256], index: 2, kind: input, shape index: {}]
  %s3 = inlined_call_operand.vmem [shape: f32[1,256], index: 3, kind: input, shape index: {}]
  %s4 = inlined_call_operand.vmem [shape: f32[32,128], index: 4, kind: input, shape index: {}]
  %s5 = inlined_call_operand.vmem [shape: f32[32,128], index: 5, kind: input, shape index: {}]
  %s6 = inlined_call_operand.vmem [shape: bf16[32,256], index: 6, kind: input, shape index: {}]
  %s7 = inlined_call_operand.vmem [shape: bf16[32,256], index: 7, kind: input, shape index: {}]
  %s8 = inlined_call_operand.vmem [shape: f32[1,256], index: 8, kind: input, shape index: {}]
  %s9 = inlined_call_operand.hbm [shape: bf16[256,1024], index: 9, kind: input, shape index: {}]
  %s10 = inlined_call_operand.vmem [shape: f32[1,1024], index: 10, kind: input, shape index: {}]
  %s11 = inlined_call_operand.hbm [shape: bf16[1024,512], index: 11, kind: input, shape index: {}]
  %s12 = inlined_call_operand.vmem [shape: f32[1,512], index: 12, kind: input, shape index: {}]
  %s13 = inlined_call_operand.hbm [shape: bf16[512,640], index: 13, kind: input, shape index: {}]
  %s14 = inlined_call_operand.vmem [shape: f32[1,640], index: 14, kind: input, shape index: {}]
  %s15 = inlined_call_operand.hbm [shape: bf16[512,256], index: 15, kind: input, shape index: {}]
  %s16 = inlined_call_operand.vmem [shape: f32[1,256], index: 16, kind: input, shape index: {}]
  %s17 = inlined_call_operand.vmem [shape: bf16[256,8], index: 17, kind: input, shape index: {}]
  %s18 = inlined_call_operand.vmem [shape: f32[1,8], index: 18, kind: input, shape index: {}]
  %s19 = inlined_call_operand.vmem [shape: f32[4,8], index: 19, kind: output, shape index: {}]
  %s20 = sld [smem:[#allocation0]]
  $region70: #{traj_forward.1} parent=0
    _
  %s22 = ssub.s32 1, %s20
  %s23 = scalar_select 0, %s22, %s20
  $region1: #{traj_forward.1} parent=0
    #allocation9 [shape = 'u32[9]{0}', space=smem, size = 0x24, scoped, tag = 'DMA stride descriptor']
    #allocation11 [shape = 'u32[9]{0}', space=smem, size = 0x24, scoped, tag = 'DMA stride descriptor']
    #allocation13 [shape = 'u32[9]{0}', space=smem, size = 0x24, scoped, tag = 'DMA stride descriptor']
    #allocation15 [shape = 'u32[9]{0}', space=smem, size = 0x24, scoped, tag = 'DMA stride descriptor']
    // Predicated region
    $region2: #{traj_forward.1} parent=1 // pred_check
      _
    $region3: #{traj_forward.1} parent=1 // pred_check_branch
      %25 = sbr.rel (0) target = $region5
    $region4: #{traj_forward.1} parent=1 // pred_region
      _
    $region5: #{traj_forward.1} parent=1 // pred_fallthru
      _
    // Predicated region
    $region6: #{traj_forward.1} parent=1 // pred_check
      _
    $region7: #{traj_forward.1} parent=1 // pred_check_branch
      %27 = sbr.rel (0) target = $region9
    $region8: #{traj_forward.1} parent=1 // pred_region
      _
    $region9: #{traj_forward.1} parent=1 // pred_fallthru
      _
    // Predicated region
    $region10: #{traj_forward.1} parent=1 // pred_check
      _
    $region11: #{traj_forward.1} parent=1 // pred_check_branch
      %29 = sbr.rel (0) target = $region13
    $region12: #{traj_forward.1} parent=1 // pred_region
      _
    $region13: #{traj_forward.1} parent=1 // pred_fallthru
      _
    // Predicated region
    $region14: #{traj_forward.1} parent=1 // pred_check
      _
    $region15: #{traj_forward.1} parent=1 // pred_check_branch
      %31 = sbr.rel (0) target = $region17
    $region16: #{traj_forward.1} parent=1 // pred_region
      _
    $region17: #{traj_forward.1} parent=1 // pred_fallthru
      _
    // Predicated region
    $region18: #{traj_forward.1} parent=1 // pred_check
      _
    $region19: #{traj_forward.1} parent=1 // pred_check_branch
      %33 = sbr.rel (0) target = $region21
    $region20: #{traj_forward.1} parent=1 // pred_region
      _
    $region21: #{traj_forward.1} parent=1 // pred_fallthru
      _
    // Predicated region
    $region22: #{traj_forward.1} parent=1 // pred_check
      _
    $region23: #{traj_forward.1} parent=1 // pred_check_branch
      %35 = sbr.rel (0) target = $region25
    $region24: #{traj_forward.1} parent=1 // pred_region
      _
    $region25: #{traj_forward.1} parent=1 // pred_fallthru
      _
    // Predicated region
    $region26: #{traj_forward.1} parent=1 // pred_check
      _
    $region27: #{traj_forward.1} parent=1 // pred_check_branch
      %37 = sbr.rel (0) target = $region29
    $region28: #{traj_forward.1} parent=1 // pred_region
      _
    $region29: #{traj_forward.1} parent=1 // pred_fallthru
      _
    // Predicated region
    $region30: #{traj_forward.1} parent=1 // pred_check
      _
    $region31: #{traj_forward.1} parent=1 // pred_check_branch
      %39 = sbr.rel (0) target = $region33
    $region32: #{traj_forward.1} parent=1 // pred_region
      _
    $region33: #{traj_forward.1} parent=1 // pred_fallthru
      _
    // Predicated region
    $region34: #{traj_forward.1} parent=1 // pred_check
      _
    $region35: #{traj_forward.1} parent=1 // pred_check_branch
      %41 = sbr.rel (0) target = $region37
    $region36: #{traj_forward.1} parent=1 // pred_region
      _
    $region37: #{traj_forward.1} parent=1 // pred_fallthru
      _
    // Predicated region
    $region38: #{traj_forward.1} parent=1 // pred_check
      _
    $region39: #{traj_forward.1} parent=1 // pred_check_branch
      %43 = sbr.rel (0) target = $region41
    $region40: #{traj_forward.1} parent=1 // pred_region
      _
    $region41: #{traj_forward.1} parent=1 // pred_fallthru
      _
    // Predicated region
    $region42: #{traj_forward.1} parent=1 // pred_check
      _
    $region43: #{traj_forward.1} parent=1 // pred_check_branch
      %45 = sbr.rel (0) target = $region45
    $region44: #{traj_forward.1} parent=1 // pred_region
      _
    $region45: #{traj_forward.1} parent=1 // pred_fallthru
      _
    // Predicated region
    $region46: #{traj_forward.1} parent=1 // pred_check
      _
    $region47: #{traj_forward.1} parent=1 // pred_check_branch
      %47 = sbr.rel (0) target = $region49
    $region48: #{traj_forward.1} parent=1 // pred_region
      _
    $region49: #{traj_forward.1} parent=1 // pred_fallthru
      _
    // Predicated region
    $region50: #{traj_forward.1} parent=1 // pred_check
      _
    $region51: #{traj_forward.1} parent=1 // pred_check_branch
      %49 = sbr.rel (0) target = $region53
    $region52: #{traj_forward.1} parent=1 // pred_region
      _
    $region53: #{traj_forward.1} parent=1 // pred_fallthru
      _
    // Predicated region
    $region54: #{traj_forward.1} parent=1 // pred_check
      _
    $region55: #{traj_forward.1} parent=1 // pred_check_branch
      %51 = sbr.rel (0) target = $region57
    $region56: #{traj_forward.1} parent=1 // pred_region
      _
    $region57: #{traj_forward.1} parent=1 // pred_fallthru
      _
    // Predicated region
    $region58: #{traj_forward.1} parent=1 // pred_check
      _
    $region59: #{traj_forward.1} parent=1 // pred_check_branch
      %53 = sbr.rel (0) target = $region61
    $region60: #{traj_forward.1} parent=1 // pred_region
      _
    $region61: #{traj_forward.1} parent=1 // pred_fallthru
      _
    %s56 = sshll.u32 1, 14
    %s57 = sxor.u32 4294967295, %s56
    %s59 = sld [smem:[#allocation0]]
    %s60 = sadd.s32 2, %s59
    %s62 = sshll.u32 7, 26
    %s63 = sxor.u32 4294967295, %s62
    %s64 = sand.u32 0, %s63
    %s65 = sshll.u32 %s60, 26
    %s66 = sor.u32 %s64, %s65
    %s67 = sshll.u32 [#allocation2], 4
    %s68 = int_to_ptr.vmem [resolvable:$true] %s67
    %71 = sst [smem:[#allocation9]] 1024
    %s72 = scalar_lea.smem [#allocation9], 1
    %73 = sst [smem:[%s72]] 1024
    %s74 = scalar_lea.smem [#allocation9], 2
    %75 = sst [smem:[%s74]] 8
    %s76 = scalar_lea.smem [#allocation9], 3
    %77 = sst [smem:[%s76]] 64
    %s78 = scalar_lea.smem [#allocation9], 4
    %79 = sst [smem:[%s78]] 128
    %s80 = scalar_lea.smem [#allocation9], 5
    %81 = sst [smem:[%s80]] 2
    %s82 = scalar_lea.smem [#allocation9], 6
    %83 = sst [smem:[%s82]] 512
    %s84 = scalar_lea.smem [#allocation9], 7
    %85 = sst [smem:[%s84]] 64
    %s86 = scalar_lea.smem [#allocation9], 8
    %87 = sst [smem:[%s86]] 4
    %89 = dma.general %s9, 16384, %s68, [#allocation7], [#allocation8], [#allocation9], %s66, 0
    %s90 = scalar_lea.sflag [#allocation7], 1
    %s92 = sshll.u32 1, 14
    %s93 = sxor.u32 4294967295, %s92
    %s95 = sadd.s32 2, %s59
    %s97 = sshll.u32 7, 26
    %s98 = sxor.u32 4294967295, %s97
    %s99 = sand.u32 0, %s98
    %s100 = sshll.u32 %s95, 26
    %s101 = sor.u32 %s99, %s100
    %s102 = sshll.u32 [#allocation3], 4
    %s103 = int_to_ptr.vmem [resolvable:$true] %s102
    %106 = sst [smem:[#allocation11]] 512
    %s107 = scalar_lea.smem [#allocation11], 1
    %108 = sst [smem:[%s107]] 512
    %s109 = scalar_lea.smem [#allocation11], 2
    %110 = sst [smem:[%s109]] 4
    %s111 = scalar_lea.smem [#allocation11], 3
    %112 = sst [smem:[%s111]] 64
    %s113 = scalar_lea.smem [#allocation11], 4
    %114 = sst [smem:[%s113]] 128
    %s115 = scalar_lea.smem [#allocation11], 5
    %116 = sst [smem:[%s115]] 2
    %s117 = scalar_lea.smem [#allocation11], 6
    %118 = sst [smem:[%s117]] 256
    %s119 = scalar_lea.smem [#allocation11], 7
    %120 = sst [smem:[%s119]] 64
    %s121 = scalar_lea.smem [#allocation11], 8
    %122 = sst [smem:[%s121]] 4
    %124 = dma.general %s11, 32768, %s103, %s90, [#allocation10], [#allocation11], %s101, 0
    %s125 = scalar_lea.sflag [#allocation7], 2
    %s127 = sshll.u32 1, 14
    %s128 = sxor.u32 4294967295, %s127
    %s130 = sadd.s32 2, %s59
    %s132 = sshll.u32 7, 26
    %s133 = sxor.u32 4294967295, %s132
    %s134 = sand.u32 0, %s133
    %s135 = sshll.u32 %s130, 26
    %s136 = sor.u32 %s134, %s135
    %s137 = sshll.u32 [#allocation4], 4
    %s138 = int_to_ptr.vmem [resolvable:$true] %s137
    %141 = sst [smem:[#allocation13]] 640
    %s142 = scalar_lea.smem [#allocation13], 1
    %143 = sst [smem:[%s142]] 640
    %s144 = scalar_lea.smem [#allocation13], 2
    %145 = sst [smem:[%s144]] 5
    %s146 = scalar_lea.smem [#allocation13], 3
    %147 = sst [smem:[%s146]] 64
    %s148 = scalar_lea.smem [#allocation13], 4
    %149 = sst [smem:[%s148]] 128
    %s150 = scalar_lea.smem [#allocation13], 5
    %151 = sst [smem:[%s150]] 2
    %s152 = scalar_lea.smem [#allocation13], 6
    %153 = sst [smem:[%s152]] 320
    %s154 = scalar_lea.smem [#allocation13], 7
    %155 = sst [smem:[%s154]] 64
    %s156 = scalar_lea.smem [#allocation13], 8
    %157 = sst [smem:[%s156]] 4
    %159 = dma.general %s13, 20480, %s138, %s125, [#allocation12], [#allocation13], %s136, 0
    %s160 = scalar_lea.sflag [#allocation7], 3
    %s162 = sshll.u32 1, 14
    %s163 = sxor.u32 4294967295, %s162
    %s165 = sadd.s32 2, %s59
    %s167 = sshll.u32 7, 26
    %s168 = sxor.u32 4294967295, %s167
    %s169 = sand.u32 0, %s168
    %s170 = sshll.u32 %s165, 26
    %s171 = sor.u32 %s169, %s170
    %s172 = sshll.u32 [#allocation5], 4
    %s173 = int_to_ptr.vmem [resolvable:$true] %s172
    %176 = sst [smem:[#allocation15]] 256
    %s177 = scalar_lea.smem [#allocation15], 1
    %178 = sst [smem:[%s177]] 256
    %s179 = scalar_lea.smem [#allocation15], 2
    %180 = sst [smem:[%s179]] 2
    %s181 = scalar_lea.smem [#allocation15], 3
    %182 = sst [smem:[%s181]] 64
    %s183 = scalar_lea.smem [#allocation15], 4
    %184 = sst [smem:[%s183]] 128
    %s185 = scalar_lea.smem [#allocation15], 5
    %186 = sst [smem:[%s185]] 2
    %s187 = scalar_lea.smem [#allocation15], 6
    %188 = sst [smem:[%s187]] 128
    %s189 = scalar_lea.smem [#allocation15], 7
    %190 = sst [smem:[%s189]] 64
    %s191 = scalar_lea.smem [#allocation15], 8
    %192 = sst [smem:[%s191]] 4
    %194 = dma.general %s15, 8192, %s173, %s160, [#allocation14], [#allocation15], %s171, 0
    %v195 = vld [vmem:[%s1] sm:$0xf]
    %v196 = vld [vmem:[%s0] sm:$0xff]
    %v197 = vld [vmem:[%s0 + $0x8] sm:$0xff]
    %v198 = vld [vmem:[%s0 + $0x10] sm:$0xff]
    %v199 = vld [vmem:[%s0 + $0x18] sm:$0xff]
    %v200 = vld [vmem:[%s2] sm:$0xff]
    %v201 = vld [vmem:[%s3] sm:$0x3]
    %v203 = vlaneseq
    %v204 = vshrl.u32 %v203, 7
    %v205 = vsub.s32 0, %v204
    %v206 = vrot.slane %v201, %v205
    %v207 = vlaneseq
    %v208 = vshrl.u32 %v207, 7
    %v209 = vsub.s32 1, %v208
    %v210 = vrot.slane %v201, %v209
    %v214 = vcombine.high %v200, %v200
    %vm215 = vcmask 31744
    %v217 = vsel %vm215, %v196, 0
    %v220 = vsel %vm215, %v197, 0
    %v223 = vsel %vm215, %v198, 0
    %v226 = vsel %vm215, %v199, 0
    %vm228 = vcmask 1043456
    %v229 = vsel %vm228, %v200, 0
    %v231 = vsel %vm228, %v214, 0
    %233 = vmatprep.subr.mxu0 %v231
    %234 = vmatpush1.msra.mxu0 %v229
    %235 = vmatprep.subr.mxu0 0.0
    %236 = vmatpush1.msra.mxu0 0.0
    %237 = vmatprep.subr.mxu0 0.0
    %238 = vmatpush1.msra.mxu0 0.0
    %239 = vmatprep.subr.mxu0 0.0
    %240 = vmatpush1.msra.mxu0 0.0
    %241 = vmatprep.subr.mxu0 0.0
    %242 = vmatpush1.msra.mxu0 0.0
    %243 = vmatprep.subr.mxu0 0.0
    %244 = vmatpush1.msra.mxu0 0.0
    %245 = vmatprep.subr.mxu0 0.0
    %246 = vmatpush1.msra.mxu0 0.0
    %247 = vmatprep.subr.mxu0 0.0
    %248 = vmatpush1.msra.mxu0 0.0
    %249 = vmatprep.subr.mxu0 0.0
    %250 = vmatpush1.msra.mxu0 0.0
    %251 = vmatprep.subr.mxu0 0.0
    %252 = vmatpush1.msra.mxu0 0.0
    %253 = vmatprep.subr.mxu0 0.0
    %254 = vmatpush1.msra.mxu0 0.0
    %255 = vmatprep.subr.mxu0 0.0
    %256 = vmatpush1.msra.mxu0 0.0
    %257 = vmatprep.subr.mxu0 0.0
    %258 = vmatpush1.msra.mxu0 0.0
    %259 = vmatprep.subr.mxu0 0.0
    %260 = vmatpush1.msra.mxu0 0.0
    %261 = vmatprep.subr.mxu0 0.0
    %262 = vmatpush1.msra.mxu0 0.0
    %263 = vmatprep.subr.mxu0 0.0
    %264 = vmatpush1.msra.mxu0 0.0
    %265 = vmatprep.subr.mxu0 0.0
    %266 = vmatpush1.msra.mxu0 0.0
    %267 = vmatprep.subr.mxu0 0.0
    %268 = vmatpush1.msra.mxu0 0.0
    %269 = vmatprep.subr.mxu0 0.0
    %270 = vmatpush1.msra.mxu0 0.0
    %271 = vmatprep.subr.mxu0 0.0
    %272 = vmatpush1.msra.mxu0 0.0
    %273 = vmatprep.subr.mxu0 0.0
    %274 = vmatpush1.msra.mxu0 0.0
    %275 = vmatprep.subr.mxu0 0.0
    %276 = vmatpush1.msra.mxu0 0.0
    %277 = vmatprep.subr.mxu0 0.0
    %278 = vmatpush1.msra.mxu0 0.0
    %279 = vmatprep.subr.mxu0 0.0
    %280 = vmatpush1.msra.mxu0 0.0
    %281 = vmatprep.subr.mxu0 0.0
    %282 = vmatpush1.msra.mxu0 0.0
    %283 = vmatprep.subr.mxu0 0.0
    %284 = vmatpush1.msra.mxu0 0.0
    %285 = vmatprep.subr.mxu0 0.0
    %286 = vmatpush1.msra.mxu0 0.0
    %287 = vmatprep.subr.mxu0 0.0
    %288 = vmatpush1.msra.mxu0 0.0
    %289 = vmatprep.subr.mxu0 0.0
    %290 = vmatpush1.msra.mxu0 0.0
    %291 = vmatprep.subr.mxu0 0.0
    %292 = vmatpush1.msra.mxu0 0.0
    %293 = vmatprep.subr.mxu0 0.0
    %294 = vmatpush1.msra.mxu0 0.0
    %295 = vmatprep.subr.mxu0 0.0
    %296 = vmatpush1.msra.mxu0 0.0
    %297 = vmatprep.mubr.f32.mxu0 0.0
    %298 = vmatmul.mubr.f32.gmra.mrb[0].mxu0 %v217
    %v299 = vpop.f32.mrb[0].mxu0
    %v300 = vadd.f32 %v206, %v299
    %v301 = vpop.f32.mrb[0].mxu0
    %v302 = vadd.f32 %v210, %v301
    %303 = vmatprep.mubr.f32.mxu0 0.0
    %304 = vmatmul.mubr.f32.gmra.mrb[0].mxu0 %v220
    %v305 = vpop.f32.mrb[0].mxu0
    %v306 = vadd.f32 %v206, %v305
    %v307 = vpop.f32.mrb[0].mxu0
    %v308 = vadd.f32 %v210, %v307
    %309 = vmatprep.mubr.f32.mxu0 0.0
    %310 = vmatmul.mubr.f32.gmra.mrb[0].mxu0 %v223
    %v311 = vpop.f32.mrb[0].mxu0
    %v312 = vadd.f32 %v206, %v311
    %v313 = vpop.f32.mrb[0].mxu0
    %v314 = vadd.f32 %v210, %v313
    %315 = vmatprep.mubr.f32.mxu0 0.0
    %316 = vmatmul.mubr.f32.gmra.mrb[0].mxu0 %v226
    %v317 = vpop.f32.mrb[0].mxu0
    %v318 = vadd.f32 %v206, %v317
    %v319 = vpop.f32.mrb[0].mxu0
    %v320 = vadd.f32 %v210, %v319
    %321 = vdwg.mxu0
    %322 = vst [vmem:[#allocation6] sm:$0xff] %v300
    %323 = vst [vmem:[#allocation6 + $0x8] sm:$0xff] %v302
    %324 = vst [vmem:[#allocation6 + $0x10] sm:$0xff] %v306
    %325 = vst [vmem:[#allocation6 + $0x18] sm:$0xff] %v308
    %326 = vst [vmem:[#allocation6 + $0x20] sm:$0xff] %v312
    %327 = vst [vmem:[#allocation6 + $0x28] sm:$0xff] %v314
    %328 = vst [vmem:[#allocation6 + $0x30] sm:$0xff] %v318
    %329 = vst [vmem:[#allocation6 + $0x38] sm:$0xff] %v320
    %v330 = vld [vmem:[#allocation6] sm:$0xf]
    %v331 = vld [vmem:[#allocation6 + $0x38] sm:$0xf0]
    %v332 = vld [vmem:[%s4] sm:$0xff]
    %v333 = vld [vmem:[%s4 + $0x8] sm:$0xff]
    %v334 = vld [vmem:[%s4 + $0x10] sm:$0xff]
    %v335 = vld [vmem:[%s4 + $0x18] sm:$0xff]
    %vm336 = vcmask 261120
    %v338 = vsel %vm336, 0.0, 0
    %340 = vmatprep.subr.mxu0 0.0
    %341 = vmatpush1.msra.mxu0 %v332
    %342 = vmatprep.subr.mxu0 0.0
    %343 = vmatpush1.msra.mxu0 %v333
    %344 = vmatprep.subr.mxu0 0.0
    %345 = vmatpush1.msra.mxu0 %v334
    %346 = vmatprep.subr.mxu0 0.0
    %347 = vmatpush1.msra.mxu0 %v335
    %348 = vmatprep.subr.mxu0 0.0
    %349 = vmatpush1.msra.mxu0 0.0
    %350 = vmatprep.subr.mxu0 0.0
    %351 = vmatpush1.msra.mxu0 0.0
    %352 = vmatprep.subr.mxu0 0.0
    %353 = vmatpush1.msra.mxu0 0.0
    %354 = vmatprep.subr.mxu0 0.0
    %355 = vmatpush1.msra.mxu0 0.0
    %356 = vmatprep.subr.mxu0 0.0
    %357 = vmatpush1.msra.mxu0 0.0
    %358 = vmatprep.subr.mxu0 0.0
    %359 = vmatpush1.msra.mxu0 0.0
    %360 = vmatprep.subr.mxu0 0.0
    %361 = vmatpush1.msra.mxu0 0.0
    %362 = vmatprep.subr.mxu0 0.0
    %363 = vmatpush1.msra.mxu0 0.0
    %364 = vmatprep.subr.mxu0 0.0
    %365 = vmatpush1.msra.mxu0 0.0
    %366 = vmatprep.subr.mxu0 0.0
    %367 = vmatpush1.msra.mxu0 0.0
    %368 = vmatprep.subr.mxu0 0.0
    %369 = vmatpush1.msra.mxu0 0.0
    %370 = vmatprep.subr.mxu0 0.0
    %371 = vmatpush1.msra.mxu0 0.0
    %372 = vmatprep.subr.mxu0 0.0
    %373 = vmatpush1.msra.mxu0 0.0
    %374 = vmatprep.subr.mxu0 0.0
    %375 = vmatpush1.msra.mxu0 0.0
    %376 = vmatprep.subr.mxu0 0.0
    %377 = vmatpush1.msra.mxu0 0.0
    %378 = vmatprep.subr.mxu0 0.0
    %379 = vmatpush1.msra.mxu0 0.0
    %380 = vmatprep.subr.mxu0 0.0
    %381 = vmatpush1.msra.mxu0 0.0
    %382 = vmatprep.subr.mxu0 0.0
    %383 = vmatpush1.msra.mxu0 0.0
    %384 = vmatprep.subr.mxu0 0.0
    %385 = vmatpush1.msra.mxu0 0.0
    %386 = vmatprep.subr.mxu0 0.0
    %387 = vmatpush1.msra.mxu0 0.0
    %388 = vmatprep.subr.mxu0 0.0
    %389 = vmatpush1.msra.mxu0 0.0
    %390 = vmatprep.subr.mxu0 0.0
    %391 = vmatpush1.msra.mxu0 0.0
    %392 = vmatprep.subr.mxu0 0.0
    %393 = vmatpush1.msra.mxu0 0.0
    %394 = vmatprep.subr.mxu0 0.0
    %395 = vmatpush1.msra.mxu0 0.0
    %396 = vmatprep.subr.mxu0 0.0
    %397 = vmatpush1.msra.mxu0 0.0
    %398 = vmatprep.subr.mxu0 0.0
    %399 = vmatpush1.msra.mxu0 0.0
    %400 = vmatprep.subr.mxu0 0.0
    %401 = vmatpush1.msra.mxu0 0.0
    %402 = vmatprep.subr.mxu0 0.0
    %403 = vmatpush1.msra.mxu0 0.0
    %404 = vmatprep.mubr.f32.mxu0 0.0
    %405 = vmatmul.mubr.f32.gmra.mrb[0].mxu0 %v338
    %v406 = vpop.f32.mrb[0].mxu0
    %v407 = vadd.f32 0.0, %v406
    %v408 = vpop.f32.mrb[0].mxu0
    %409 = vdwg.mxu0
    %v410 = vadd.f32 %v330, %v407
    %v411 = vxor.u32 %v410, 2147483648
    %v412 = vmul.f32 %v411, 1.442695
    %v413 = vpow.pop %v412
    %v414 = vadd.f32 %v413, 1.0
    %v415 = vrcp.pop %v414
    %v416 = vmul.f32 1.0, %v415
    %v417 = vtanh.pop %v410
    %v418 = vmul.f32 %v416, 0.0
    %420 = vrot.lane.b32.xlu0 %v417, 64
    %v421 = vpop.permute.xlu0 %420
    %v423 = vmul.f32 %v416, %v421
    %425 = vrot.lane.b32.xlu0 %v423, 32
    %v426 = vpop.permute.xlu0 %425
    %v428 = vadd.f32 %v418, %v426
    %v429 = vtanh.pop %v428
    %431 = vrot.lane.b32.xlu0 %v429, 64
    %v432 = vpop.permute.xlu0 %431
    %v434 = vmul.f32 %v416, %v432
    %v435 = vld [vmem:[%s5] sm:$0xff]
    %v436 = vld [vmem:[%s5 + $0x8] sm:$0xff]
    %v437 = vld [vmem:[%s5 + $0x10] sm:$0xff]
    %v438 = vld [vmem:[%s5 + $0x18] sm:$0xff]
    %439 = vmatprep.subr.mxu0 0.0
    %440 = vmatpush1.msra.mxu0 %v435
    %441 = vmatprep.subr.mxu0 0.0
    %442 = vmatpush1.msra.mxu0 %v436
    %443 = vmatprep.subr.mxu0 0.0
    %444 = vmatpush1.msra.mxu0 %v437
    %445 = vmatprep.subr.mxu0 0.0
    %446 = vmatpush1.msra.mxu0 %v438
    %447 = vmatprep.subr.mxu0 0.0
    %448 = vmatpush1.msra.mxu0 0.0
    %449 = vmatprep.subr.mxu0 0.0
    %450 = vmatpush1.msra.mxu0 0.0
    %451 = vmatprep.subr.mxu0 0.0
    %452 = vmatpush1.msra.mxu0 0.0
    %453 = vmatprep.subr.mxu0 0.0
    %454 = vmatpush1.msra.mxu0 0.0
    %455 = vmatprep.subr.mxu0 0.0
    %456 = vmatpush1.msra.mxu0 0.0
    %457 = vmatprep.subr.mxu0 0.0
    %458 = vmatpush1.msra.mxu0 0.0
    %459 = vmatprep.subr.mxu0 0.0
    %460 = vmatpush1.msra.mxu0 0.0
    %461 = vmatprep.subr.mxu0 0.0
    %462 = vmatpush1.msra.mxu0 0.0
    %463 = vmatprep.subr.mxu0 0.0
    %464 = vmatpush1.msra.mxu0 0.0
    %465 = vmatprep.subr.mxu0 0.0
    %466 = vmatpush1.msra.mxu0 0.0
    %467 = vmatprep.subr.mxu0 0.0
    %468 = vmatpush1.msra.mxu0 0.0
    %469 = vmatprep.subr.mxu0 0.0
    %470 = vmatpush1.msra.mxu0 0.0
    %471 = vmatprep.subr.mxu0 0.0
    %472 = vmatpush1.msra.mxu0 0.0
    %473 = vmatprep.subr.mxu0 0.0
    %474 = vmatpush1.msra.mxu0 0.0
    %475 = vmatprep.subr.mxu0 0.0
    %476 = vmatpush1.msra.mxu0 0.0
    %477 = vmatprep.subr.mxu0 0.0
    %478 = vmatpush1.msra.mxu0 0.0
    %479 = vmatprep.subr.mxu0 0.0
    %480 = vmatpush1.msra.mxu0 0.0
    %481 = vmatprep.subr.mxu0 0.0
    %482 = vmatpush1.msra.mxu0 0.0
    %483 = vmatprep.subr.mxu0 0.0
    %484 = vmatpush1.msra.mxu0 0.0
    %485 = vmatprep.subr.mxu0 0.0
    %486 = vmatpush1.msra.mxu0 0.0
    %487 = vmatprep.subr.mxu0 0.0
    %488 = vmatpush1.msra.mxu0 0.0
    %489 = vmatprep.subr.mxu0 0.0
    %490 = vmatpush1.msra.mxu0 0.0
    %491 = vmatprep.subr.mxu0 0.0
    %492 = vmatpush1.msra.mxu0 0.0
    %493 = vmatprep.subr.mxu0 0.0
    %494 = vmatpush1.msra.mxu0 0.0
    %495 = vmatprep.subr.mxu0 0.0
    %496 = vmatpush1.msra.mxu0 0.0
    %497 = vmatprep.subr.mxu0 0.0
    %498 = vmatpush1.msra.mxu0 0.0
    %499 = vmatprep.subr.mxu0 0.0
    %500 = vmatpush1.msra.mxu0 0.0
    %501 = vmatprep.subr.mxu0 0.0
    %502 = vmatpush1.msra.mxu0 0.0
    %503 = vmatprep.mubr.f32.mxu0 0.0
    %504 = vmatmul.mubr.f32.gmra.mrb[0].mxu0 %v338
    %v505 = vpop.f32.mrb[0].mxu0
    %v506 = vadd.f32 0.0, %v505
    %v507 = vpop.f32.mrb[0].mxu0
    %508 = vdwg.mxu0
    %v510 = vrot.slane %v506, 4
    %v512 = vadd.f32 %v331, %v510
    %v513 = vxor.u32 %v512, 2147483648
    %v514 = vmul.f32 %v513, 1.442695
    %v515 = vpow.pop %v514
    %v516 = vadd.f32 %v515, 1.0
    %v517 = vrcp.pop %v516
    %v518 = vmul.f32 1.0, %v517
    %v519 = vtanh.pop %v512
    %v520 = vmul.f32 %v518, 0.0
    %522 = vrot.lane.b32.xlu0 %v519, 64
    %v523 = vpop.permute.xlu0 %522
    %v525 = vmul.f32 %v518, %v523
    %527 = vrot.lane.b32.xlu0 %v525, 32
    %v528 = vpop.permute.xlu0 %527
    %v530 = vadd.f32 %v520, %v528
    %v531 = vtanh.pop %v530
    %533 = vrot.lane.b32.xlu0 %v531, 64
    %v534 = vpop.permute.xlu0 %533
    %v536 = vmul.f32 %v518, %v534
    %vm537 = vcmp.gt.s32.totalorder %v195, 0
    %vm538 = vcmp.gt.s32.totalorder %v195, 7
    %v539 = vsel %vm537, 1, 0
    %540 = vset.pattern.permute.xlu0 0
    %541 = vperm.xlu0 %540, %v539
    %v542 = vpop.permute.xlu0 %541
    %vm543 = vcmp.eq.s32.totalorder %v542, 1
    %v544 = vsel %vm543, %v434, 0.0
    %v545 = vsel %vm543, %v428, 0.0
    %v546 = vsel %vm538, 1, 0
    %547 = vset.pattern.permute.xlu0 0
    %548 = vperm.xlu0 %547, %v546
    %v549 = vpop.permute.xlu0 %548
    %vm550 = vcmp.eq.s32.totalorder %v549, 1
    %v552 = vrot.slane %v536, 4
    %553 = vrot.lane.b32.xlu0 %v552, 32
    %v554 = vpop.permute.xlu0 %553
    %v556 = vsel %vm550, %v554, 0.0
    %v558 = vrot.slane %v530, 4
    %559 = vrot.lane.b32.xlu0 %v558, 96
    %v560 = vpop.permute.xlu0 %559
    %v562 = vsel %vm550, %v560, 0.0
    %v563 = vld [vmem:[#allocation6] sm:$0xf0]
    %v564 = vld [vmem:[#allocation6 + $0x38] sm:$0xf]
    %566 = vrot.lane.b32.xlu0 %v544, 32
    %v567 = vpop.permute.xlu0 %566
    %v568 = vsel %vm336, %v567, 0
    %570 = vmatprep.subr.mxu0 0.0
    %571 = vmatpush1.msra.mxu0 %v332
    %572 = vmatprep.subr.mxu0 0.0
    %573 = vmatpush1.msra.mxu0 %v333
    %574 = vmatprep.subr.mxu0 0.0
    %575 = vmatpush1.msra.mxu0 %v334
    %576 = vmatprep.subr.mxu0 0.0
    %577 = vmatpush1.msra.mxu0 %v335
    %578 = vmatprep.subr.mxu0 0.0
    %579 = vmatpush1.msra.mxu0 0.0
    %580 = vmatprep.subr.mxu0 0.0
    %581 = vmatpush1.msra.mxu0 0.0
    %582 = vmatprep.subr.mxu0 0.0
    %583 = vmatpush1.msra.mxu0 0.0
    %584 = vmatprep.subr.mxu0 0.0
    %585 = vmatpush1.msra.mxu0 0.0
    %586 = vmatprep.subr.mxu0 0.0
    %587 = vmatpush1.msra.mxu0 0.0
    %588 = vmatprep.subr.mxu0 0.0
    %589 = vmatpush1.msra.mxu0 0.0
    %590 = vmatprep.subr.mxu0 0.0
    %591 = vmatpush1.msra.mxu0 0.0
    %592 = vmatprep.subr.mxu0 0.0
    %593 = vmatpush1.msra.mxu0 0.0
    %594 = vmatprep.subr.mxu0 0.0
    %595 = vmatpush1.msra.mxu0 0.0
    %596 = vmatprep.subr.mxu0 0.0
    %597 = vmatpush1.msra.mxu0 0.0
    %598 = vmatprep.subr.mxu0 0.0
    %599 = vmatpush1.msra.mxu0 0.0
    %600 = vmatprep.subr.mxu0 0.0
    %601 = vmatpush1.msra.mxu0 0.0
    %602 = vmatprep.subr.mxu0 0.0
    %603 = vmatpush1.msra.mxu0 0.0
    %604 = vmatprep.subr.mxu0 0.0
    %605 = vmatpush1.msra.mxu0 0.0
    %606 = vmatprep.subr.mxu0 0.0
    %607 = vmatpush1.msra.mxu0 0.0
    %608 = vmatprep.subr.mxu0 0.0
    %609 = vmatpush1.msra.mxu0 0.0
    %610 = vmatprep.subr.mxu0 0.0
    %611 = vmatpush1.msra.mxu0 0.0
    %612 = vmatprep.subr.mxu0 0.0
    %613 = vmatpush1.msra.mxu0 0.0
    %614 = vmatprep.subr.mxu0 0.0
    %615 = vmatpush1.msra.mxu0 0.0
    %616 = vmatprep.subr.mxu0 0.0
    %617 = vmatpush1.msra.mxu0 0.0
    %618 = vmatprep.subr.mxu0 0.0
    %619 = vmatpush1.msra.mxu0 0.0
    %620 = vmatprep.subr.mxu0 0.0
    %621 = vmatpush1.msra.mxu0 0.0
    %622 = vmatprep.subr.mxu0 0.0
    %623 = vmatpush1.msra.mxu0 0.0
    %624 = vmatprep.subr.mxu0 0.0
    %625 = vmatpush1.msra.mxu0 0.0
    %626 = vmatprep.subr.mxu0 0.0
    %627 = vmatpush1.msra.mxu0 0.0
    %628 = vmatprep.subr.mxu0 0.0
    %629 = vmatpush1.msra.mxu0 0.0
    %630 = vmatprep.subr.mxu0 0.0
    %631 = vmatpush1.msra.mxu0 0.0
    %632 = vmatprep.subr.mxu0 0.0
    %633 = vmatpush1.msra.mxu0 0.0
    %634 = vmatprep.mubr.f32.mxu0 0.0
    %635 = vmatmul.mubr.f32.gmra.mrb[0].mxu0 %v568
    %v636 = vpop.f32.mrb[0].mxu0
    %v637 = vadd.f32 0.0, %v636
    %v638 = vpop.f32.mrb[0].mxu0
    %639 = vdwg.mxu0
    %v641 = vrot.slane %v637, 4
    %v643 = vadd.f32 %v563, %v641
    %v644 = vxor.u32 %v643, 2147483648
    %v645 = vmul.f32 %v644, 1.442695
    %v646 = vpow.pop %v645
    %v647 = vadd.f32 %v646, 1.0
    %v648 = vrcp.pop %v647
    %v649 = vmul.f32 1.0, %v648
    %v650 = vtanh.pop %v643
    %v652 = vrot.slane %v545, 4
    %v654 = vmul.f32 %v649, %v652
    %656 = vrot.lane.b32.xlu0 %v650, 64
    %v657 = vpop.permute.xlu0 %656
    %v659 = vmul.f32 %v649, %v657
    %661 = vrot.lane.b32.xlu0 %v659, 32
    %v662 = vpop.permute.xlu0 %661
    %v664 = vadd.f32 %v654, %v662
    %v665 = vtanh.pop %v664
    %667 = vrot.lane.b32.xlu0 %v665, 64
    %v668 = vpop.permute.xlu0 %667
    %v670 = vmul.f32 %v649, %v668
    %v672 = vsel %vm336, %v556, 0
    %674 = vmatprep.subr.mxu0 0.0
    %675 = vmatpush1.msra.mxu0 %v435
    %676 = vmatprep.subr.mxu0 0.0
    %677 = vmatpush1.msra.mxu0 %v436
    %678 = vmatprep.subr.mxu0 0.0
    %679 = vmatpush1.msra.mxu0 %v437
    %680 = vmatprep.subr.mxu0 0.0
    %681 = vmatpush1.msra.mxu0 %v438
    %682 = vmatprep.subr.mxu0 0.0
    %683 = vmatpush1.msra.mxu0 0.0
    %684 = vmatprep.subr.mxu0 0.0
    %685 = vmatpush1.msra.mxu0 0.0
    %686 = vmatprep.subr.mxu0 0.0
    %687 = vmatpush1.msra.mxu0 0.0
    %688 = vmatprep.subr.mxu0 0.0
    %689 = vmatpush1.msra.mxu0 0.0
    %690 = vmatprep.subr.mxu0 0.0
    %691 = vmatpush1.msra.mxu0 0.0
    %692 = vmatprep.subr.mxu0 0.0
    %693 = vmatpush1.msra.mxu0 0.0
    %694 = vmatprep.subr.mxu0 0.0
    %695 = vmatpush1.msra.mxu0 0.0
    %696 = vmatprep.subr.mxu0 0.0
    %697 = vmatpush1.msra.mxu0 0.0
    %698 = vmatprep.subr.mxu0 0.0
    %699 = vmatpush1.msra.mxu0 0.0
    %700 = vmatprep.subr.mxu0 0.0
    %701 = vmatpush1.msra.mxu0 0.0
    %702 = vmatprep.subr.mxu0 0.0
    %703 = vmatpush1.msra.mxu0 0.0
    %704 = vmatprep.subr.mxu0 0.0
    %705 = vmatpush1.msra.mxu0 0.0
    %706 = vmatprep.subr.mxu0 0.0
    %707 = vmatpush1.msra.mxu0 0.0
    %708 = vmatprep.subr.mxu0 0.0
    %709 = vmatpush1.msra.mxu0 0.0
    %710 = vmatprep.subr.mxu0 0.0
    %711 = vmatpush1.msra.mxu0 0.0
    %712 = vmatprep.subr.mxu0 0.0
    %713 = vmatpush1.msra.mxu0 0.0
    %714 = vmatprep.subr.mxu0 0.0
    %715 = vmatpush1.msra.mxu0 0.0
    %716 = vmatprep.subr.mxu0 0.0
    %717 = vmatpush1.msra.mxu0 0.0
    %718 = vmatprep.subr.mxu0 0.0
    %719 = vmatpush1.msra.mxu0 0.0
    %720 = vmatprep.subr.mxu0 0.0
    %721 = vmatpush1.msra.mxu0 0.0
    %722 = vmatprep.subr.mxu0 0.0
    %723 = vmatpush1.msra.mxu0 0.0
    %724 = vmatprep.subr.mxu0 0.0
    %725 = vmatpush1.msra.mxu0 0.0
    %726 = vmatprep.subr.mxu0 0.0
    %727 = vmatpush1.msra.mxu0 0.0
    %728 = vmatprep.subr.mxu0 0.0
    %729 = vmatpush1.msra.mxu0 0.0
    %730 = vmatprep.subr.mxu0 0.0
    %731 = vmatpush1.msra.mxu0 0.0
    %732 = vmatprep.subr.mxu0 0.0
    %733 = vmatpush1.msra.mxu0 0.0
    %734 = vmatprep.subr.mxu0 0.0
    %735 = vmatpush1.msra.mxu0 0.0
    %736 = vmatprep.subr.mxu0 0.0
    %737 = vmatpush1.msra.mxu0 0.0
    %738 = vmatprep.mubr.f32.mxu0 0.0
    %739 = vmatmul.mubr.f32.gmra.mrb[0].mxu0 %v672
    %v740 = vpop.f32.mrb[0].mxu0
    %v741 = vadd.f32 0.0, %v740
    %v742 = vpop.f32.mrb[0].mxu0
    %743 = vdwg.mxu0
    %v744 = vadd.f32 %v564, %v741
    %v745 = vxor.u32 %v744, 2147483648
    %v746 = vmul.f32 %v745, 1.442695
    %v747 = vpow.pop %v746
    %v748 = vadd.f32 %v747, 1.0
    %v749 = vrcp.pop %v748
    %v750 = vmul.f32 1.0, %v749
    %v751 = vtanh.pop %v744
    %753 = vrot.lane.b32.xlu0 %v562, 32
    %v754 = vpop.permute.xlu0 %753
    %v756 = vmul.f32 %v750, %v754
    %758 = vrot.lane.b32.xlu0 %v751, 64
    %v759 = vpop.permute.xlu0 %758
    %v761 = vmul.f32 %v750, %v759
    %763 = vrot.lane.b32.xlu0 %v761, 32
    %v764 = vpop.permute.xlu0 %763
    %v766 = vadd.f32 %v756, %v764
    %v767 = vtanh.pop %v766
    %769 = vrot.lane.b32.xlu0 %v767, 64
    %v770 = vpop.permute.xlu0 %769
    %v772 = vmul.f32 %v750, %v770
    %vm773 = vcmp.gt.s32.totalorder %v195, 1
    %vm774 = vcmp.gt.s32.totalorder %v195, 6
    %v775 = vsel %vm773, 1, 0
    %776 = vset.pattern.permute.xlu0 0
    %777 = vperm.xlu0 %776, %v775
    %v778 = vpop.permute.xlu0 %777
    %vm779 = vcmp.eq.s32.totalorder %v778, 1
    %v781 = vrot.slane %v670, 4
    %782 = vrot.lane.b32.xlu0 %v781, 32
    %v783 = vpop.permute.xlu0 %782
    %v786 = vsel %vm779, %v783, %v567
    %v788 = vrot.slane %v664, 4
    %789 = vrot.lane.b32.xlu0 %v788, 96
    %v790 = vpop.permute.xlu0 %789
    %792 = vrot.lane.b32.xlu0 %v545, 96
    %v793 = vpop.permute.xlu0 %792
    %v795 = vsel %vm779, %v790, %v793
    %v796 = vsel %vm774, 1, 0
    %797 = vset.pattern.permute.xlu0 0
    %798 = vperm.xlu0 %797, %v796
    %v799 = vpop.permute.xlu0 %798
    %vm800 = vcmp.eq.s32.totalorder %v799, 1
    %801 = vrot.lane.b32.xlu0 %v556, 96
    %v802 = vpop.permute.xlu0 %801
    %v804 = vsel %vm800, %v772, %v802
    %v805 = vsel %vm800, %v766, %v754
    %v806 = vld [vmem:[#allocation6 + $0x10] sm:$0xf]
    %v807 = vld [vmem:[#allocation6 + $0x28] sm:$0xf0]
    %v809 = vsel %vm336, %v786, 0
    %811 = vmatprep.subr.mxu0 0.0
    %812 = vmatpush1.msra.mxu0 %v332
    %813 = vmatprep.subr.mxu0 0.0
    %814 = vmatpush1.msra.mxu0 %v333
    %815 = vmatprep.subr.mxu0 0.0
    %816 = vmatpush1.msra.mxu0 %v334
    %817 = vmatprep.subr.mxu0 0.0
    %818 = vmatpush1.msra.mxu0 %v335
    %819 = vmatprep.subr.mxu0 0.0
    %820 = vmatpush1.msra.mxu0 0.0
    %821 = vmatprep.subr.mxu0 0.0
    %822 = vmatpush1.msra.mxu0 0.0
    %823 = vmatprep.subr.mxu0 0.0
    %824 = vmatpush1.msra.mxu0 0.0
    %825 = vmatprep.subr.mxu0 0.0
    %826 = vmatpush1.msra.mxu0 0.0
    %827 = vmatprep.subr.mxu0 0.0
    %828 = vmatpush1.msra.mxu0 0.0
    %829 = vmatprep.subr.mxu0 0.0
    %830 = vmatpush1.msra.mxu0 0.0
    %831 = vmatprep.subr.mxu0 0.0
    %832 = vmatpush1.msra.mxu0 0.0
    %833 = vmatprep.subr.mxu0 0.0
    %834 = vmatpush1.msra.mxu0 0.0
    %835 = vmatprep.subr.mxu0 0.0
    %836 = vmatpush1.msra.mxu0 0.0
    %837 = vmatprep.subr.mxu0 0.0
    %838 = vmatpush1.msra.mxu0 0.0
    %839 = vmatprep.subr.mxu0 0.0
    %840 = vmatpush1.msra.mxu0 0.0
    %841 = vmatprep.subr.mxu0 0.0
    %842 = vmatpush1.msra.mxu0 0.0
    %843 = vmatprep.subr.mxu0 0.0
    %844 = vmatpush1.msra.mxu0 0.0
    %845 = vmatprep.subr.mxu0 0.0
    %846 = vmatpush1.msra.mxu0 0.0
    %847 = vmatprep.subr.mxu0 0.0
    %848 = vmatpush1.msra.mxu0 0.0
    %849 = vmatprep.subr.mxu0 0.0
    %850 = vmatpush1.msra.mxu0 0.0
    %851 = vmatprep.subr.mxu0 0.0
    %852 = vmatpush1.msra.mxu0 0.0
    %853 = vmatprep.subr.mxu0 0.0
    %854 = vmatpush1.msra.mxu0 0.0
    %855 = vmatprep.subr.mxu0 0.0
    %856 = vmatpush1.msra.mxu0 0.0
    %857 = vmatprep.subr.mxu0 0.0
    %858 = vmatpush1.msra.mxu0 0.0
    %859 = vmatprep.subr.mxu0 0.0
    %860 = vmatpush1.msra.mxu0 0.0
    %861 = vmatprep.subr.mxu0 0.0
    %862 = vmatpush1.msra.mxu0 0.0
    %863 = vmatprep.subr.mxu0 0.0
    %864 = vmatpush1.msra.mxu0 0.0
    %865 = vmatprep.subr.mxu0 0.0
    %866 = vmatpush1.msra.mxu0 0.0
    %867 = vmatprep.subr.mxu0 0.0
    %868 = vmatpush1.msra.mxu0 0.0
    %869 = vmatprep.subr.mxu0 0.0
    %870 = vmatpush1.msra.mxu0 0.0
    %871 = vmatprep.subr.mxu0 0.0
    %872 = vmatpush1.msra.mxu0 0.0
    %873 = vmatprep.subr.mxu0 0.0
    %874 = vmatpush1.msra.mxu0 0.0
    %875 = vmatprep.mubr.f32.mxu0 0.0
    %876 = vmatmul.mubr.f32.gmra.mrb[0].mxu0 %v809
    %v877 = vpop.f32.mrb[0].mxu0
    %v878 = vadd.f32 0.0, %v877
    %v879 = vpop.f32.mrb[0].mxu0
    %880 = vdwg.mxu0
    %v881 = vadd.f32 %v806, %v878
    %v882 = vxor.u32 %v881, 2147483648
    %v883 = vmul.f32 %v882, 1.442695
    %v884 = vpow.pop %v883
    %v885 = vadd.f32 %v884, 1.0
    %v886 = vrcp.pop %v885
    %v887 = vmul.f32 1.0, %v886
    %v888 = vtanh.pop %v881
    %890 = vrot.lane.b32.xlu0 %v795, 32
    %v891 = vpop.permute.xlu0 %890
    %v893 = vmul.f32 %v887, %v891
    %895 = vrot.lane.b32.xlu0 %v888, 64
    %v896 = vpop.permute.xlu0 %895
    %v898 = vmul.f32 %v887, %v896
    %900 = vrot.lane.b32.xlu0 %v898, 32
    %v901 = vpop.permute.xlu0 %900
    %v903 = vadd.f32 %v893, %v901
    %v904 = vtanh.pop %v903
    %906 = vrot.lane.b32.xlu0 %v904, 64
    %v907 = vpop.permute.xlu0 %906
    %v909 = vmul.f32 %v887, %v907
    %911 = vrot.lane.b32.xlu0 %v804, 32
    %v912 = vpop.permute.xlu0 %911
    %v913 = vsel %vm336, %v912, 0
    %915 = vmatprep.subr.mxu0 0.0
    %916 = vmatpush1.msra.mxu0 %v435
    %917 = vmatprep.subr.mxu0 0.0
    %918 = vmatpush1.msra.mxu0 %v436
    %919 = vmatprep.subr.mxu0 0.0
    %920 = vmatpush1.msra.mxu0 %v437
    %921 = vmatprep.subr.mxu0 0.0
    %922 = vmatpush1.msra.mxu0 %v438
    %923 = vmatprep.subr.mxu0 0.0
    %924 = vmatpush1.msra.mxu0 0.0
    %925 = vmatprep.subr.mxu0 0.0
    %926 = vmatpush1.msra.mxu0 0.0
    %927 = vmatprep.subr.mxu0 0.0
    %928 = vmatpush1.msra.mxu0 0.0
    %929 = vmatprep.subr.mxu0 0.0
    %930 = vmatpush1.msra.mxu0 0.0
    %931 = vmatprep.subr.mxu0 0.0
    %932 = vmatpush1.msra.mxu0 0.0
    %933 = vmatprep.subr.mxu0 0.0
    %934 = vmatpush1.msra.mxu0 0.0
    %935 = vmatprep.subr.mxu0 0.0
    %936 = vmatpush1.msra.mxu0 0.0
    %937 = vmatprep.subr.mxu0 0.0
    %938 = vmatpush1.msra.mxu0 0.0
    %939 = vmatprep.subr.mxu0 0.0
    %940 = vmatpush1.msra.mxu0 0.0
    %941 = vmatprep.subr.mxu0 0.0
    %942 = vmatpush1.msra.mxu0 0.0
    %943 = vmatprep.subr.mxu0 0.0
    %944 = vmatpush1.msra.mxu0 0.0
    %945 = vmatprep.subr.mxu0 0.0
    %946 = vmatpush1.msra.mxu0 0.0
    %947 = vmatprep.subr.mxu0 0.0
    %948 = vmatpush1.msra.mxu0 0.0
    %949 = vmatprep.subr.mxu0 0.0
    %950 = vmatpush1.msra.mxu0 0.0
    %951 = vmatprep.subr.mxu0 0.0
    %952 = vmatpush1.msra.mxu0 0.0
    %953 = vmatprep.subr.mxu0 0.0
    %954 = vmatpush1.msra.mxu0 0.0
    %955 = vmatprep.subr.mxu0 0.0
    %956 = vmatpush1.msra.mxu0 0.0
    %957 = vmatprep.subr.mxu0 0.0
    %958 = vmatpush1.msra.mxu0 0.0
    %959 = vmatprep.subr.mxu0 0.0
    %960 = vmatpush1.msra.mxu0 0.0
    %961 = vmatprep.subr.mxu0 0.0
    %962 = vmatpush1.msra.mxu0 0.0
    %963 = vmatprep.subr.mxu0 0.0
    %964 = vmatpush1.msra.mxu0 0.0
    %965 = vmatprep.subr.mxu0 0.0
    %966 = vmatpush1.msra.mxu0 0.0
    %967 = vmatprep.subr.mxu0 0.0
    %968 = vmatpush1.msra.mxu0 0.0
    %969 = vmatprep.subr.mxu0 0.0
    %970 = vmatpush1.msra.mxu0 0.0
    %971 = vmatprep.subr.mxu0 0.0
    %972 = vmatpush1.msra.mxu0 0.0
    %973 = vmatprep.subr.mxu0 0.0
    %974 = vmatpush1.msra.mxu0 0.0
    %975 = vmatprep.subr.mxu0 0.0
    %976 = vmatpush1.msra.mxu0 0.0
    %977 = vmatprep.subr.mxu0 0.0
    %978 = vmatpush1.msra.mxu0 0.0
    %979 = vmatprep.mubr.f32.mxu0 0.0
    %980 = vmatmul.mubr.f32.gmra.mrb[0].mxu0 %v913
    %v981 = vpop.f32.mrb[0].mxu0
    %v982 = vadd.f32 0.0, %v981
    %v983 = vpop.f32.mrb[0].mxu0
    %984 = vdwg.mxu0
    %v986 = vrot.slane %v982, 4
    %v988 = vadd.f32 %v807, %v986
    %v989 = vxor.u32 %v988, 2147483648
    %v990 = vmul.f32 %v989, 1.442695
    %v991 = vpow.pop %v990
    %v992 = vadd.f32 %v991, 1.0
    %v993 = vrcp.pop %v992
    %v994 = vmul.f32 1.0, %v993
    %v995 = vtanh.pop %v988
    %v997 = vrot.slane %v805, 4
    %v999 = vmul.f32 %v994, %v997
    %1001 = vrot.lane.b32.xlu0 %v995, 64
    %v1002 = vpop.permute.xlu0 %1001
    %v1004 = vmul.f32 %v994, %v1002
    %1006 = vrot.lane.b32.xlu0 %v1004, 32
    %v1007 = vpop.permute.xlu0 %1006
    %v1009 = vadd.f32 %v999, %v1007
    %v1010 = vtanh.pop %v1009
    %1012 = vrot.lane.b32.xlu0 %v1010, 64
    %v1013 = vpop.permute.xlu0 %1012
    %v1015 = vmul.f32 %v994, %v1013
    %vm1016 = vcmp.gt.s32.totalorder %v195, 2
    %vm1017 = vcmp.gt.s32.totalorder %v195, 5
    %v1018 = vsel %vm1016, 1, 0
    %1019 = vset.pattern.permute.xlu0 0
    %1020 = vperm.xlu0 %1019, %v1018
    %v1021 = vpop.permute.xlu0 %1020
    %vm1022 = vcmp.eq.s32.totalorder %v1021, 1
    %1023 = vrot.lane.b32.xlu0 %v786, 96
    %v1024 = vpop.permute.xlu0 %1023
    %v1026 = vsel %vm1022, %v909, %v1024
    %v1027 = vsel %vm1022, %v903, %v891
    %v1028 = vsel %vm1017, 1, 0
    %1029 = vset.pattern.permute.xlu0 0
    %1030 = vperm.xlu0 %1029, %v1028
    %v1031 = vpop.permute.xlu0 %1030
    %vm1032 = vcmp.eq.s32.totalorder %v1031, 1
    %v1034 = vrot.slane %v1015, 4
    %1035 = vrot.lane.b32.xlu0 %v1034, 32
    %v1036 = vpop.permute.xlu0 %1035
    %v1039 = vsel %vm1032, %v1036, %v912
    %v1041 = vrot.slane %v1009, 4
    %1042 = vrot.lane.b32.xlu0 %v1041, 96
    %v1043 = vpop.permute.xlu0 %1042
    %1045 = vrot.lane.b32.xlu0 %v805, 96
    %v1046 = vpop.permute.xlu0 %1045
    %v1048 = vsel %vm1032, %v1043, %v1046
    %v1049 = vld [vmem:[#allocation6 + $0x10] sm:$0xf0]
    %v1050 = vld [vmem:[#allocation6 + $0x28] sm:$0xf]
    %1052 = vrot.lane.b32.xlu0 %v1026, 32
    %v1053 = vpop.permute.xlu0 %1052
    %v1054 = vsel %vm336, %v1053, 0
    %1056 = vmatprep.subr.mxu0 0.0
    %1057 = vmatpush1.msra.mxu0 %v332
    %1058 = vmatprep.subr.mxu0 0.0
    %1059 = vmatpush1.msra.mxu0 %v333
    %1060 = vmatprep.subr.mxu0 0.0
    %1061 = vmatpush1.msra.mxu0 %v334
    %1062 = vmatprep.subr.mxu0 0.0
    %1063 = vmatpush1.msra.mxu0 %v335
    %1064 = vmatprep.subr.mxu0 0.0
    %1065 = vmatpush1.msra.mxu0 0.0
    %1066 = vmatprep.subr.mxu0 0.0
    %1067 = vmatpush1.msra.mxu0 0.0
    %1068 = vmatprep.subr.mxu0 0.0
    %1069 = vmatpush1.msra.mxu0 0.0
    %1070 = vmatprep.subr.mxu0 0.0
    %1071 = vmatpush1.msra.mxu0 0.0
    %1072 = vmatprep.subr.mxu0 0.0
    %1073 = vmatpush1.msra.mxu0 0.0
    %1074 = vmatprep.subr.mxu0 0.0
    %1075 = vmatpush1.msra.mxu0 0.0
    %1076 = vmatprep.subr.mxu0 0.0
    %1077 = vmatpush1.msra.mxu0 0.0
    %1078 = vmatprep.subr.mxu0 0.0
    %1079 = vmatpush1.msra.mxu0 0.0
    %1080 = vmatprep.subr.mxu0 0.0
    %1081 = vmatpush1.msra.mxu0 0.0
    %1082 = vmatprep.subr.mxu0 0.0
    %1083 = vmatpush1.msra.mxu0 0.0
    %1084 = vmatprep.subr.mxu0 0.0
    %1085 = vmatpush1.msra.mxu0 0.0
    %1086 = vmatprep.subr.mxu0 0.0
    %1087 = vmatpush1.msra.mxu0 0.0
    %1088 = vmatprep.subr.mxu0 0.0
    %1089 = vmatpush1.msra.mxu0 0.0
    %1090 = vmatprep.subr.mxu0 0.0
    %1091 = vmatpush1.msra.mxu0 0.0
    %1092 = vmatprep.subr.mxu0 0.0
    %1093 = vmatpush1.msra.mxu0 0.0
    %1094 = vmatprep.subr.mxu0 0.0
    %1095 = vmatpush1.msra.mxu0 0.0
    %1096 = vmatprep.subr.mxu0 0.0
    %1097 = vmatpush1.msra.mxu0 0.0
    %1098 = vmatprep.subr.mxu0 0.0
    %1099 = vmatpush1.msra.mxu0 0.0
    %1100 = vmatprep.subr.mxu0 0.0
    %1101 = vmatpush1.msra.mxu0 0.0
    %1102 = vmatprep.subr.mxu0 0.0
    %1103 = vmatpush1.msra.mxu0 0.0
    %1104 = vmatprep.subr.mxu0 0.0
    %1105 = vmatpush1.msra.mxu0 0.0
    %1106 = vmatprep.subr.mxu0 0.0
    %1107 = vmatpush1.msra.mxu0 0.0
    %1108 = vmatprep.subr.mxu0 0.0
    %1109 = vmatpush1.msra.mxu0 0.0
    %1110 = vmatprep.subr.mxu0 0.0
    %1111 = vmatpush1.msra.mxu0 0.0
    %1112 = vmatprep.subr.mxu0 0.0
    %1113 = vmatpush1.msra.mxu0 0.0
    %1114 = vmatprep.subr.mxu0 0.0
    %1115 = vmatpush1.msra.mxu0 0.0
    %1116 = vmatprep.subr.mxu0 0.0
    %1117 = vmatpush1.msra.mxu0 0.0
    %1118 = vmatprep.subr.mxu0 0.0
    %1119 = vmatpush1.msra.mxu0 0.0
    %1120 = vmatprep.mubr.f32.mxu0 0.0
    %1121 = vmatmul.mubr.f32.gmra.mrb[0].mxu0 %v1054
    %v1122 = vpop.f32.mrb[0].mxu0
    %v1123 = vadd.f32 0.0, %v1122
    %v1124 = vpop.f32.mrb[0].mxu0
    %1125 = vdwg.mxu0
    %v1127 = vrot.slane %v1123, 4
    %v1129 = vadd.f32 %v1049, %v1127
    %v1130 = vxor.u32 %v1129, 2147483648
    %v1131 = vmul.f32 %v1130, 1.442695
    %v1132 = vpow.pop %v1131
    %v1133 = vadd.f32 %v1132, 1.0
    %v1134 = vrcp.pop %v1133
    %v1135 = vmul.f32 1.0, %v1134
    %v1136 = vtanh.pop %v1129
    %v1138 = vrot.slane %v1027, 4
    %v1140 = vmul.f32 %v1135, %v1138
    %1142 = vrot.lane.b32.xlu0 %v1136, 64
    %v1143 = vpop.permute.xlu0 %1142
    %v1145 = vmul.f32 %v1135, %v1143
    %1147 = vrot.lane.b32.xlu0 %v1145, 32
    %v1148 = vpop.permute.xlu0 %1147
    %v1150 = vadd.f32 %v1140, %v1148
    %v1151 = vtanh.pop %v1150
    %1153 = vrot.lane.b32.xlu0 %v1151, 64
    %v1154 = vpop.permute.xlu0 %1153
    %v1156 = vmul.f32 %v1135, %v1154
    %v1158 = vsel %vm336, %v1039, 0
    %1160 = vmatprep.subr.mxu0 0.0
    %1161 = vmatpush1.msra.mxu0 %v435
    %1162 = vmatprep.subr.mxu0 0.0
    %1163 = vmatpush1.msra.mxu0 %v436
    %1164 = vmatprep.subr.mxu0 0.0
    %1165 = vmatpush1.msra.mxu0 %v437
    %1166 = vmatprep.subr.mxu0 0.0
    %1167 = vmatpush1.msra.mxu0 %v438
    %1168 = vmatprep.subr.mxu0 0.0
    %1169 = vmatpush1.msra.mxu0 0.0
    %1170 = vmatprep.subr.mxu0 0.0
    %1171 = vmatpush1.msra.mxu0 0.0
    %1172 = vmatprep.subr.mxu0 0.0
    %1173 = vmatpush1.msra.mxu0 0.0
    %1174 = vmatprep.subr.mxu0 0.0
    %1175 = vmatpush1.msra.mxu0 0.0
    %1176 = vmatprep.subr.mxu0 0.0
    %1177 = vmatpush1.msra.mxu0 0.0
    %1178 = vmatprep.subr.mxu0 0.0
    %1179 = vmatpush1.msra.mxu0 0.0
    %1180 = vmatprep.subr.mxu0 0.0
    %1181 = vmatpush1.msra.mxu0 0.0
    %1182 = vmatprep.subr.mxu0 0.0
    %1183 = vmatpush1.msra.mxu0 0.0
    %1184 = vmatprep.subr.mxu0 0.0
    %1185 = vmatpush1.msra.mxu0 0.0
    %1186 = vmatprep.subr.mxu0 0.0
    %1187 = vmatpush1.msra.mxu0 0.0
    %1188 = vmatprep.subr.mxu0 0.0
    %1189 = vmatpush1.msra.mxu0 0.0
    %1190 = vmatprep.subr.mxu0 0.0
    %1191 = vmatpush1.msra.mxu0 0.0
    %1192 = vmatprep.subr.mxu0 0.0
    %1193 = vmatpush1.msra.mxu0 0.0
    %1194 = vmatprep.subr.mxu0 0.0
    %1195 = vmatpush1.msra.mxu0 0.0
    %1196 = vmatprep.subr.mxu0 0.0
    %1197 = vmatpush1.msra.mxu0 0.0
    %1198 = vmatprep.subr.mxu0 0.0
    %1199 = vmatpush1.msra.mxu0 0.0
    %1200 = vmatprep.subr.mxu0 0.0
    %1201 = vmatpush1.msra.mxu0 0.0
    %1202 = vmatprep.subr.mxu0 0.0
    %1203 = vmatpush1.msra.mxu0 0.0
    %1204 = vmatprep.subr.mxu0 0.0
    %1205 = vmatpush1.msra.mxu0 0.0
    %1206 = vmatprep.subr.mxu0 0.0
    %1207 = vmatpush1.msra.mxu0 0.0
    %1208 = vmatprep.subr.mxu0 0.0
    %1209 = vmatpush1.msra.mxu0 0.0
    %1210 = vmatprep.subr.mxu0 0.0
    %1211 = vmatpush1.msra.mxu0 0.0
    %1212 = vmatprep.subr.mxu0 0.0
    %1213 = vmatpush1.msra.mxu0 0.0
    %1214 = vmatprep.subr.mxu0 0.0
    %1215 = vmatpush1.msra.mxu0 0.0
    %1216 = vmatprep.subr.mxu0 0.0
    %1217 = vmatpush1.msra.mxu0 0.0
    %1218 = vmatprep.subr.mxu0 0.0
    %1219 = vmatpush1.msra.mxu0 0.0
    %1220 = vmatprep.subr.mxu0 0.0
    %1221 = vmatpush1.msra.mxu0 0.0
    %1222 = vmatprep.subr.mxu0 0.0
    %1223 = vmatpush1.msra.mxu0 0.0
    %1224 = vmatprep.mubr.f32.mxu0 0.0
    %1225 = vmatmul.mubr.f32.gmra.mrb[0].mxu0 %v1158
    %v1226 = vpop.f32.mrb[0].mxu0
    %v1227 = vadd.f32 0.0, %v1226
    %v1228 = vpop.f32.mrb[0].mxu0
    %1229 = vdwg.mxu0
    %v1230 = vadd.f32 %v1050, %v1227
    %v1231 = vxor.u32 %v1230, 2147483648
    %v1232 = vmul.f32 %v1231, 1.442695
    %v1233 = vpow.pop %v1232
    %v1234 = vadd.f32 %v1233, 1.0
    %v1235 = vrcp.pop %v1234
    %v1236 = vmul.f32 1.0, %v1235
    %v1237 = vtanh.pop %v1230
    %1239 = vrot.lane.b32.xlu0 %v1048, 32
    %v1240 = vpop.permute.xlu0 %1239
    %v1242 = vmul.f32 %v1236, %v1240
    %1244 = vrot.lane.b32.xlu0 %v1237, 64
    %v1245 = vpop.permute.xlu0 %1244
    %v1247 = vmul.f32 %v1236, %v1245
    %1249 = vrot.lane.b32.xlu0 %v1247, 32
    %v1250 = vpop.permute.xlu0 %1249
    %v1252 = vadd.f32 %v1242, %v1250
    %v1253 = vtanh.pop %v1252
    %1255 = vrot.lane.b32.xlu0 %v1253, 64
    %v1256 = vpop.permute.xlu0 %1255
    %v1258 = vmul.f32 %v1236, %v1256
    %vm1259 = vcmp.gt.s32.totalorder %v195, 3
    %vm1260 = vcmp.gt.s32.totalorder %v195, 4
    %v1261 = vsel %vm1259, 1, 0
    %1262 = vset.pattern.permute.xlu0 0
    %1263 = vperm.xlu0 %1262, %v1261
    %v1264 = vpop.permute.xlu0 %1263
    %vm1265 = vcmp.eq.s32.totalorder %v1264, 1
    %v1267 = vrot.slane %v1156, 4
    %1268 = vrot.lane.b32.xlu0 %v1267, 32
    %v1269 = vpop.permute.xlu0 %1268
    %v1272 = vsel %vm1265, %v1269, %v1053
    %v1274 = vrot.slane %v1150, 4
    %1275 = vrot.lane.b32.xlu0 %v1274, 96
    %v1276 = vpop.permute.xlu0 %1275
    %1278 = vrot.lane.b32.xlu0 %v1027, 96
    %v1279 = vpop.permute.xlu0 %1278
    %v1281 = vsel %vm1265, %v1276, %v1279
    %v1282 = vsel %vm1260, 1, 0
    %1283 = vset.pattern.permute.xlu0 0
    %1284 = vperm.xlu0 %1283, %v1282
    %v1285 = vpop.permute.xlu0 %1284
    %vm1286 = vcmp.eq.s32.totalorder %v1285, 1
    %1287 = vrot.lane.b32.xlu0 %v1039, 96
    %v1288 = vpop.permute.xlu0 %1287
    %v1290 = vsel %vm1286, %v1258, %v1288
    %v1291 = vsel %vm1286, %v1252, %v1240
    %v1292 = vld [vmem:[#allocation6 + $0x20] sm:$0xf]
    %v1293 = vld [vmem:[#allocation6 + $0x18] sm:$0xf0]
    %v1295 = vsel %vm336, %v1272, 0
    %1297 = vmatprep.subr.mxu0 0.0
    %1298 = vmatpush1.msra.mxu0 %v332
    %1299 = vmatprep.subr.mxu0 0.0
    %1300 = vmatpush1.msra.mxu0 %v333
    %1301 = vmatprep.subr.mxu0 0.0
    %1302 = vmatpush1.msra.mxu0 %v334
    %1303 = vmatprep.subr.mxu0 0.0
    %1304 = vmatpush1.msra.mxu0 %v335
    %1305 = vmatprep.subr.mxu0 0.0
    %1306 = vmatpush1.msra.mxu0 0.0
    %1307 = vmatprep.subr.mxu0 0.0
    %1308 = vmatpush1.msra.mxu0 0.0
    %1309 = vmatprep.subr.mxu0 0.0
    %1310 = vmatpush1.msra.mxu0 0.0
    %1311 = vmatprep.subr.mxu0 0.0
    %1312 = vmatpush1.msra.mxu0 0.0
    %1313 = vmatprep.subr.mxu0 0.0
    %1314 = vmatpush1.msra.mxu0 0.0
    %1315 = vmatprep.subr.mxu0 0.0
    %1316 = vmatpush1.msra.mxu0 0.0
    %1317 = vmatprep.subr.mxu0 0.0
    %1318 = vmatpush1.msra.mxu0 0.0
    %1319 = vmatprep.subr.mxu0 0.0
    %1320 = vmatpush1.msra.mxu0 0.0
    %1321 = vmatprep.subr.mxu0 0.0
    %1322 = vmatpush1.msra.mxu0 0.0
    %1323 = vmatprep.subr.mxu0 0.0
    %1324 = vmatpush1.msra.mxu0 0.0
    %1325 = vmatprep.subr.mxu0 0.0
    %1326 = vmatpush1.msra.mxu0 0.0
    %1327 = vmatprep.subr.mxu0 0.0
    %1328 = vmatpush1.msra.mxu0 0.0
    %1329 = vmatprep.subr.mxu0 0.0
    %1330 = vmatpush1.msra.mxu0 0.0
    %1331 = vmatprep.subr.mxu0 0.0
    %1332 = vmatpush1.msra.mxu0 0.0
    %1333 = vmatprep.subr.mxu0 0.0
    %1334 = vmatpush1.msra.mxu0 0.0
    %1335 = vmatprep.subr.mxu0 0.0
    %1336 = vmatpush1.msra.mxu0 0.0
    %1337 = vmatprep.subr.mxu0 0.0
    %1338 = vmatpush1.msra.mxu0 0.0
    %1339 = vmatprep.subr.mxu0 0.0
    %1340 = vmatpush1.msra.mxu0 0.0
    %1341 = vmatprep.subr.mxu0 0.0
    %1342 = vmatpush1.msra.mxu0 0.0
    %1343 = vmatprep.subr.mxu0 0.0
    %1344 = vmatpush1.msra.mxu0 0.0
    %1345 = vmatprep.subr.mxu0 0.0
    %1346 = vmatpush1.msra.mxu0 0.0
    %1347 = vmatprep.subr.mxu0 0.0
    %1348 = vmatpush1.msra.mxu0 0.0
    %1349 = vmatprep.subr.mxu0 0.0
    %1350 = vmatpush1.msra.mxu0 0.0
    %1351 = vmatprep.subr.mxu0 0.0
    %1352 = vmatpush1.msra.mxu0 0.0
    %1353 = vmatprep.subr.mxu0 0.0
    %1354 = vmatpush1.msra.mxu0 0.0
    %1355 = vmatprep.subr.mxu0 0.0
    %1356 = vmatpush1.msra.mxu0 0.0
    %1357 = vmatprep.subr.mxu0 0.0
    %1358 = vmatpush1.msra.mxu0 0.0
    %1359 = vmatprep.subr.mxu0 0.0
    %1360 = vmatpush1.msra.mxu0 0.0
    %1361 = vmatprep.mubr.f32.mxu0 0.0
    %1362 = vmatmul.mubr.f32.gmra.mrb[0].mxu0 %v1295
    %v1363 = vpop.f32.mrb[0].mxu0
    %v1364 = vadd.f32 0.0, %v1363
    %v1365 = vpop.f32.mrb[0].mxu0
    %1366 = vdwg.mxu0
    %v1367 = vadd.f32 %v1292, %v1364
    %v1368 = vxor.u32 %v1367, 2147483648
    %v1369 = vmul.f32 %v1368, 1.442695
    %v1370 = vpow.pop %v1369
    %v1371 = vadd.f32 %v1370, 1.0
    %v1372 = vrcp.pop %v1371
    %v1373 = vmul.f32 1.0, %v1372
    %v1374 = vtanh.pop %v1367
    %1376 = vrot.lane.b32.xlu0 %v1281, 32
    %v1377 = vpop.permute.xlu0 %1376
    %v1379 = vmul.f32 %v1373, %v1377
    %1381 = vrot.lane.b32.xlu0 %v1374, 64
    %v1382 = vpop.permute.xlu0 %1381
    %v1384 = vmul.f32 %v1373, %v1382
    %1386 = vrot.lane.b32.xlu0 %v1384, 32
    %v1387 = vpop.permute.xlu0 %1386
    %v1389 = vadd.f32 %v1379, %v1387
    %v1390 = vtanh.pop %v1389
    %1392 = vrot.lane.b32.xlu0 %v1390, 64
    %v1393 = vpop.permute.xlu0 %1392
    %v1395 = vmul.f32 %v1373, %v1393
    %1397 = vrot.lane.b32.xlu0 %v1290, 32
    %v1398 = vpop.permute.xlu0 %1397
    %v1399 = vsel %vm336, %v1398, 0
    %1401 = vmatprep.subr.mxu0 0.0
    %1402 = vmatpush1.msra.mxu0 %v435
    %1403 = vmatprep.subr.mxu0 0.0
    %1404 = vmatpush1.msra.mxu0 %v436
    %1405 = vmatprep.subr.mxu0 0.0
    %1406 = vmatpush1.msra.mxu0 %v437
    %1407 = vmatprep.subr.mxu0 0.0
    %1408 = vmatpush1.msra.mxu0 %v438
    %1409 = vmatprep.subr.mxu0 0.0
    %1410 = vmatpush1.msra.mxu0 0.0
    %1411 = vmatprep.subr.mxu0 0.0
    %1412 = vmatpush1.msra.mxu0 0.0
    %1413 = vmatprep.subr.mxu0 0.0
    %1414 = vmatpush1.msra.mxu0 0.0
    %1415 = vmatprep.subr.mxu0 0.0
    %1416 = vmatpush1.msra.mxu0 0.0
    %1417 = vmatprep.subr.mxu0 0.0
    %1418 = vmatpush1.msra.mxu0 0.0
    %1419 = vmatprep.subr.mxu0 0.0
    %1420 = vmatpush1.msra.mxu0 0.0
    %1421 = vmatprep.subr.mxu0 0.0
    %1422 = vmatpush1.msra.mxu0 0.0
    %1423 = vmatprep.subr.mxu0 0.0
    %1424 = vmatpush1.msra.mxu0 0.0
    %1425 = vmatprep.subr.mxu0 0.0
    %1426 = vmatpush1.msra.mxu0 0.0
    %1427 = vmatprep.subr.mxu0 0.0
    %1428 = vmatpush1.msra.mxu0 0.0
    %1429 = vmatprep.subr.mxu0 0.0
    %1430 = vmatpush1.msra.mxu0 0.0
    %1431 = vmatprep.subr.mxu0 0.0
    %1432 = vmatpush1.msra.mxu0 0.0
    %1433 = vmatprep.subr.mxu0 0.0
    %1434 = vmatpush1.msra.mxu0 0.0
    %1435 = vmatprep.subr.mxu0 0.0
    %1436 = vmatpush1.msra.mxu0 0.0
    %1437 = vmatprep.subr.mxu0 0.0
    %1438 = vmatpush1.msra.mxu0 0.0
    %1439 = vmatprep.subr.mxu0 0.0
    %1440 = vmatpush1.msra.mxu0 0.0
    %1441 = vmatprep.subr.mxu0 0.0
    %1442 = vmatpush1.msra.mxu0 0.0
    %1443 = vmatprep.subr.mxu0 0.0
    %1444 = vmatpush1.msra.mxu0 0.0
    %1445 = vmatprep.subr.mxu0 0.0
    %1446 = vmatpush1.msra.mxu0 0.0
    %1447 = vmatprep.subr.mxu0 0.0
    %1448 = vmatpush1.msra.mxu0 0.0
    %1449 = vmatprep.subr.mxu0 0.0
    %1450 = vmatpush1.msra.mxu0 0.0
    %1451 = vmatprep.subr.mxu0 0.0
    %1452 = vmatpush1.msra.mxu0 0.0
    %1453 = vmatprep.subr.mxu0 0.0
    %1454 = vmatpush1.msra.mxu0 0.0
    %1455 = vmatprep.subr.mxu0 0.0
    %1456 = vmatpush1.msra.mxu0 0.0
    %1457 = vmatprep.subr.mxu0 0.0
    %1458 = vmatpush1.msra.mxu0 0.0
    %1459 = vmatprep.subr.mxu0 0.0
    %1460 = vmatpush1.msra.mxu0 0.0
    %1461 = vmatprep.subr.mxu0 0.0
    %1462 = vmatpush1.msra.mxu0 0.0
    %1463 = vmatprep.subr.mxu0 0.0
    %1464 = vmatpush1.msra.mxu0 0.0
    %1465 = vmatprep.mubr.f32.mxu0 0.0
    %1466 = vmatmul.mubr.f32.gmra.mrb[0].mxu0 %v1399
    %v1467 = vpop.f32.mrb[0].mxu0
    %v1468 = vadd.f32 0.0, %v1467
    %v1469 = vpop.f32.mrb[0].mxu0
    %1470 = vdwg.mxu0
    %v1472 = vrot.slane %v1468, 4
    %v1474 = vadd.f32 %v1293, %v1472
    %v1475 = vxor.u32 %v1474, 2147483648
    %v1476 = vmul.f32 %v1475, 1.442695
    %v1477 = vpow.pop %v1476
    %v1478 = vadd.f32 %v1477, 1.0
    %v1479 = vrcp.pop %v1478
    %v1480 = vmul.f32 1.0, %v1479
    %v1481 = vtanh.pop %v1474
    %v1483 = vrot.slane %v1291, 4
    %v1485 = vmul.f32 %v1480, %v1483
    %1487 = vrot.lane.b32.xlu0 %v1481, 64
    %v1488 = vpop.permute.xlu0 %1487
    %v1490 = vmul.f32 %v1480, %v1488
    %1492 = vrot.lane.b32.xlu0 %v1490, 32
    %v1493 = vpop.permute.xlu0 %1492
    %v1495 = vadd.f32 %v1485, %v1493
    %v1496 = vtanh.pop %v1495
    %1498 = vrot.lane.b32.xlu0 %v1496, 64
    %v1499 = vpop.permute.xlu0 %1498
    %v1501 = vmul.f32 %v1480, %v1499
    %1502 = vrot.lane.b32.xlu0 %v1272, 96
    %v1503 = vpop.permute.xlu0 %1502
    %v1505 = vsel %vm1286, %v1395, %v1503
    %v1506 = vsel %vm1286, %v1389, %v1377
    %v1508 = vrot.slane %v1501, 4
    %1509 = vrot.lane.b32.xlu0 %v1508, 32
    %v1510 = vpop.permute.xlu0 %1509
    %v1513 = vsel %vm1265, %v1510, %v1398
    %v1515 = vrot.slane %v1495, 4
    %1516 = vrot.lane.b32.xlu0 %v1515, 96
    %v1517 = vpop.permute.xlu0 %1516
    %1519 = vrot.lane.b32.xlu0 %v1291, 96
    %v1520 = vpop.permute.xlu0 %1519
    %v1522 = vsel %vm1265, %v1517, %v1520
    %v1523 = vld [vmem:[#allocation6 + $0x20] sm:$0xf0]
    %v1524 = vld [vmem:[#allocation6 + $0x18] sm:$0xf]
    %1526 = vrot.lane.b32.xlu0 %v1505, 32
    %v1527 = vpop.permute.xlu0 %1526
    %v1528 = vsel %vm336, %v1527, 0
    %1530 = vmatprep.subr.mxu0 0.0
    %1531 = vmatpush1.msra.mxu0 %v332
    %1532 = vmatprep.subr.mxu0 0.0
    %1533 = vmatpush1.msra.mxu0 %v333
    %1534 = vmatprep.subr.mxu0 0.0
    %1535 = vmatpush1.msra.mxu0 %v334
    %1536 = vmatprep.subr.mxu0 0.0
    %1537 = vmatpush1.msra.mxu0 %v335
    %1538 = vmatprep.subr.mxu0 0.0
    %1539 = vmatpush1.msra.mxu0 0.0
    %1540 = vmatprep.subr.mxu0 0.0
    %1541 = vmatpush1.msra.mxu0 0.0
    %1542 = vmatprep.subr.mxu0 0.0
    %1543 = vmatpush1.msra.mxu0 0.0
    %1544 = vmatprep.subr.mxu0 0.0
    %1545 = vmatpush1.msra.mxu0 0.0
    %1546 = vmatprep.subr.mxu0 0.0
    %1547 = vmatpush1.msra.mxu0 0.0
    %1548 = vmatprep.subr.mxu0 0.0
    %1549 = vmatpush1.msra.mxu0 0.0
    %1550 = vmatprep.subr.mxu0 0.0
    %1551 = vmatpush1.msra.mxu0 0.0
    %1552 = vmatprep.subr.mxu0 0.0
    %1553 = vmatpush1.msra.mxu0 0.0
    %1554 = vmatprep.subr.mxu0 0.0
    %1555 = vmatpush1.msra.mxu0 0.0
    %1556 = vmatprep.subr.mxu0 0.0
    %1557 = vmatpush1.msra.mxu0 0.0
    %1558 = vmatprep.subr.mxu0 0.0
    %1559 = vmatpush1.msra.mxu0 0.0
    %1560 = vmatprep.subr.mxu0 0.0
    %1561 = vmatpush1.msra.mxu0 0.0
    %1562 = vmatprep.subr.mxu0 0.0
    %1563 = vmatpush1.msra.mxu0 0.0
    %1564 = vmatprep.subr.mxu0 0.0
    %1565 = vmatpush1.msra.mxu0 0.0
    %1566 = vmatprep.subr.mxu0 0.0
    %1567 = vmatpush1.msra.mxu0 0.0
    %1568 = vmatprep.subr.mxu0 0.0
    %1569 = vmatpush1.msra.mxu0 0.0
    %1570 = vmatprep.subr.mxu0 0.0
    %1571 = vmatpush1.msra.mxu0 0.0
    %1572 = vmatprep.subr.mxu0 0.0
    %1573 = vmatpush1.msra.mxu0 0.0
    %1574 = vmatprep.subr.mxu0 0.0
    %1575 = vmatpush1.msra.mxu0 0.0
    %1576 = vmatprep.subr.mxu0 0.0
    %1577 = vmatpush1.msra.mxu0 0.0
    %1578 = vmatprep.subr.mxu0 0.0
    %1579 = vmatpush1.msra.mxu0 0.0
    %1580 = vmatprep.subr.mxu0 0.0
    %1581 = vmatpush1.msra.mxu0 0.0
    %1582 = vmatprep.subr.mxu0 0.0
    %1583 = vmatpush1.msra.mxu0 0.0
    %1584 = vmatprep.subr.mxu0 0.0
    %1585 = vmatpush1.msra.mxu0 0.0
    %1586 = vmatprep.subr.mxu0 0.0
    %1587 = vmatpush1.msra.mxu0 0.0
    %1588 = vmatprep.subr.mxu0 0.0
    %1589 = vmatpush1.msra.mxu0 0.0
    %1590 = vmatprep.subr.mxu0 0.0
    %1591 = vmatpush1.msra.mxu0 0.0
    %1592 = vmatprep.subr.mxu0 0.0
    %1593 = vmatpush1.msra.mxu0 0.0
    %1594 = vmatprep.mubr.f32.mxu0 0.0
    %1595 = vmatmul.mubr.f32.gmra.mrb[0].mxu0 %v1528
    %v1596 = vpop.f32.mrb[0].mxu0
    %v1597 = vadd.f32 0.0, %v1596
    %v1598 = vpop.f32.mrb[0].mxu0
    %1599 = vdwg.mxu0
    %v1601 = vrot.slane %v1597, 4
    %v1603 = vadd.f32 %v1523, %v1601
    %v1604 = vxor.u32 %v1603, 2147483648
    %v1605 = vmul.f32 %v1604, 1.442695
    %v1606 = vpow.pop %v1605
    %v1607 = vadd.f32 %v1606, 1.0
    %v1608 = vrcp.pop %v1607
    %v1609 = vmul.f32 1.0, %v1608
    %v1610 = vtanh.pop %v1603
    %v1612 = vrot.slane %v1506, 4
    %v1614 = vmul.f32 %v1609, %v1612
    %1616 = vrot.lane.b32.xlu0 %v1610, 64
    %v1617 = vpop.permute.xlu0 %1616
    %v1619 = vmul.f32 %v1609, %v1617
    %1621 = vrot.lane.b32.xlu0 %v1619, 32
    %v1622 = vpop.permute.xlu0 %1621
    %v1624 = vadd.f32 %v1614, %v1622
    %v1625 = vtanh.pop %v1624
    %1627 = vrot.lane.b32.xlu0 %v1625, 64
    %v1628 = vpop.permute.xlu0 %1627
    %v1630 = vmul.f32 %v1609, %v1628
    %v1632 = vsel %vm336, %v1513, 0
    %1634 = vmatprep.subr.mxu0 0.0
    %1635 = vmatpush1.msra.mxu0 %v435
    %1636 = vmatprep.subr.mxu0 0.0
    %1637 = vmatpush1.msra.mxu0 %v436
    %1638 = vmatprep.subr.mxu0 0.0
    %1639 = vmatpush1.msra.mxu0 %v437
    %1640 = vmatprep.subr.mxu0 0.0
    %1641 = vmatpush1.msra.mxu0 %v438
    %1642 = vmatprep.subr.mxu0 0.0
    %1643 = vmatpush1.msra.mxu0 0.0
    %1644 = vmatprep.subr.mxu0 0.0
    %1645 = vmatpush1.msra.mxu0 0.0
    %1646 = vmatprep.subr.mxu0 0.0
    %1647 = vmatpush1.msra.mxu0 0.0
    %1648 = vmatprep.subr.mxu0 0.0
    %1649 = vmatpush1.msra.mxu0 0.0
    %1650 = vmatprep.subr.mxu0 0.0
    %1651 = vmatpush1.msra.mxu0 0.0
    %1652 = vmatprep.subr.mxu0 0.0
    %1653 = vmatpush1.msra.mxu0 0.0
    %1654 = vmatprep.subr.mxu0 0.0
    %1655 = vmatpush1.msra.mxu0 0.0
    %1656 = vmatprep.subr.mxu0 0.0
    %1657 = vmatpush1.msra.mxu0 0.0
    %1658 = vmatprep.subr.mxu0 0.0
    %1659 = vmatpush1.msra.mxu0 0.0
    %1660 = vmatprep.subr.mxu0 0.0
    %1661 = vmatpush1.msra.mxu0 0.0
    %1662 = vmatprep.subr.mxu0 0.0
    %1663 = vmatpush1.msra.mxu0 0.0
    %1664 = vmatprep.subr.mxu0 0.0
    %1665 = vmatpush1.msra.mxu0 0.0
    %1666 = vmatprep.subr.mxu0 0.0
    %1667 = vmatpush1.msra.mxu0 0.0
    %1668 = vmatprep.subr.mxu0 0.0
    %1669 = vmatpush1.msra.mxu0 0.0
    %1670 = vmatprep.subr.mxu0 0.0
    %1671 = vmatpush1.msra.mxu0 0.0
    %1672 = vmatprep.subr.mxu0 0.0
    %1673 = vmatpush1.msra.mxu0 0.0
    %1674 = vmatprep.subr.mxu0 0.0
    %1675 = vmatpush1.msra.mxu0 0.0
    %1676 = vmatprep.subr.mxu0 0.0
    %1677 = vmatpush1.msra.mxu0 0.0
    %1678 = vmatprep.subr.mxu0 0.0
    %1679 = vmatpush1.msra.mxu0 0.0
    %1680 = vmatprep.subr.mxu0 0.0
    %1681 = vmatpush1.msra.mxu0 0.0
    %1682 = vmatprep.subr.mxu0 0.0
    %1683 = vmatpush1.msra.mxu0 0.0
    %1684 = vmatprep.subr.mxu0 0.0
    %1685 = vmatpush1.msra.mxu0 0.0
    %1686 = vmatprep.subr.mxu0 0.0
    %1687 = vmatpush1.msra.mxu0 0.0
    %1688 = vmatprep.subr.mxu0 0.0
    %1689 = vmatpush1.msra.mxu0 0.0
    %1690 = vmatprep.subr.mxu0 0.0
    %1691 = vmatpush1.msra.mxu0 0.0
    %1692 = vmatprep.subr.mxu0 0.0
    %1693 = vmatpush1.msra.mxu0 0.0
    %1694 = vmatprep.subr.mxu0 0.0
    %1695 = vmatpush1.msra.mxu0 0.0
    %1696 = vmatprep.subr.mxu0 0.0
    %1697 = vmatpush1.msra.mxu0 0.0
    %1698 = vmatprep.mubr.f32.mxu0 0.0
    %1699 = vmatmul.mubr.f32.gmra.mrb[0].mxu0 %v1632
    %v1700 = vpop.f32.mrb[0].mxu0
    %v1701 = vadd.f32 0.0, %v1700
    %v1702 = vpop.f32.mrb[0].mxu0
    %1703 = vdwg.mxu0
    %v1704 = vadd.f32 %v1524, %v1701
    %v1705 = vxor.u32 %v1704, 2147483648
    %v1706 = vmul.f32 %v1705, 1.442695
    %v1707 = vpow.pop %v1706
    %v1708 = vadd.f32 %v1707, 1.0
    %v1709 = vrcp.pop %v1708
    %v1710 = vmul.f32 1.0, %v1709
    %v1711 = vtanh.pop %v1704
    %1713 = vrot.lane.b32.xlu0 %v1522, 32
    %v1714 = vpop.permute.xlu0 %1713
    %v1716 = vmul.f32 %v1710, %v1714
    %1718 = vrot.lane.b32.xlu0 %v1711, 64
    %v1719 = vpop.permute.xlu0 %1718
    %v1721 = vmul.f32 %v1710, %v1719
    %1723 = vrot.lane.b32.xlu0 %v1721, 32
    %v1724 = vpop.permute.xlu0 %1723
    %v1726 = vadd.f32 %v1716, %v1724
    %v1727 = vtanh.pop %v1726
    %1729 = vrot.lane.b32.xlu0 %v1727, 64
    %v1730 = vpop.permute.xlu0 %1729
    %v1732 = vmul.f32 %v1710, %v1730
    %v1734 = vrot.slane %v1630, 4
    %1735 = vrot.lane.b32.xlu0 %v1734, 32
    %v1736 = vpop.permute.xlu0 %1735
    %v1739 = vsel %vm1032, %v1736, %v1527
    %v1741 = vrot.slane %v1624, 4
    %1742 = vrot.lane.b32.xlu0 %v1741, 96
    %v1743 = vpop.permute.xlu0 %1742
    %1745 = vrot.lane.b32.xlu0 %v1506, 96
    %v1746 = vpop.permute.xlu0 %1745
    %v1748 = vsel %vm1032, %v1743, %v1746
    %1749 = vrot.lane.b32.xlu0 %v1513, 96
    %v1750 = vpop.permute.xlu0 %1749
    %v1752 = vsel %vm1022, %v1732, %v1750
    %v1753 = vsel %vm1022, %v1726, %v1714
    %v1754 = vld [vmem:[#allocation6 + $0x30] sm:$0xf]
    %v1755 = vld [vmem:[#allocation6 + $0x8] sm:$0xf0]
    %v1757 = vsel %vm336, %v1739, 0
    %1759 = vmatprep.subr.mxu0 0.0
    %1760 = vmatpush1.msra.mxu0 %v332
    %1761 = vmatprep.subr.mxu0 0.0
    %1762 = vmatpush1.msra.mxu0 %v333
    %1763 = vmatprep.subr.mxu0 0.0
    %1764 = vmatpush1.msra.mxu0 %v334
    %1765 = vmatprep.subr.mxu0 0.0
    %1766 = vmatpush1.msra.mxu0 %v335
    %1767 = vmatprep.subr.mxu0 0.0
    %1768 = vmatpush1.msra.mxu0 0.0
    %1769 = vmatprep.subr.mxu0 0.0
    %1770 = vmatpush1.msra.mxu0 0.0
    %1771 = vmatprep.subr.mxu0 0.0
    %1772 = vmatpush1.msra.mxu0 0.0
    %1773 = vmatprep.subr.mxu0 0.0
    %1774 = vmatpush1.msra.mxu0 0.0
    %1775 = vmatprep.subr.mxu0 0.0
    %1776 = vmatpush1.msra.mxu0 0.0
    %1777 = vmatprep.subr.mxu0 0.0
    %1778 = vmatpush1.msra.mxu0 0.0
    %1779 = vmatprep.subr.mxu0 0.0
    %1780 = vmatpush1.msra.mxu0 0.0
    %1781 = vmatprep.subr.mxu0 0.0
    %1782 = vmatpush1.msra.mxu0 0.0
    %1783 = vmatprep.subr.mxu0 0.0
    %1784 = vmatpush1.msra.mxu0 0.0
    %1785 = vmatprep.subr.mxu0 0.0
    %1786 = vmatpush1.msra.mxu0 0.0
    %1787 = vmatprep.subr.mxu0 0.0
    %1788 = vmatpush1.msra.mxu0 0.0
    %1789 = vmatprep.subr.mxu0 0.0
    %1790 = vmatpush1.msra.mxu0 0.0
    %1791 = vmatprep.subr.mxu0 0.0
    %1792 = vmatpush1.msra.mxu0 0.0
    %1793 = vmatprep.subr.mxu0 0.0
    %1794 = vmatpush1.msra.mxu0 0.0
    %1795 = vmatprep.subr.mxu0 0.0
    %1796 = vmatpush1.msra.mxu0 0.0
    %1797 = vmatprep.subr.mxu0 0.0
    %1798 = vmatpush1.msra.mxu0 0.0
    %1799 = vmatprep.subr.mxu0 0.0
    %1800 = vmatpush1.msra.mxu0 0.0
    %1801 = vmatprep.subr.mxu0 0.0
    %1802 = vmatpush1.msra.mxu0 0.0
    %1803 = vmatprep.subr.mxu0 0.0
    %1804 = vmatpush1.msra.mxu0 0.0
    %1805 = vmatprep.subr.mxu0 0.0
    %1806 = vmatpush1.msra.mxu0 0.0
    %1807 = vmatprep.subr.mxu0 0.0
    %1808 = vmatpush1.msra.mxu0 0.0
    %1809 = vmatprep.subr.mxu0 0.0
    %1810 = vmatpush1.msra.mxu0 0.0
    %1811 = vmatprep.subr.mxu0 0.0
    %1812 = vmatpush1.msra.mxu0 0.0
    %1813 = vmatprep.subr.mxu0 0.0
    %1814 = vmatpush1.msra.mxu0 0.0
    %1815 = vmatprep.subr.mxu0 0.0
    %1816 = vmatpush1.msra.mxu0 0.0
    %1817 = vmatprep.subr.mxu0 0.0
    %1818 = vmatpush1.msra.mxu0 0.0
    %1819 = vmatprep.subr.mxu0 0.0
    %1820 = vmatpush1.msra.mxu0 0.0
    %1821 = vmatprep.subr.mxu0 0.0
    %1822 = vmatpush1.msra.mxu0 0.0
    %1823 = vmatprep.mubr.f32.mxu0 0.0
    %1824 = vmatmul.mubr.f32.gmra.mrb[0].mxu0 %v1757
    %v1825 = vpop.f32.mrb[0].mxu0
    %v1826 = vadd.f32 0.0, %v1825
    %v1827 = vpop.f32.mrb[0].mxu0
    %1828 = vdwg.mxu0
    %v1829 = vadd.f32 %v1754, %v1826
    %v1830 = vxor.u32 %v1829, 2147483648
    %v1831 = vmul.f32 %v1830, 1.442695
    %v1832 = vpow.pop %v1831
    %v1833 = vadd.f32 %v1832, 1.0
    %v1834 = vrcp.pop %v1833
    %v1835 = vmul.f32 1.0, %v1834
    %v1836 = vtanh.pop %v1829
    %1838 = vrot.lane.b32.xlu0 %v1748, 32
    %v1839 = vpop.permute.xlu0 %1838
    %v1841 = vmul.f32 %v1835, %v1839
    %1843 = vrot.lane.b32.xlu0 %v1836, 64
    %v1844 = vpop.permute.xlu0 %1843
    %v1846 = vmul.f32 %v1835, %v1844
    %1848 = vrot.lane.b32.xlu0 %v1846, 32
    %v1849 = vpop.permute.xlu0 %1848
    %v1851 = vadd.f32 %v1841, %v1849
    %v1852 = vtanh.pop %v1851
    %1854 = vrot.lane.b32.xlu0 %v1852, 64
    %v1855 = vpop.permute.xlu0 %1854
    %v1857 = vmul.f32 %v1835, %v1855
    %1859 = vrot.lane.b32.xlu0 %v1752, 32
    %v1860 = vpop.permute.xlu0 %1859
    %v1861 = vsel %vm336, %v1860, 0
    %1863 = vmatprep.subr.mxu0 0.0
    %1864 = vmatpush1.msra.mxu0 %v435
    %1865 = vmatprep.subr.mxu0 0.0
    %1866 = vmatpush1.msra.mxu0 %v436
    %1867 = vmatprep.subr.mxu0 0.0
    %1868 = vmatpush1.msra.mxu0 %v437
    %1869 = vmatprep.subr.mxu0 0.0
    %1870 = vmatpush1.msra.mxu0 %v438
    %1871 = vmatprep.subr.mxu0 0.0
    %1872 = vmatpush1.msra.mxu0 0.0
    %1873 = vmatprep.subr.mxu0 0.0
    %1874 = vmatpush1.msra.mxu0 0.0
    %1875 = vmatprep.subr.mxu0 0.0
    %1876 = vmatpush1.msra.mxu0 0.0
    %1877 = vmatprep.subr.mxu0 0.0
    %1878 = vmatpush1.msra.mxu0 0.0
    %1879 = vmatprep.subr.mxu0 0.0
    %1880 = vmatpush1.msra.mxu0 0.0
    %1881 = vmatprep.subr.mxu0 0.0
    %1882 = vmatpush1.msra.mxu0 0.0
    %1883 = vmatprep.subr.mxu0 0.0
    %1884 = vmatpush1.msra.mxu0 0.0
    %1885 = vmatprep.subr.mxu0 0.0
    %1886 = vmatpush1.msra.mxu0 0.0
    %1887 = vmatprep.subr.mxu0 0.0
    %1888 = vmatpush1.msra.mxu0 0.0
    %1889 = vmatprep.subr.mxu0 0.0
    %1890 = vmatpush1.msra.mxu0 0.0
    %1891 = vmatprep.subr.mxu0 0.0
    %1892 = vmatpush1.msra.mxu0 0.0
    %1893 = vmatprep.subr.mxu0 0.0
    %1894 = vmatpush1.msra.mxu0 0.0
    %1895 = vmatprep.subr.mxu0 0.0
    %1896 = vmatpush1.msra.mxu0 0.0
    %1897 = vmatprep.subr.mxu0 0.0
    %1898 = vmatpush1.msra.mxu0 0.0
    %1899 = vmatprep.subr.mxu0 0.0
    %1900 = vmatpush1.msra.mxu0 0.0
    %1901 = vmatprep.subr.mxu0 0.0
    %1902 = vmatpush1.msra.mxu0 0.0
    %1903 = vmatprep.subr.mxu0 0.0
    %1904 = vmatpush1.msra.mxu0 0.0
    %1905 = vmatprep.subr.mxu0 0.0
    %1906 = vmatpush1.msra.mxu0 0.0
    %1907 = vmatprep.subr.mxu0 0.0
    %1908 = vmatpush1.msra.mxu0 0.0
    %1909 = vmatprep.subr.mxu0 0.0
    %1910 = vmatpush1.msra.mxu0 0.0
    %1911 = vmatprep.subr.mxu0 0.0
    %1912 = vmatpush1.msra.mxu0 0.0
    %1913 = vmatprep.subr.mxu0 0.0
    %1914 = vmatpush1.msra.mxu0 0.0
    %1915 = vmatprep.subr.mxu0 0.0
    %1916 = vmatpush1.msra.mxu0 0.0
    %1917 = vmatprep.subr.mxu0 0.0
    %1918 = vmatpush1.msra.mxu0 0.0
    %1919 = vmatprep.subr.mxu0 0.0
    %1920 = vmatpush1.msra.mxu0 0.0
    %1921 = vmatprep.subr.mxu0 0.0
    %1922 = vmatpush1.msra.mxu0 0.0
    %1923 = vmatprep.subr.mxu0 0.0
    %1924 = vmatpush1.msra.mxu0 0.0
    %1925 = vmatprep.subr.mxu0 0.0
    %1926 = vmatpush1.msra.mxu0 0.0
    %1927 = vmatprep.mubr.f32.mxu0 0.0
    %1928 = vmatmul.mubr.f32.gmra.mrb[0].mxu0 %v1861
    %v1929 = vpop.f32.mrb[0].mxu0
    %v1930 = vadd.f32 0.0, %v1929
    %v1931 = vpop.f32.mrb[0].mxu0
    %1932 = vdwg.mxu0
    %v1934 = vrot.slane %v1930, 4
    %v1936 = vadd.f32 %v1755, %v1934
    %v1937 = vxor.u32 %v1936, 2147483648
    %v1938 = vmul.f32 %v1937, 1.442695
    %v1939 = vpow.pop %v1938
    %v1940 = vadd.f32 %v1939, 1.0
    %v1941 = vrcp.pop %v1940
    %v1942 = vmul.f32 1.0, %v1941
    %v1943 = vtanh.pop %v1936
    %v1945 = vrot.slane %v1753, 4
    %v1947 = vmul.f32 %v1942, %v1945
    %1949 = vrot.lane.b32.xlu0 %v1943, 64
    %v1950 = vpop.permute.xlu0 %1949
    %v1952 = vmul.f32 %v1942, %v1950
    %1954 = vrot.lane.b32.xlu0 %v1952, 32
    %v1955 = vpop.permute.xlu0 %1954
    %v1957 = vadd.f32 %v1947, %v1955
    %v1958 = vtanh.pop %v1957
    %1960 = vrot.lane.b32.xlu0 %v1958, 64
    %v1961 = vpop.permute.xlu0 %1960
    %v1963 = vmul.f32 %v1942, %v1961
    %1964 = vrot.lane.b32.xlu0 %v1739, 96
    %v1965 = vpop.permute.xlu0 %1964
    %v1967 = vsel %vm800, %v1857, %v1965
    %v1968 = vsel %vm800, %v1851, %v1839
    %v1970 = vrot.slane %v1963, 4
    %1971 = vrot.lane.b32.xlu0 %v1970, 32
    %v1972 = vpop.permute.xlu0 %1971
    %v1975 = vsel %vm779, %v1972, %v1860
    %v1977 = vrot.slane %v1957, 4
    %1978 = vrot.lane.b32.xlu0 %v1977, 96
    %v1979 = vpop.permute.xlu0 %1978
    %1981 = vrot.lane.b32.xlu0 %v1753, 96
    %v1982 = vpop.permute.xlu0 %1981
    %v1984 = vsel %vm779, %v1979, %v1982
    %v1985 = vld [vmem:[#allocation6 + $0x30] sm:$0xf0]
    %v1986 = vld [vmem:[#allocation6 + $0x8] sm:$0xf]
    %1988 = vrot.lane.b32.xlu0 %v1967, 32
    %v1989 = vpop.permute.xlu0 %1988
    %v1990 = vsel %vm336, %v1989, 0
    %1992 = vmatprep.subr.mxu0 0.0
    %1993 = vmatpush1.msra.mxu0 %v332
    %1994 = vmatprep.subr.mxu0 0.0
    %1995 = vmatpush1.msra.mxu0 %v333
    %1996 = vmatprep.subr.mxu0 0.0
    %1997 = vmatpush1.msra.mxu0 %v334
    %1998 = vmatprep.subr.mxu0 0.0
    %1999 = vmatpush1.msra.mxu0 %v335
    %2000 = vmatprep.subr.mxu0 0.0
    %2001 = vmatpush1.msra.mxu0 0.0
    %2002 = vmatprep.subr.mxu0 0.0
    %2003 = vmatpush1.msra.mxu0 0.0
    %2004 = vmatprep.subr.mxu0 0.0
    %2005 = vmatpush1.msra.mxu0 0.0
    %2006 = vmatprep.subr.mxu0 0.0
    %2007 = vmatpush1.msra.mxu0 0.0
    %2008 = vmatprep.subr.mxu0 0.0
    %2009 = vmatpush1.msra.mxu0 0.0
    %2010 = vmatprep.subr.mxu0 0.0
    %2011 = vmatpush1.msra.mxu0 0.0
    %2012 = vmatprep.subr.mxu0 0.0
    %2013 = vmatpush1.msra.mxu0 0.0
    %2014 = vmatprep.subr.mxu0 0.0
    %2015 = vmatpush1.msra.mxu0 0.0
    %2016 = vmatprep.subr.mxu0 0.0
    %2017 = vmatpush1.msra.mxu0 0.0
    %2018 = vmatprep.subr.mxu0 0.0
    %2019 = vmatpush1.msra.mxu0 0.0
    %2020 = vmatprep.subr.mxu0 0.0
    %2021 = vmatpush1.msra.mxu0 0.0
    %2022 = vmatprep.subr.mxu0 0.0
    %2023 = vmatpush1.msra.mxu0 0.0
    %2024 = vmatprep.subr.mxu0 0.0
    %2025 = vmatpush1.msra.mxu0 0.0
    %2026 = vmatprep.subr.mxu0 0.0
    %2027 = vmatpush1.msra.mxu0 0.0
    %2028 = vmatprep.subr.mxu0 0.0
    %2029 = vmatpush1.msra.mxu0 0.0
    %2030 = vmatprep.subr.mxu0 0.0
    %2031 = vmatpush1.msra.mxu0 0.0
    %2032 = vmatprep.subr.mxu0 0.0
    %2033 = vmatpush1.msra.mxu0 0.0
    %2034 = vmatprep.subr.mxu0 0.0
    %2035 = vmatpush1.msra.mxu0 0.0
    %2036 = vmatprep.subr.mxu0 0.0
    %2037 = vmatpush1.msra.mxu0 0.0
    %2038 = vmatprep.subr.mxu0 0.0
    %2039 = vmatpush1.msra.mxu0 0.0
    %2040 = vmatprep.subr.mxu0 0.0
    %2041 = vmatpush1.msra.mxu0 0.0
    %2042 = vmatprep.subr.mxu0 0.0
    %2043 = vmatpush1.msra.mxu0 0.0
    %2044 = vmatprep.subr.mxu0 0.0
    %2045 = vmatpush1.msra.mxu0 0.0
    %2046 = vmatprep.subr.mxu0 0.0
    %2047 = vmatpush1.msra.mxu0 0.0
    %2048 = vmatprep.subr.mxu0 0.0
    %2049 = vmatpush1.msra.mxu0 0.0
    %2050 = vmatprep.subr.mxu0 0.0
    %2051 = vmatpush1.msra.mxu0 0.0
    %2052 = vmatprep.subr.mxu0 0.0
    %2053 = vmatpush1.msra.mxu0 0.0
    %2054 = vmatprep.subr.mxu0 0.0
    %2055 = vmatpush1.msra.mxu0 0.0
    %2056 = vmatprep.mubr.f32.mxu0 0.0
    %2057 = vmatmul.mubr.f32.gmra.mrb[0].mxu0 %v1990
    %v2058 = vpop.f32.mrb[0].mxu0
    %v2059 = vadd.f32 0.0, %v2058
    %v2060 = vpop.f32.mrb[0].mxu0
    %2061 = vdwg.mxu0
    %v2063 = vrot.slane %v2059, 4
    %v2065 = vadd.f32 %v1985, %v2063
    %v2066 = vxor.u32 %v2065, 2147483648
    %v2067 = vmul.f32 %v2066, 1.442695
    %v2068 = vpow.pop %v2067
    %v2069 = vadd.f32 %v2068, 1.0
    %v2070 = vrcp.pop %v2069
    %v2071 = vmul.f32 1.0, %v2070
    %v2072 = vtanh.pop %v2065
    %v2074 = vrot.slane %v1968, 4
    %v2076 = vmul.f32 %v2071, %v2074
    %2078 = vrot.lane.b32.xlu0 %v2072, 64
    %v2079 = vpop.permute.xlu0 %2078
    %v2081 = vmul.f32 %v2071, %v2079
    %2083 = vrot.lane.b32.xlu0 %v2081, 32
    %v2084 = vpop.permute.xlu0 %2083
    %v2086 = vadd.f32 %v2076, %v2084
    %v2087 = vtanh.pop %v2086
    %2089 = vrot.lane.b32.xlu0 %v2087, 64
    %v2090 = vpop.permute.xlu0 %2089
    %v2092 = vmul.f32 %v2071, %v2090
    %v2094 = vsel %vm336, %v1975, 0
    %2096 = vmatprep.subr.mxu0 0.0
    %2097 = vmatpush1.msra.mxu0 %v435
    %2098 = vmatprep.subr.mxu0 0.0
    %2099 = vmatpush1.msra.mxu0 %v436
    %2100 = vmatprep.subr.mxu0 0.0
    %2101 = vmatpush1.msra.mxu0 %v437
    %2102 = vmatprep.subr.mxu0 0.0
    %2103 = vmatpush1.msra.mxu0 %v438
    %2104 = vmatprep.subr.mxu0 0.0
    %2105 = vmatpush1.msra.mxu0 0.0
    %2106 = vmatprep.subr.mxu0 0.0
    %2107 = vmatpush1.msra.mxu0 0.0
    %2108 = vmatprep.subr.mxu0 0.0
    %2109 = vmatpush1.msra.mxu0 0.0
    %2110 = vmatprep.subr.mxu0 0.0
    %2111 = vmatpush1.msra.mxu0 0.0
    %2112 = vmatprep.subr.mxu0 0.0
    %2113 = vmatpush1.msra.mxu0 0.0
    %2114 = vmatprep.subr.mxu0 0.0
    %2115 = vmatpush1.msra.mxu0 0.0
    %2116 = vmatprep.subr.mxu0 0.0
    %2117 = vmatpush1.msra.mxu0 0.0
    %2118 = vmatprep.subr.mxu0 0.0
    %2119 = vmatpush1.msra.mxu0 0.0
    %2120 = vmatprep.subr.mxu0 0.0
    %2121 = vmatpush1.msra.mxu0 0.0
    %2122 = vmatprep.subr.mxu0 0.0
    %2123 = vmatpush1.msra.mxu0 0.0
    %2124 = vmatprep.subr.mxu0 0.0
    %2125 = vmatpush1.msra.mxu0 0.0
    %2126 = vmatprep.subr.mxu0 0.0
    %2127 = vmatpush1.msra.mxu0 0.0
    %2128 = vmatprep.subr.mxu0 0.0
    %2129 = vmatpush1.msra.mxu0 0.0
    %2130 = vmatprep.subr.mxu0 0.0
    %2131 = vmatpush1.msra.mxu0 0.0
    %2132 = vmatprep.subr.mxu0 0.0
    %2133 = vmatpush1.msra.mxu0 0.0
    %2134 = vmatprep.subr.mxu0 0.0
    %2135 = vmatpush1.msra.mxu0 0.0
    %2136 = vmatprep.subr.mxu0 0.0
    %2137 = vmatpush1.msra.mxu0 0.0
    %2138 = vmatprep.subr.mxu0 0.0
    %2139 = vmatpush1.msra.mxu0 0.0
    %2140 = vmatprep.subr.mxu0 0.0
    %2141 = vmatpush1.msra.mxu0 0.0
    %2142 = vmatprep.subr.mxu0 0.0
    %2143 = vmatpush1.msra.mxu0 0.0
    %2144 = vmatprep.subr.mxu0 0.0
    %2145 = vmatpush1.msra.mxu0 0.0
    %2146 = vmatprep.subr.mxu0 0.0
    %2147 = vmatpush1.msra.mxu0 0.0
    %2148 = vmatprep.subr.mxu0 0.0
    %2149 = vmatpush1.msra.mxu0 0.0
    %2150 = vmatprep.subr.mxu0 0.0
    %2151 = vmatpush1.msra.mxu0 0.0
    %2152 = vmatprep.subr.mxu0 0.0
    %2153 = vmatpush1.msra.mxu0 0.0
    %2154 = vmatprep.subr.mxu0 0.0
    %2155 = vmatpush1.msra.mxu0 0.0
    %2156 = vmatprep.subr.mxu0 0.0
    %2157 = vmatpush1.msra.mxu0 0.0
    %2158 = vmatprep.subr.mxu0 0.0
    %2159 = vmatpush1.msra.mxu0 0.0
    %2160 = vmatprep.mubr.f32.mxu0 0.0
    %2161 = vmatmul.mubr.f32.gmra.mrb[0].mxu0 %v2094
    %v2162 = vpop.f32.mrb[0].mxu0
    %v2163 = vadd.f32 0.0, %v2162
    %v2164 = vpop.f32.mrb[0].mxu0
    %2165 = vdwg.mxu0
    %v2166 = vadd.f32 %v1986, %v2163
    %v2167 = vxor.u32 %v2166, 2147483648
    %v2168 = vmul.f32 %v2167, 1.442695
    %v2169 = vpow.pop %v2168
    %v2170 = vadd.f32 %v2169, 1.0
    %v2171 = vrcp.pop %v2170
    %v2172 = vmul.f32 1.0, %v2171
    %v2173 = vtanh.pop %v2166
    %2175 = vrot.lane.b32.xlu0 %v1984, 32
    %v2176 = vpop.permute.xlu0 %2175
    %v2178 = vmul.f32 %v2172, %v2176
    %2180 = vrot.lane.b32.xlu0 %v2173, 64
    %v2181 = vpop.permute.xlu0 %2180
    %v2183 = vmul.f32 %v2172, %v2181
    %2185 = vrot.lane.b32.xlu0 %v2183, 32
    %v2186 = vpop.permute.xlu0 %2185
    %v2188 = vadd.f32 %v2178, %v2186
    %v2189 = vtanh.pop %v2188
    %2191 = vrot.lane.b32.xlu0 %v2189, 64
    %v2192 = vpop.permute.xlu0 %2191
    %v2194 = vmul.f32 %v2172, %v2192
    %v2196 = vrot.slane %v2092, 4
    %2197 = vrot.lane.b32.xlu0 %v2196, 32
    %v2198 = vpop.permute.xlu0 %2197
    %v2201 = vsel %vm550, %v2198, %v1989
    %2202 = vrot.lane.b32.xlu0 %v1975, 96
    %v2203 = vpop.permute.xlu0 %2202
    %v2205 = vsel %vm543, %v2194, %v2203
    %v2206 = vpack.c.bf16 %v2201, %v2201
    %v2207 = vld [vmem:[%s6] sm:$0xff]
    %v2208 = vld [vmem:[%s6 + $0x8] sm:$0xff]
    %v2209 = vld [vmem:[%s6 + $0x10] sm:$0xff]
    %v2210 = vld [vmem:[%s6 + $0x18] sm:$0xff]
    %v2211 = vpack.c.bf16 %v2205, %v2205
    %v2212 = vld [vmem:[%s7] sm:$0xff]
    %v2213 = vld [vmem:[%s7 + $0x8] sm:$0xff]
    %v2214 = vld [vmem:[%s7 + $0x10] sm:$0xff]
    %v2215 = vld [vmem:[%s7 + $0x18] sm:$0xff]
    %2217 = vrot.lane.b32.xlu0 %v2211, 32
    %v2218 = vpop.permute.xlu0 %2217
    %v2223 = vunpack.c.l.b16 %v2212
    %v2224 = vunpack.c.h.b16 %v2212
    %v2225 = vunpack.c.l.b16 %v2213
    %v2226 = vunpack.c.h.b16 %v2213
    %v2227 = vunpack.c.l.b16 %v2214
    %v2228 = vunpack.c.h.b16 %v2214
    %v2229 = vunpack.c.l.b16 %v2215
    %v2230 = vunpack.c.h.b16 %v2215
    %v2231 = vpack.c.b16 %v2225, %v2223
    %v2232 = vpack.c.b16 %v2226, %v2224
    %v2233 = vpack.c.b16 %v2229, %v2227
    %v2234 = vpack.c.b16 %v2230, %v2228
    %v2240 = vsel %vm336, %v2218, 0
    %2242 = vmatprep.subr.bf16.mxu0 %v2232
    %2243 = vmatpush1.bf16.msra.mxu0 %v2231
    %2244 = vmatprep.subr.bf16.mxu0 %v2234
    %2245 = vmatpush1.bf16.msra.mxu0 %v2233
    %2246 = vmatprep.subr.bf16.mxu0 0
    %2247 = vmatpush1.bf16.msra.mxu0 0
    %2248 = vmatprep.subr.bf16.mxu0 0
    %2249 = vmatpush1.bf16.msra.mxu0 0
    %2250 = vmatprep.subr.bf16.mxu0 0
    %2251 = vmatpush1.bf16.msra.mxu0 0
    %2252 = vmatprep.subr.bf16.mxu0 0
    %2253 = vmatpush1.bf16.msra.mxu0 0
    %2254 = vmatprep.subr.bf16.mxu0 0
    %2255 = vmatpush1.bf16.msra.mxu0 0
    %2256 = vmatprep.subr.bf16.mxu0 0
    %2257 = vmatpush1.bf16.msra.mxu0 0
    %2258 = vmatprep.subr.bf16.mxu0 0
    %2259 = vmatpush1.bf16.msra.mxu0 0
    %2260 = vmatprep.subr.bf16.mxu0 0
    %2261 = vmatpush1.bf16.msra.mxu0 0
    %2262 = vmatprep.subr.bf16.mxu0 0
    %2263 = vmatpush1.bf16.msra.mxu0 0
    %2264 = vmatprep.subr.bf16.mxu0 0
    %2265 = vmatpush1.bf16.msra.mxu0 0
    %2266 = vmatprep.subr.bf16.mxu0 0
    %2267 = vmatpush1.bf16.msra.mxu0 0
    %2268 = vmatprep.subr.bf16.mxu0 0
    %2269 = vmatpush1.bf16.msra.mxu0 0
    %2270 = vmatprep.subr.bf16.mxu0 0
    %2271 = vmatpush1.bf16.msra.mxu0 0
    %2272 = vmatprep.subr.bf16.mxu0 0
    %2273 = vmatpush1.bf16.msra.mxu0 0
    %2274 = vmatprep.mubr.bf16.mxu0 0
    %2275 = vmatmul.mubr.bf16.gmra.mrb[0].mxu0 %v2240
    %v2276 = vpop.f32.mrb[0].mxu0
    %v2277 = vadd.f32 0.0, %v2276
    %v2278 = vpop.f32.mrb[0].mxu0
    %v2279 = vadd.f32 0.0, %v2278
    %v2280 = vpop.f32.mrb[0].mxu0
    %v2281 = vpop.f32.mrb[0].mxu0
    %2282 = vdwg.mxu0
    %v2287 = vunpack.c.l.b16 %v2207
    %v2288 = vunpack.c.h.b16 %v2207
    %v2289 = vunpack.c.l.b16 %v2208
    %v2290 = vunpack.c.h.b16 %v2208
    %v2291 = vunpack.c.l.b16 %v2209
    %v2292 = vunpack.c.h.b16 %v2209
    %v2293 = vunpack.c.l.b16 %v2210
    %v2294 = vunpack.c.h.b16 %v2210
    %v2295 = vpack.c.b16 %v2289, %v2287
    %v2296 = vpack.c.b16 %v2290, %v2288
    %v2297 = vpack.c.b16 %v2293, %v2291
    %v2298 = vpack.c.b16 %v2294, %v2292
    %v2304 = vsel %vm336, %v2206, 0
    %2306 = vmatprep.subr.bf16.mxu0 %v2296
    %2307 = vmatpush1.bf16.msra.mxu0 %v2295
    %2308 = vmatprep.subr.bf16.mxu0 %v2298
    %2309 = vmatpush1.bf16.msra.mxu0 %v2297
    %2310 = vmatprep.subr.bf16.mxu0 0
    %2311 = vmatpush1.bf16.msra.mxu0 0
    %2312 = vmatprep.subr.bf16.mxu0 0
    %2313 = vmatpush1.bf16.msra.mxu0 0
    %2314 = vmatprep.subr.bf16.mxu0 0
    %2315 = vmatpush1.bf16.msra.mxu0 0
    %2316 = vmatprep.subr.bf16.mxu0 0
    %2317 = vmatpush1.bf16.msra.mxu0 0
    %2318 = vmatprep.subr.bf16.mxu0 0
    %2319 = vmatpush1.bf16.msra.mxu0 0
    %2320 = vmatprep.subr.bf16.mxu0 0
    %2321 = vmatpush1.bf16.msra.mxu0 0
    %2322 = vmatprep.subr.bf16.mxu0 0
    %2323 = vmatpush1.bf16.msra.mxu0 0
    %2324 = vmatprep.subr.bf16.mxu0 0
    %2325 = vmatpush1.bf16.msra.mxu0 0
    %2326 = vmatprep.subr.bf16.mxu0 0
    %2327 = vmatpush1.bf16.msra.mxu0 0
    %2328 = vmatprep.subr.bf16.mxu0 0
    %2329 = vmatpush1.bf16.msra.mxu0 0
    %2330 = vmatprep.subr.bf16.mxu0 0
    %2331 = vmatpush1.bf16.msra.mxu0 0
    %2332 = vmatprep.subr.bf16.mxu0 0
    %2333 = vmatpush1.bf16.msra.mxu0 0
    %2334 = vmatprep.subr.bf16.mxu0 0
    %2335 = vmatpush1.bf16.msra.mxu0 0
    %2336 = vmatprep.subr.bf16.mxu0 0
    %2337 = vmatpush1.bf16.msra.mxu0 0
    %2338 = vmatprep.mubr.bf16.mxu0 0
    %2339 = vmatmul.mubr.bf16.gmra.mrb[0].mxu0 %v2304
    %v2340 = vpop.f32.mrb[0].mxu0
    %v2341 = vadd.f32 %v2277, %v2340
    %v2342 = vpop.f32.mrb[0].mxu0
    %v2343 = vadd.f32 %v2279, %v2342
    %v2344 = vpop.f32.mrb[0].mxu0
    %v2345 = vpop.f32.mrb[0].mxu0
    %2346 = vdwg.mxu0
    %v2347 = vld [vmem:[%s8] sm:$0x3]
    %v2349 = vlaneseq
    %v2350 = vshrl.u32 %v2349, 7
    %v2351 = vsub.s32 0, %v2350
    %v2352 = vrot.slane %v2347, %v2351
    %v2353 = vlaneseq
    %v2354 = vshrl.u32 %v2353, 7
    %v2355 = vsub.s32 1, %v2354
    %v2356 = vrot.slane %v2347, %v2355
    %v2359 = vadd.f32 %v2341, %v2352
    %v2360 = vadd.f32 %v2343, %v2356
    %v2361 = vmax.f32 %v2359, 0.0
    %v2362 = vmax.f32 %v2360, 0.0
    %s2363 = smul.u32 4, 32
    %s2364 = smul.u32 %s2363, 8
    %s2365 = sshll.u32 %s2364, 4
    %2366 = dma.done [#allocation7], %s2365
    %v2367 = vpack.c.bf16 %v2361, %v2361
    %v2368 = vpack.c.bf16 %v2362, %v2362
    %v2369 = vld [vmem:[#allocation2] sm:$0xff]
    %v2370 = vld [vmem:[#allocation2 + $0x8] sm:$0xff]
    %v2371 = vld [vmem:[#allocation2 + $0x10] sm:$0xff]
    %v2372 = vld [vmem:[#allocation2 + $0x18] sm:$0xff]
    %v2373 = vld [vmem:[#allocation2 + $0x20] sm:$0xff]
    %v2374 = vld [vmem:[#allocation2 + $0x28] sm:$0xff]
    %v2375 = vld [vmem:[#allocation2 + $0x30] sm:$0xff]
    %v2376 = vld [vmem:[#allocation2 + $0x38] sm:$0xff]
    %v2377 = vld [vmem:[#allocation2 + $0x40] sm:$0xff]
    %v2378 = vld [vmem:[#allocation2 + $0x48] sm:$0xff]
    %v2379 = vld [vmem:[#allocation2 + $0x50] sm:$0xff]
    %v2380 = vld [vmem:[#allocation2 + $0x58] sm:$0xff]
    %v2381 = vld [vmem:[#allocation2 + $0x60] sm:$0xff]
    %v2382 = vld [vmem:[#allocation2 + $0x68] sm:$0xff]
    %v2383 = vld [vmem:[#allocation2 + $0x70] sm:$0xff]
    %v2384 = vld [vmem:[#allocation2 + $0x78] sm:$0xff]
    %v2385 = vld [vmem:[#allocation2 + $0x80] sm:$0xff]
    %v2386 = vld [vmem:[#allocation2 + $0x88] sm:$0xff]
    %v2387 = vld [vmem:[#allocation2 + $0x90] sm:$0xff]
    %v2388 = vld [vmem:[#allocation2 + $0x98] sm:$0xff]
    %v2389 = vld [vmem:[#allocation2 + $0xa0] sm:$0xff]
    %v2390 = vld [vmem:[#allocation2 + $0xa8] sm:$0xff]
    %v2391 = vld [vmem:[#allocation2 + $0xb0] sm:$0xff]
    %v2392 = vld [vmem:[#allocation2 + $0xb8] sm:$0xff]
    %v2393 = vld [vmem:[#allocation2 + $0xc0] sm:$0xff]
    %v2394 = vld [vmem:[#allocation2 + $0xc8] sm:$0xff]
    %v2395 = vld [vmem:[#allocation2 + $0xd0] sm:$0xff]
    %v2396 = vld [vmem:[#allocation2 + $0xd8] sm:$0xff]
    %v2397 = vld [vmem:[#allocation2 + $0xe0] sm:$0xff]
    %v2398 = vld [vmem:[#allocation2 + $0xe8] sm:$0xff]
    %v2399 = vld [vmem:[#allocation2 + $0xf0] sm:$0xff]
    %v2400 = vld [vmem:[#allocation2 + $0xf8] sm:$0xff]
    %v2401 = vld [vmem:[#allocation2 + $0x100] sm:$0xff]
    %v2402 = vld [vmem:[#allocation2 + $0x108] sm:$0xff]
    %v2403 = vld [vmem:[#allocation2 + $0x110] sm:$0xff]
    %v2404 = vld [vmem:[#allocation2 + $0x118] sm:$0xff]
    %v2405 = vld [vmem:[#allocation2 + $0x120] sm:$0xff]
    %v2406 = vld [vmem:[#allocation2 + $0x128] sm:$0xff]
    %v2407 = vld [vmem:[#allocation2 + $0x130] sm:$0xff]
    %v2408 = vld [vmem:[#allocation2 + $0x138] sm:$0xff]
    %v2409 = vld [vmem:[#allocation2 + $0x140] sm:$0xff]
    %v2410 = vld [vmem:[#allocation2 + $0x148] sm:$0xff]
    %v2411 = vld [vmem:[#allocation2 + $0x150] sm:$0xff]
    %v2412 = vld [vmem:[#allocation2 + $0x158] sm:$0xff]
    %v2413 = vld [vmem:[#allocation2 + $0x160] sm:$0xff]
    %v2414 = vld [vmem:[#allocation2 + $0x168] sm:$0xff]
    %v2415 = vld [vmem:[#allocation2 + $0x170] sm:$0xff]
    %v2416 = vld [vmem:[#allocation2 + $0x178] sm:$0xff]
    %v2417 = vld [vmem:[#allocation2 + $0x180] sm:$0xff]
    %v2418 = vld [vmem:[#allocation2 + $0x188] sm:$0xff]
    %v2419 = vld [vmem:[#allocation2 + $0x190] sm:$0xff]
    %v2420 = vld [vmem:[#allocation2 + $0x198] sm:$0xff]
    %v2421 = vld [vmem:[#allocation2 + $0x1a0] sm:$0xff]
    %v2422 = vld [vmem:[#allocation2 + $0x1a8] sm:$0xff]
    %v2423 = vld [vmem:[#allocation2 + $0x1b0] sm:$0xff]
    %v2424 = vld [vmem:[#allocation2 + $0x1b8] sm:$0xff]
    %v2425 = vld [vmem:[#allocation2 + $0x1c0] sm:$0xff]
    %v2426 = vld [vmem:[#allocation2 + $0x1c8] sm:$0xff]
    %v2427 = vld [vmem:[#allocation2 + $0x1d0] sm:$0xff]
    %v2428 = vld [vmem:[#allocation2 + $0x1d8] sm:$0xff]
    %v2429 = vld [vmem:[#allocation2 + $0x1e0] sm:$0xff]
    %v2430 = vld [vmem:[#allocation2 + $0x1e8] sm:$0xff]
    %v2431 = vld [vmem:[#allocation2 + $0x1f0] sm:$0xff]
    %v2432 = vld [vmem:[#allocation2 + $0x1f8] sm:$0xff]
    %v2433 = vld [vmem:[#allocation2 + $0x200] sm:$0xff]
    %v2434 = vld [vmem:[#allocation2 + $0x208] sm:$0xff]
    %v2435 = vld [vmem:[#allocation2 + $0x210] sm:$0xff]
    %v2436 = vld [vmem:[#allocation2 + $0x218] sm:$0xff]
    %v2437 = vld [vmem:[#allocation2 + $0x220] sm:$0xff]
    %v2438 = vld [vmem:[#allocation2 + $0x228] sm:$0xff]
    %v2439 = vld [vmem:[#allocation2 + $0x230] sm:$0xff]
    %v2440 = vld [vmem:[#allocation2 + $0x238] sm:$0xff]
    %v2441 = vld [vmem:[#allocation2 + $0x240] sm:$0xff]
    %v2442 = vld [vmem:[#allocation2 + $0x248] sm:$0xff]
    %v2443 = vld [vmem:[#allocation2 + $0x250] sm:$0xff]
    %v2444 = vld [vmem:[#allocation2 + $0x258] sm:$0xff]
    %v2445 = vld [vmem:[#allocation2 + $0x260] sm:$0xff]
    %v2446 = vld [vmem:[#allocation2 + $0x268] sm:$0xff]
    %v2447 = vld [vmem:[#allocation2 + $0x270] sm:$0xff]
    %v2448 = vld [vmem:[#allocation2 + $0x278] sm:$0xff]
    %v2449 = vld [vmem:[#allocation2 + $0x280] sm:$0xff]
    %v2450 = vld [vmem:[#allocation2 + $0x288] sm:$0xff]
    %v2451 = vld [vmem:[#allocation2 + $0x290] sm:$0xff]
    %v2452 = vld [vmem:[#allocation2 + $0x298] sm:$0xff]
    %v2453 = vld [vmem:[#allocation2 + $0x2a0] sm:$0xff]
    %v2454 = vld [vmem:[#allocation2 + $0x2a8] sm:$0xff]
    %v2455 = vld [vmem:[#allocation2 + $0x2b0] sm:$0xff]
    %v2456 = vld [vmem:[#allocation2 + $0x2b8] sm:$0xff]
    %v2457 = vld [vmem:[#allocation2 + $0x2c0] sm:$0xff]
    %v2458 = vld [vmem:[#allocation2 + $0x2c8] sm:$0xff]
    %v2459 = vld [vmem:[#allocation2 + $0x2d0] sm:$0xff]
    %v2460 = vld [vmem:[#allocation2 + $0x2d8] sm:$0xff]
    %v2461 = vld [vmem:[#allocation2 + $0x2e0] sm:$0xff]
    %v2462 = vld [vmem:[#allocation2 + $0x2e8] sm:$0xff]
    %v2463 = vld [vmem:[#allocation2 + $0x2f0] sm:$0xff]
    %v2464 = vld [vmem:[#allocation2 + $0x2f8] sm:$0xff]
    %v2465 = vld [vmem:[#allocation2 + $0x300] sm:$0xff]
    %v2466 = vld [vmem:[#allocation2 + $0x308] sm:$0xff]
    %v2467 = vld [vmem:[#allocation2 + $0x310] sm:$0xff]
    %v2468 = vld [vmem:[#allocation2 + $0x318] sm:$0xff]
    %v2469 = vld [vmem:[#allocation2 + $0x320] sm:$0xff]
    %v2470 = vld [vmem:[#allocation2 + $0x328] sm:$0xff]
    %v2471 = vld [vmem:[#allocation2 + $0x330] sm:$0xff]
    %v2472 = vld [vmem:[#allocation2 + $0x338] sm:$0xff]
    %v2473 = vld [vmem:[#allocation2 + $0x340] sm:$0xff]
    %v2474 = vld [vmem:[#allocation2 + $0x348] sm:$0xff]
    %v2475 = vld [vmem:[#allocation2 + $0x350] sm:$0xff]
    %v2476 = vld [vmem:[#allocation2 + $0x358] sm:$0xff]
    %v2477 = vld [vmem:[#allocation2 + $0x360] sm:$0xff]
    %v2478 = vld [vmem:[#allocation2 + $0x368] sm:$0xff]
    %v2479 = vld [vmem:[#allocation2 + $0x370] sm:$0xff]
    %v2480 = vld [vmem:[#allocation2 + $0x378] sm:$0xff]
    %v2481 = vld [vmem:[#allocation2 + $0x380] sm:$0xff]
    %v2482 = vld [vmem:[#allocation2 + $0x388] sm:$0xff]
    %v2483 = vld [vmem:[#allocation2 + $0x390] sm:$0xff]
    %v2484 = vld [vmem:[#allocation2 + $0x398] sm:$0xff]
    %v2485 = vld [vmem:[#allocation2 + $0x3a0] sm:$0xff]
    %v2486 = vld [vmem:[#allocation2 + $0x3a8] sm:$0xff]
    %v2487 = vld [vmem:[#allocation2 + $0x3b0] sm:$0xff]
    %v2488 = vld [vmem:[#allocation2 + $0x3b8] sm:$0xff]
    %v2489 = vld [vmem:[#allocation2 + $0x3c0] sm:$0xff]
    %v2490 = vld [vmem:[#allocation2 + $0x3c8] sm:$0xff]
    %v2491 = vld [vmem:[#allocation2 + $0x3d0] sm:$0xff]
    %v2492 = vld [vmem:[#allocation2 + $0x3d8] sm:$0xff]
    %v2493 = vld [vmem:[#allocation2 + $0x3e0] sm:$0xff]
    %v2494 = vld [vmem:[#allocation2 + $0x3e8] sm:$0xff]
    %v2495 = vld [vmem:[#allocation2 + $0x3f0] sm:$0xff]
    %v2496 = vld [vmem:[#allocation2 + $0x3f8] sm:$0xff]
    %v2497 = vld [vmem:[%s10] sm:$0xff]
    %v2499 = vlaneseq
    %v2500 = vshrl.u32 %v2499, 7
    %v2501 = vsub.s32 0, %v2500
    %v2502 = vrot.slane %v2497, %v2501
    %v2503 = vlaneseq
    %v2504 = vshrl.u32 %v2503, 7
    %v2505 = vsub.s32 1, %v2504
    %v2506 = vrot.slane %v2497, %v2505
    %v2507 = vlaneseq
    %v2508 = vshrl.u32 %v2507, 7
    %v2509 = vsub.s32 2, %v2508
    %v2510 = vrot.slane %v2497, %v2509
    %v2511 = vlaneseq
    %v2512 = vshrl.u32 %v2511, 7
    %v2513 = vsub.s32 3, %v2512
    %v2514 = vrot.slane %v2497, %v2513
    %v2515 = vlaneseq
    %v2516 = vshrl.u32 %v2515, 7
    %v2517 = vsub.s32 4, %v2516
    %v2518 = vrot.slane %v2497, %v2517
    %v2519 = vlaneseq
    %v2520 = vshrl.u32 %v2519, 7
    %v2521 = vsub.s32 5, %v2520
    %v2522 = vrot.slane %v2497, %v2521
    %v2523 = vlaneseq
    %v2524 = vshrl.u32 %v2523, 7
    %v2525 = vsub.s32 6, %v2524
    %v2526 = vrot.slane %v2497, %v2525
    %v2527 = vlaneseq
    %v2528 = vshrl.u32 %v2527, 7
    %v2529 = vsub.s32 7, %v2528
    %v2530 = vrot.slane %v2497, %v2529
    %2539 = vmatprep.subr.bf16.mxu0 %v2370
    %2540 = vmatpush1.bf16.msra.mxu0 %v2369
    %2541 = vmatprep.subr.bf16.mxu0 %v2378
    %2542 = vmatpush1.bf16.msra.mxu0 %v2377
    %2543 = vmatprep.subr.bf16.mxu0 %v2386
    %2544 = vmatpush1.bf16.msra.mxu0 %v2385
    %2545 = vmatprep.subr.bf16.mxu0 %v2394
    %2546 = vmatpush1.bf16.msra.mxu0 %v2393
    %2547 = vmatprep.subr.bf16.mxu0 %v2402
    %2548 = vmatpush1.bf16.msra.mxu0 %v2401
    %2549 = vmatprep.subr.bf16.mxu0 %v2410
    %2550 = vmatpush1.bf16.msra.mxu0 %v2409
    %2551 = vmatprep.subr.bf16.mxu0 %v2418
    %2552 = vmatpush1.bf16.msra.mxu0 %v2417
    %2553 = vmatprep.subr.bf16.mxu0 %v2426
    %2554 = vmatpush1.bf16.msra.mxu0 %v2425
    %2555 = vmatprep.subr.bf16.mxu0 %v2434
    %2556 = vmatpush1.bf16.msra.mxu0 %v2433
    %2557 = vmatprep.subr.bf16.mxu0 %v2442
    %2558 = vmatpush1.bf16.msra.mxu0 %v2441
    %2559 = vmatprep.subr.bf16.mxu0 %v2450
    %2560 = vmatpush1.bf16.msra.mxu0 %v2449
    %2561 = vmatprep.subr.bf16.mxu0 %v2458
    %2562 = vmatpush1.bf16.msra.mxu0 %v2457
    %2563 = vmatprep.subr.bf16.mxu0 %v2466
    %2564 = vmatpush1.bf16.msra.mxu0 %v2465
    %2565 = vmatprep.subr.bf16.mxu0 %v2474
    %2566 = vmatpush1.bf16.msra.mxu0 %v2473
    %2567 = vmatprep.subr.bf16.mxu0 %v2482
    %2568 = vmatpush1.bf16.msra.mxu0 %v2481
    %2569 = vmatprep.subr.bf16.mxu0 %v2490
    %2570 = vmatpush1.bf16.msra.mxu0 %v2489
    %2571 = vmatprep.mubr.bf16.mxu0 %v2368
    %2572 = vmatmul.mubr.bf16.gmra.mrb[0].mxu0 %v2367
    %v2573 = vpop.f32.mrb[0].mxu0
    %v2574 = vadd.f32 %v2502, %v2573
    %v2575 = vpop.f32.mrb[0].mxu0
    %v2576 = vadd.f32 %v2506, %v2575
    %v2577 = vpop.f32.mrb[0].mxu0
    %v2578 = vpop.f32.mrb[0].mxu0
    %2579 = vdwg.mxu0
    %2580 = vmatprep.subr.bf16.mxu0 %v2372
    %2581 = vmatpush1.bf16.msra.mxu0 %v2371
    %2582 = vmatprep.subr.bf16.mxu0 %v2380
    %2583 = vmatpush1.bf16.msra.mxu0 %v2379
    %2584 = vmatprep.subr.bf16.mxu0 %v2388
    %2585 = vmatpush1.bf16.msra.mxu0 %v2387
    %2586 = vmatprep.subr.bf16.mxu0 %v2396
    %2587 = vmatpush1.bf16.msra.mxu0 %v2395
    %2588 = vmatprep.subr.bf16.mxu0 %v2404
    %2589 = vmatpush1.bf16.msra.mxu0 %v2403
    %2590 = vmatprep.subr.bf16.mxu0 %v2412
    %2591 = vmatpush1.bf16.msra.mxu0 %v2411
    %2592 = vmatprep.subr.bf16.mxu0 %v2420
    %2593 = vmatpush1.bf16.msra.mxu0 %v2419
    %2594 = vmatprep.subr.bf16.mxu0 %v2428
    %2595 = vmatpush1.bf16.msra.mxu0 %v2427
    %2596 = vmatprep.subr.bf16.mxu0 %v2436
    %2597 = vmatpush1.bf16.msra.mxu0 %v2435
    %2598 = vmatprep.subr.bf16.mxu0 %v2444
    %2599 = vmatpush1.bf16.msra.mxu0 %v2443
    %2600 = vmatprep.subr.bf16.mxu0 %v2452
    %2601 = vmatpush1.bf16.msra.mxu0 %v2451
    %2602 = vmatprep.subr.bf16.mxu0 %v2460
    %2603 = vmatpush1.bf16.msra.mxu0 %v2459
    %2604 = vmatprep.subr.bf16.mxu0 %v2468
    %2605 = vmatpush1.bf16.msra.mxu0 %v2467
    %2606 = vmatprep.subr.bf16.mxu0 %v2476
    %2607 = vmatpush1.bf16.msra.mxu0 %v2475
    %2608 = vmatprep.subr.bf16.mxu0 %v2484
    %2609 = vmatpush1.bf16.msra.mxu0 %v2483
    %2610 = vmatprep.subr.bf16.mxu0 %v2492
    %2611 = vmatpush1.bf16.msra.mxu0 %v2491
    %2612 = vmatprep.mubr.bf16.mxu0 %v2368
    %2613 = vmatmul.mubr.bf16.gmra.mrb[0].mxu0 %v2367
    %v2614 = vpop.f32.mrb[0].mxu0
    %v2615 = vadd.f32 %v2510, %v2614
    %v2616 = vpop.f32.mrb[0].mxu0
    %v2617 = vadd.f32 %v2514, %v2616
    %v2618 = vpop.f32.mrb[0].mxu0
    %v2619 = vpop.f32.mrb[0].mxu0
    %2620 = vdwg.mxu0
    %2621 = vmatprep.subr.bf16.mxu0 %v2374
    %2622 = vmatpush1.bf16.msra.mxu0 %v2373
    %2623 = vmatprep.subr.bf16.mxu0 %v2382
    %2624 = vmatpush1.bf16.msra.mxu0 %v2381
    %2625 = vmatprep.subr.bf16.mxu0 %v2390
    %2626 = vmatpush1.bf16.msra.mxu0 %v2389
    %2627 = vmatprep.subr.bf16.mxu0 %v2398
    %2628 = vmatpush1.bf16.msra.mxu0 %v2397
    %2629 = vmatprep.subr.bf16.mxu0 %v2406
    %2630 = vmatpush1.bf16.msra.mxu0 %v2405
    %2631 = vmatprep.subr.bf16.mxu0 %v2414
    %2632 = vmatpush1.bf16.msra.mxu0 %v2413
    %2633 = vmatprep.subr.bf16.mxu0 %v2422
    %2634 = vmatpush1.bf16.msra.mxu0 %v2421
    %2635 = vmatprep.subr.bf16.mxu0 %v2430
    %2636 = vmatpush1.bf16.msra.mxu0 %v2429
    %2637 = vmatprep.subr.bf16.mxu0 %v2438
    %2638 = vmatpush1.bf16.msra.mxu0 %v2437
    %2639 = vmatprep.subr.bf16.mxu0 %v2446
    %2640 = vmatpush1.bf16.msra.mxu0 %v2445
    %2641 = vmatprep.subr.bf16.mxu0 %v2454
    %2642 = vmatpush1.bf16.msra.mxu0 %v2453
    %2643 = vmatprep.subr.bf16.mxu0 %v2462
    %2644 = vmatpush1.bf16.msra.mxu0 %v2461
    %2645 = vmatprep.subr.bf16.mxu0 %v2470
    %2646 = vmatpush1.bf16.msra.mxu0 %v2469
    %2647 = vmatprep.subr.bf16.mxu0 %v2478
    %2648 = vmatpush1.bf16.msra.mxu0 %v2477
    %2649 = vmatprep.subr.bf16.mxu0 %v2486
    %2650 = vmatpush1.bf16.msra.mxu0 %v2485
    %2651 = vmatprep.subr.bf16.mxu0 %v2494
    %2652 = vmatpush1.bf16.msra.mxu0 %v2493
    %2653 = vmatprep.mubr.bf16.mxu0 %v2368
    %2654 = vmatmul.mubr.bf16.gmra.mrb[0].mxu0 %v2367
    %v2655 = vpop.f32.mrb[0].mxu0
    %v2656 = vadd.f32 %v2518, %v2655
    %v2657 = vpop.f32.mrb[0].mxu0
    %v2658 = vadd.f32 %v2522, %v2657
    %v2659 = vpop.f32.mrb[0].mxu0
    %v2660 = vpop.f32.mrb[0].mxu0
    %2661 = vdwg.mxu0
    %2662 = vmatprep.subr.bf16.mxu0 %v2376
    %2663 = vmatpush1.bf16.msra.mxu0 %v2375
    %2664 = vmatprep.subr.bf16.mxu0 %v2384
    %2665 = vmatpush1.bf16.msra.mxu0 %v2383
    %2666 = vmatprep.subr.bf16.mxu0 %v2392
    %2667 = vmatpush1.bf16.msra.mxu0 %v2391
    %2668 = vmatprep.subr.bf16.mxu0 %v2400
    %2669 = vmatpush1.bf16.msra.mxu0 %v2399
    %2670 = vmatprep.subr.bf16.mxu0 %v2408
    %2671 = vmatpush1.bf16.msra.mxu0 %v2407
    %2672 = vmatprep.subr.bf16.mxu0 %v2416
    %2673 = vmatpush1.bf16.msra.mxu0 %v2415
    %2674 = vmatprep.subr.bf16.mxu0 %v2424
    %2675 = vmatpush1.bf16.msra.mxu0 %v2423
    %2676 = vmatprep.subr.bf16.mxu0 %v2432
    %2677 = vmatpush1.bf16.msra.mxu0 %v2431
    %2678 = vmatprep.subr.bf16.mxu0 %v2440
    %2679 = vmatpush1.bf16.msra.mxu0 %v2439
    %2680 = vmatprep.subr.bf16.mxu0 %v2448
    %2681 = vmatpush1.bf16.msra.mxu0 %v2447
    %2682 = vmatprep.subr.bf16.mxu0 %v2456
    %2683 = vmatpush1.bf16.msra.mxu0 %v2455
    %2684 = vmatprep.subr.bf16.mxu0 %v2464
    %2685 = vmatpush1.bf16.msra.mxu0 %v2463
    %2686 = vmatprep.subr.bf16.mxu0 %v2472
    %2687 = vmatpush1.bf16.msra.mxu0 %v2471
    %2688 = vmatprep.subr.bf16.mxu0 %v2480
    %2689 = vmatpush1.bf16.msra.mxu0 %v2479
    %2690 = vmatprep.subr.bf16.mxu0 %v2488
    %2691 = vmatpush1.bf16.msra.mxu0 %v2487
    %2692 = vmatprep.subr.bf16.mxu0 %v2496
    %2693 = vmatpush1.bf16.msra.mxu0 %v2495
    %2694 = vmatprep.mubr.bf16.mxu0 %v2368
    %2695 = vmatmul.mubr.bf16.gmra.mrb[0].mxu0 %v2367
    %v2696 = vpop.f32.mrb[0].mxu0
    %v2697 = vadd.f32 %v2526, %v2696
    %v2698 = vpop.f32.mrb[0].mxu0
    %v2699 = vadd.f32 %v2530, %v2698
    %v2700 = vpop.f32.mrb[0].mxu0
    %v2701 = vpop.f32.mrb[0].mxu0
    %2702 = vdwg.mxu0
    %v2703 = vmax.f32 %v2574, 0.0
    %v2704 = vmax.f32 %v2576, 0.0
    %v2705 = vmax.f32 %v2615, 0.0
    %v2706 = vmax.f32 %v2617, 0.0
    %v2707 = vmax.f32 %v2656, 0.0
    %v2708 = vmax.f32 %v2658, 0.0
    %v2709 = vmax.f32 %v2697, 0.0
    %v2710 = vmax.f32 %v2699, 0.0
    %s2711 = smul.u32 4, 128
    %s2712 = smul.u32 %s2711, 4
    %s2713 = sshll.u32 %s2712, 4
    %2714 = dma.done %s90, %s2713
    %v2715 = vpack.c.bf16 %v2703, %v2703
    %v2716 = vpack.c.bf16 %v2704, %v2704
    %v2717 = vpack.c.bf16 %v2705, %v2705
    %v2718 = vpack.c.bf16 %v2706, %v2706
    %v2719 = vpack.c.bf16 %v2707, %v2707
    %v2720 = vpack.c.bf16 %v2708, %v2708
    %v2721 = vpack.c.bf16 %v2709, %v2709
    %v2722 = vpack.c.bf16 %v2710, %v2710
    %v2723 = vld [vmem:[#allocation3] sm:$0xff]
    %v2724 = vld [vmem:[#allocation3 + $0x8] sm:$0xff]
    %v2725 = vld [vmem:[#allocation3 + $0x10] sm:$0xff]
    %v2726 = vld [vmem:[#allocation3 + $0x18] sm:$0xff]
    %v2727 = vld [vmem:[#allocation3 + $0x20] sm:$0xff]
    %v2728 = vld [vmem:[#allocation3 + $0x28] sm:$0xff]
    %v2729 = vld [vmem:[#allocation3 + $0x30] sm:$0xff]
    %v2730 = vld [vmem:[#allocation3 + $0x38] sm:$0xff]
    %v2731 = vld [vmem:[#allocation3 + $0x40] sm:$0xff]
    %v2732 = vld [vmem:[#allocation3 + $0x48] sm:$0xff]
    %v2733 = vld [vmem:[#allocation3 + $0x50] sm:$0xff]
    %v2734 = vld [vmem:[#allocation3 + $0x58] sm:$0xff]
    %v2735 = vld [vmem:[#allocation3 + $0x60] sm:$0xff]
    %v2736 = vld [vmem:[#allocation3 + $0x68] sm:$0xff]
    %v2737 = vld [vmem:[#allocation3 + $0x70] sm:$0xff]
    %v2738 = vld [vmem:[#allocation3 + $0x78] sm:$0xff]
    %v2739 = vld [vmem:[#allocation3 + $0x80] sm:$0xff]
    %v2740 = vld [vmem:[#allocation3 + $0x88] sm:$0xff]
    %v2741 = vld [vmem:[#allocation3 + $0x90] sm:$0xff]
    %v2742 = vld [vmem:[#allocation3 + $0x98] sm:$0xff]
    %v2743 = vld [vmem:[#allocation3 + $0xa0] sm:$0xff]
    %v2744 = vld [vmem:[#allocation3 + $0xa8] sm:$0xff]
    %v2745 = vld [vmem:[#allocation3 + $0xb0] sm:$0xff]
    %v2746 = vld [vmem:[#allocation3 + $0xb8] sm:$0xff]
    %v2747 = vld [vmem:[#allocation3 + $0xc0] sm:$0xff]
    %v2748 = vld [vmem:[#allocation3 + $0xc8] sm:$0xff]
    %v2749 = vld [vmem:[#allocation3 + $0xd0] sm:$0xff]
    %v2750 = vld [vmem:[#allocation3 + $0xd8] sm:$0xff]
    %v2751 = vld [vmem:[#allocation3 + $0xe0] sm:$0xff]
    %v2752 = vld [vmem:[#allocation3 + $0xe8] sm:$0xff]
    %v2753 = vld [vmem:[#allocation3 + $0xf0] sm:$0xff]
    %v2754 = vld [vmem:[#allocation3 + $0xf8] sm:$0xff]
    %v2755 = vld [vmem:[#allocation3 + $0x100] sm:$0xff]
    %v2756 = vld [vmem:[#allocation3 + $0x108] sm:$0xff]
    %v2757 = vld [vmem:[#allocation3 + $0x110] sm:$0xff]
    %v2758 = vld [vmem:[#allocation3 + $0x118] sm:$0xff]
    %v2759 = vld [vmem:[#allocation3 + $0x120] sm:$0xff]
    %v2760 = vld [vmem:[#allocation3 + $0x128] sm:$0xff]
    %v2761 = vld [vmem:[#allocation3 + $0x130] sm:$0xff]
    %v2762 = vld [vmem:[#allocation3 + $0x138] sm:$0xff]
    %v2763 = vld [vmem:[#allocation3 + $0x140] sm:$0xff]
    %v2764 = vld [vmem:[#allocation3 + $0x148] sm:$0xff]
    %v2765 = vld [vmem:[#allocation3 + $0x150] sm:$0xff]
    %v2766 = vld [vmem:[#allocation3 + $0x158] sm:$0xff]
    %v2767 = vld [vmem:[#allocation3 + $0x160] sm:$0xff]
    %v2768 = vld [vmem:[#allocation3 + $0x168] sm:$0xff]
    %v2769 = vld [vmem:[#allocation3 + $0x170] sm:$0xff]
    %v2770 = vld [vmem:[#allocation3 + $0x178] sm:$0xff]
    %v2771 = vld [vmem:[#allocation3 + $0x180] sm:$0xff]
    %v2772 = vld [vmem:[#allocation3 + $0x188] sm:$0xff]
    %v2773 = vld [vmem:[#allocation3 + $0x190] sm:$0xff]
    %v2774 = vld [vmem:[#allocation3 + $0x198] sm:$0xff]
    %v2775 = vld [vmem:[#allocation3 + $0x1a0] sm:$0xff]
    %v2776 = vld [vmem:[#allocation3 + $0x1a8] sm:$0xff]
    %v2777 = vld [vmem:[#allocation3 + $0x1b0] sm:$0xff]
    %v2778 = vld [vmem:[#allocation3 + $0x1b8] sm:$0xff]
    %v2779 = vld [vmem:[#allocation3 + $0x1c0] sm:$0xff]
    %v2780 = vld [vmem:[#allocation3 + $0x1c8] sm:$0xff]
    %v2781 = vld [vmem:[#allocation3 + $0x1d0] sm:$0xff]
    %v2782 = vld [vmem:[#allocation3 + $0x1d8] sm:$0xff]
    %v2783 = vld [vmem:[#allocation3 + $0x1e0] sm:$0xff]
    %v2784 = vld [vmem:[#allocation3 + $0x1e8] sm:$0xff]
    %v2785 = vld [vmem:[#allocation3 + $0x1f0] sm:$0xff]
    %v2786 = vld [vmem:[#allocation3 + $0x1f8] sm:$0xff]
    %v2787 = vld [vmem:[#allocation3 + $0x200] sm:$0xff]
    %v2788 = vld [vmem:[#allocation3 + $0x208] sm:$0xff]
    %v2789 = vld [vmem:[#allocation3 + $0x210] sm:$0xff]
    %v2790 = vld [vmem:[#allocation3 + $0x218] sm:$0xff]
    %v2791 = vld [vmem:[#allocation3 + $0x220] sm:$0xff]
    %v2792 = vld [vmem:[#allocation3 + $0x228] sm:$0xff]
    %v2793 = vld [vmem:[#allocation3 + $0x230] sm:$0xff]
    %v2794 = vld [vmem:[#allocation3 + $0x238] sm:$0xff]
    %v2795 = vld [vmem:[#allocation3 + $0x240] sm:$0xff]
    %v2796 = vld [vmem:[#allocation3 + $0x248] sm:$0xff]
    %v2797 = vld [vmem:[#allocation3 + $0x250] sm:$0xff]
    %v2798 = vld [vmem:[#allocation3 + $0x258] sm:$0xff]
    %v2799 = vld [vmem:[#allocation3 + $0x260] sm:$0xff]
    %v2800 = vld [vmem:[#allocation3 + $0x268] sm:$0xff]
    %v2801 = vld [vmem:[#allocation3 + $0x270] sm:$0xff]
    %v2802 = vld [vmem:[#allocation3 + $0x278] sm:$0xff]
    %v2803 = vld [vmem:[#allocation3 + $0x280] sm:$0xff]
    %v2804 = vld [vmem:[#allocation3 + $0x288] sm:$0xff]
    %v2805 = vld [vmem:[#allocation3 + $0x290] sm:$0xff]
    %v2806 = vld [vmem:[#allocation3 + $0x298] sm:$0xff]
    %v2807 = vld [vmem:[#allocation3 + $0x2a0] sm:$0xff]
    %v2808 = vld [vmem:[#allocation3 + $0x2a8] sm:$0xff]
    %v2809 = vld [vmem:[#allocation3 + $0x2b0] sm:$0xff]
    %v2810 = vld [vmem:[#allocation3 + $0x2b8] sm:$0xff]
    %v2811 = vld [vmem:[#allocation3 + $0x2c0] sm:$0xff]
    %v2812 = vld [vmem:[#allocation3 + $0x2c8] sm:$0xff]
    %v2813 = vld [vmem:[#allocation3 + $0x2d0] sm:$0xff]
    %v2814 = vld [vmem:[#allocation3 + $0x2d8] sm:$0xff]
    %v2815 = vld [vmem:[#allocation3 + $0x2e0] sm:$0xff]
    %v2816 = vld [vmem:[#allocation3 + $0x2e8] sm:$0xff]
    %v2817 = vld [vmem:[#allocation3 + $0x2f0] sm:$0xff]
    %v2818 = vld [vmem:[#allocation3 + $0x2f8] sm:$0xff]
    %v2819 = vld [vmem:[#allocation3 + $0x300] sm:$0xff]
    %v2820 = vld [vmem:[#allocation3 + $0x308] sm:$0xff]
    %v2821 = vld [vmem:[#allocation3 + $0x310] sm:$0xff]
    %v2822 = vld [vmem:[#allocation3 + $0x318] sm:$0xff]
    %v2823 = vld [vmem:[#allocation3 + $0x320] sm:$0xff]
    %v2824 = vld [vmem:[#allocation3 + $0x328] sm:$0xff]
    %v2825 = vld [vmem:[#allocation3 + $0x330] sm:$0xff]
    %v2826 = vld [vmem:[#allocation3 + $0x338] sm:$0xff]
    %v2827 = vld [vmem:[#allocation3 + $0x340] sm:$0xff]
    %v2828 = vld [vmem:[#allocation3 + $0x348] sm:$0xff]
    %v2829 = vld [vmem:[#allocation3 + $0x350] sm:$0xff]
    %v2830 = vld [vmem:[#allocation3 + $0x358] sm:$0xff]
    %v2831 = vld [vmem:[#allocation3 + $0x360] sm:$0xff]
    %v2832 = vld [vmem:[#allocation3 + $0x368] sm:$0xff]
    %v2833 = vld [vmem:[#allocation3 + $0x370] sm:$0xff]
    %v2834 = vld [vmem:[#allocation3 + $0x378] sm:$0xff]
    %v2835 = vld [vmem:[#allocation3 + $0x380] sm:$0xff]
    %v2836 = vld [vmem:[#allocation3 + $0x388] sm:$0xff]
    %v2837 = vld [vmem:[#allocation3 + $0x390] sm:$0xff]
    %v2838 = vld [vmem:[#allocation3 + $0x398] sm:$0xff]
    %v2839 = vld [vmem:[#allocation3 + $0x3a0] sm:$0xff]
    %v2840 = vld [vmem:[#allocation3 + $0x3a8] sm:$0xff]
    %v2841 = vld [vmem:[#allocation3 + $0x3b0] sm:$0xff]
    %v2842 = vld [vmem:[#allocation3 + $0x3b8] sm:$0xff]
    %v2843 = vld [vmem:[#allocation3 + $0x3c0] sm:$0xff]
    %v2844 = vld [vmem:[#allocation3 + $0x3c8] sm:$0xff]
    %v2845 = vld [vmem:[#allocation3 + $0x3d0] sm:$0xff]
    %v2846 = vld [vmem:[#allocation3 + $0x3d8] sm:$0xff]
    %v2847 = vld [vmem:[#allocation3 + $0x3e0] sm:$0xff]
    %v2848 = vld [vmem:[#allocation3 + $0x3e8] sm:$0xff]
    %v2849 = vld [vmem:[#allocation3 + $0x3f0] sm:$0xff]
    %v2850 = vld [vmem:[#allocation3 + $0x3f8] sm:$0xff]
    %v2851 = vld [vmem:[#allocation3 + $0x400] sm:$0xff]
    %v2852 = vld [vmem:[#allocation3 + $0x408] sm:$0xff]
    %v2853 = vld [vmem:[#allocation3 + $0x410] sm:$0xff]
    %v2854 = vld [vmem:[#allocation3 + $0x418] sm:$0xff]
    %v2855 = vld [vmem:[#allocation3 + $0x420] sm:$0xff]
    %v2856 = vld [vmem:[#allocation3 + $0x428] sm:$0xff]
    %v2857 = vld [vmem:[#allocation3 + $0x430] sm:$0xff]
    %v2858 = vld [vmem:[#allocation3 + $0x438] sm:$0xff]
    %v2859 = vld [vmem:[#allocation3 + $0x440] sm:$0xff]
    %v2860 = vld [vmem:[#allocation3 + $0x448] sm:$0xff]
    %v2861 = vld [vmem:[#allocation3 + $0x450] sm:$0xff]
    %v2862 = vld [vmem:[#allocation3 + $0x458] sm:$0xff]
    %v2863 = vld [vmem:[#allocation3 + $0x460] sm:$0xff]
    %v2864 = vld [vmem:[#allocation3 + $0x468] sm:$0xff]
    %v2865 = vld [vmem:[#allocation3 + $0x470] sm:$0xff]
    %v2866 = vld [vmem:[#allocation3 + $0x478] sm:$0xff]
    %v2867 = vld [vmem:[#allocation3 + $0x480] sm:$0xff]
    %v2868 = vld [vmem:[#allocation3 + $0x488] sm:$0xff]
    %v2869 = vld [vmem:[#allocation3 + $0x490] sm:$0xff]
    %v2870 = vld [vmem:[#allocation3 + $0x498] sm:$0xff]
    %v2871 = vld [vmem:[#allocation3 + $0x4a0] sm:$0xff]
    %v2872 = vld [vmem:[#allocation3 + $0x4a8] sm:$0xff]
    %v2873 = vld [vmem:[#allocation3 + $0x4b0] sm:$0xff]
    %v2874 = vld [vmem:[#allocation3 + $0x4b8] sm:$0xff]
    %v2875 = vld [vmem:[#allocation3 + $0x4c0] sm:$0xff]
    %v2876 = vld [vmem:[#allocation3 + $0x4c8] sm:$0xff]
    %v2877 = vld [vmem:[#allocation3 + $0x4d0] sm:$0xff]
    %v2878 = vld [vmem:[#allocation3 + $0x4d8] sm:$0xff]
    %v2879 = vld [vmem:[#allocation3 + $0x4e0] sm:$0xff]
    %v2880 = vld [vmem:[#allocation3 + $0x4e8] sm:$0xff]
    %v2881 = vld [vmem:[#allocation3 + $0x4f0] sm:$0xff]
    %v2882 = vld [vmem:[#allocation3 + $0x4f8] sm:$0xff]
    %v2883 = vld [vmem:[#allocation3 + $0x500] sm:$0xff]
    %v2884 = vld [vmem:[#allocation3 + $0x508] sm:$0xff]
    %v2885 = vld [vmem:[#allocation3 + $0x510] sm:$0xff]
    %v2886 = vld [vmem:[#allocation3 + $0x518] sm:$0xff]
    %v2887 = vld [vmem:[#allocation3 + $0x520] sm:$0xff]
    %v2888 = vld [vmem:[#allocation3 + $0x528] sm:$0xff]
    %v2889 = vld [vmem:[#allocation3 + $0x530] sm:$0xff]
    %v2890 = vld [vmem:[#allocation3 + $0x538] sm:$0xff]
    %v2891 = vld [vmem:[#allocation3 + $0x540] sm:$0xff]
    %v2892 = vld [vmem:[#allocation3 + $0x548] sm:$0xff]
    %v2893 = vld [vmem:[#allocation3 + $0x550] sm:$0xff]
    %v2894 = vld [vmem:[#allocation3 + $0x558] sm:$0xff]
    %v2895 = vld [vmem:[#allocation3 + $0x560] sm:$0xff]
    %v2896 = vld [vmem:[#allocation3 + $0x568] sm:$0xff]
    %v2897 = vld [vmem:[#allocation3 + $0x570] sm:$0xff]
    %v2898 = vld [vmem:[#allocation3 + $0x578] sm:$0xff]
    %v2899 = vld [vmem:[#allocation3 + $0x580] sm:$0xff]
    %v2900 = vld [vmem:[#allocation3 + $0x588] sm:$0xff]
    %v2901 = vld [vmem:[#allocation3 + $0x590] sm:$0xff]
    %v2902 = vld [vmem:[#allocation3 + $0x598] sm:$0xff]
    %v2903 = vld [vmem:[#allocation3 + $0x5a0] sm:$0xff]
    %v2904 = vld [vmem:[#allocation3 + $0x5a8] sm:$0xff]
    %v2905 = vld [vmem:[#allocation3 + $0x5b0] sm:$0xff]
    %v2906 = vld [vmem:[#allocation3 + $0x5b8] sm:$0xff]
    %v2907 = vld [vmem:[#allocation3 + $0x5c0] sm:$0xff]
    %v2908 = vld [vmem:[#allocation3 + $0x5c8] sm:$0xff]
    %v2909 = vld [vmem:[#allocation3 + $0x5d0] sm:$0xff]
    %v2910 = vld [vmem:[#allocation3 + $0x5d8] sm:$0xff]
    %v2911 = vld [vmem:[#allocation3 + $0x5e0] sm:$0xff]
    %v2912 = vld [vmem:[#allocation3 + $0x5e8] sm:$0xff]
    %v2913 = vld [vmem:[#allocation3 + $0x5f0] sm:$0xff]
    %v2914 = vld [vmem:[#allocation3 + $0x5f8] sm:$0xff]
    %v2915 = vld [vmem:[#allocation3 + $0x600] sm:$0xff]
    %v2916 = vld [vmem:[#allocation3 + $0x608] sm:$0xff]
    %v2917 = vld [vmem:[#allocation3 + $0x610] sm:$0xff]
    %v2918 = vld [vmem:[#allocation3 + $0x618] sm:$0xff]
    %v2919 = vld [vmem:[#allocation3 + $0x620] sm:$0xff]
    %v2920 = vld [vmem:[#allocation3 + $0x628] sm:$0xff]
    %v2921 = vld [vmem:[#allocation3 + $0x630] sm:$0xff]
    %v2922 = vld [vmem:[#allocation3 + $0x638] sm:$0xff]
    %v2923 = vld [vmem:[#allocation3 + $0x640] sm:$0xff]
    %v2924 = vld [vmem:[#allocation3 + $0x648] sm:$0xff]
    %v2925 = vld [vmem:[#allocation3 + $0x650] sm:$0xff]
    %v2926 = vld [vmem:[#allocation3 + $0x658] sm:$0xff]
    %v2927 = vld [vmem:[#allocation3 + $0x660] sm:$0xff]
    %v2928 = vld [vmem:[#allocation3 + $0x668] sm:$0xff]
    %v2929 = vld [vmem:[#allocation3 + $0x670] sm:$0xff]
    %v2930 = vld [vmem:[#allocation3 + $0x678] sm:$0xff]
    %v2931 = vld [vmem:[#allocation3 + $0x680] sm:$0xff]
    %v2932 = vld [vmem:[#allocation3 + $0x688] sm:$0xff]
    %v2933 = vld [vmem:[#allocation3 + $0x690] sm:$0xff]
    %v2934 = vld [vmem:[#allocation3 + $0x698] sm:$0xff]
    %v2935 = vld [vmem:[#allocation3 + $0x6a0] sm:$0xff]
    %v2936 = vld [vmem:[#allocation3 + $0x6a8] sm:$0xff]
    %v2937 = vld [vmem:[#allocation3 + $0x6b0] sm:$0xff]
    %v2938 = vld [vmem:[#allocation3 + $0x6b8] sm:$0xff]
    %v2939 = vld [vmem:[#allocation3 + $0x6c0] sm:$0xff]
    %v2940 = vld [vmem:[#allocation3 + $0x6c8] sm:$0xff]
    %v2941 = vld [vmem:[#allocation3 + $0x6d0] sm:$0xff]
    %v2942 = vld [vmem:[#allocation3 + $0x6d8] sm:$0xff]
    %v2943 = vld [vmem:[#allocation3 + $0x6e0] sm:$0xff]
    %v2944 = vld [vmem:[#allocation3 + $0x6e8] sm:$0xff]
    %v2945 = vld [vmem:[#allocation3 + $0x6f0] sm:$0xff]
    %v2946 = vld [vmem:[#allocation3 + $0x6f8] sm:$0xff]
    %v2947 = vld [vmem:[#allocation3 + $0x700] sm:$0xff]
    %v2948 = vld [vmem:[#allocation3 + $0x708] sm:$0xff]
    %v2949 = vld [vmem:[#allocation3 + $0x710] sm:$0xff]
    %v2950 = vld [vmem:[#allocation3 + $0x718] sm:$0xff]
    %v2951 = vld [vmem:[#allocation3 + $0x720] sm:$0xff]
    %v2952 = vld [vmem:[#allocation3 + $0x728] sm:$0xff]
    %v2953 = vld [vmem:[#allocation3 + $0x730] sm:$0xff]
    %v2954 = vld [vmem:[#allocation3 + $0x738] sm:$0xff]
    %v2955 = vld [vmem:[#allocation3 + $0x740] sm:$0xff]
    %v2956 = vld [vmem:[#allocation3 + $0x748] sm:$0xff]
    %v2957 = vld [vmem:[#allocation3 + $0x750] sm:$0xff]
    %v2958 = vld [vmem:[#allocation3 + $0x758] sm:$0xff]
    %v2959 = vld [vmem:[#allocation3 + $0x760] sm:$0xff]
    %v2960 = vld [vmem:[#allocation3 + $0x768] sm:$0xff]
    %v2961 = vld [vmem:[#allocation3 + $0x770] sm:$0xff]
    %v2962 = vld [vmem:[#allocation3 + $0x778] sm:$0xff]
    %v2963 = vld [vmem:[#allocation3 + $0x780] sm:$0xff]
    %v2964 = vld [vmem:[#allocation3 + $0x788] sm:$0xff]
    %v2965 = vld [vmem:[#allocation3 + $0x790] sm:$0xff]
    %v2966 = vld [vmem:[#allocation3 + $0x798] sm:$0xff]
    %v2967 = vld [vmem:[#allocation3 + $0x7a0] sm:$0xff]
    %v2968 = vld [vmem:[#allocation3 + $0x7a8] sm:$0xff]
    %v2969 = vld [vmem:[#allocation3 + $0x7b0] sm:$0xff]
    %v2970 = vld [vmem:[#allocation3 + $0x7b8] sm:$0xff]
    %v2971 = vld [vmem:[#allocation3 + $0x7c0] sm:$0xff]
    %v2972 = vld [vmem:[#allocation3 + $0x7c8] sm:$0xff]
    %v2973 = vld [vmem:[#allocation3 + $0x7d0] sm:$0xff]
    %v2974 = vld [vmem:[#allocation3 + $0x7d8] sm:$0xff]
    %v2975 = vld [vmem:[#allocation3 + $0x7e0] sm:$0xff]
    %v2976 = vld [vmem:[#allocation3 + $0x7e8] sm:$0xff]
    %v2977 = vld [vmem:[#allocation3 + $0x7f0] sm:$0xff]
    %v2978 = vld [vmem:[#allocation3 + $0x7f8] sm:$0xff]
    %v2979 = vld [vmem:[%s12] sm:$0xf]
    %v2981 = vlaneseq
    %v2982 = vshrl.u32 %v2981, 7
    %v2983 = vsub.s32 0, %v2982
    %v2984 = vrot.slane %v2979, %v2983
    %v2985 = vlaneseq
    %v2986 = vshrl.u32 %v2985, 7
    %v2987 = vsub.s32 1, %v2986
    %v2988 = vrot.slane %v2979, %v2987
    %v2989 = vlaneseq
    %v2990 = vshrl.u32 %v2989, 7
    %v2991 = vsub.s32 2, %v2990
    %v2992 = vrot.slane %v2979, %v2991
    %v2993 = vlaneseq
    %v2994 = vshrl.u32 %v2993, 7
    %v2995 = vsub.s32 3, %v2994
    %v2996 = vrot.slane %v2979, %v2995
    %3001 = vmatprep.subr.bf16.mxu0 %v2724
    %3002 = vmatpush1.bf16.msra.mxu0 %v2723
    %3003 = vmatprep.subr.bf16.mxu0 %v2728
    %3004 = vmatpush1.bf16.msra.mxu0 %v2727
    %3005 = vmatprep.subr.bf16.mxu0 %v2732
    %3006 = vmatpush1.bf16.msra.mxu0 %v2731
    %3007 = vmatprep.subr.bf16.mxu0 %v2736
    %3008 = vmatpush1.bf16.msra.mxu0 %v2735
    %3009 = vmatprep.subr.bf16.mxu0 %v2740
    %3010 = vmatpush1.bf16.msra.mxu0 %v2739
    %3011 = vmatprep.subr.bf16.mxu0 %v2744
    %3012 = vmatpush1.bf16.msra.mxu0 %v2743
    %3013 = vmatprep.subr.bf16.mxu0 %v2748
    %3014 = vmatpush1.bf16.msra.mxu0 %v2747
    %3015 = vmatprep.subr.bf16.mxu0 %v2752
    %3016 = vmatpush1.bf16.msra.mxu0 %v2751
    %3017 = vmatprep.subr.bf16.mxu0 %v2756
    %3018 = vmatpush1.bf16.msra.mxu0 %v2755
    %3019 = vmatprep.subr.bf16.mxu0 %v2760
    %3020 = vmatpush1.bf16.msra.mxu0 %v2759
    %3021 = vmatprep.subr.bf16.mxu0 %v2764
    %3022 = vmatpush1.bf16.msra.mxu0 %v2763
    %3023 = vmatprep.subr.bf16.mxu0 %v2768
    %3024 = vmatpush1.bf16.msra.mxu0 %v2767
    %3025 = vmatprep.subr.bf16.mxu0 %v2772
    %3026 = vmatpush1.bf16.msra.mxu0 %v2771
    %3027 = vmatprep.subr.bf16.mxu0 %v2776
    %3028 = vmatpush1.bf16.msra.mxu0 %v2775
    %3029 = vmatprep.subr.bf16.mxu0 %v2780
    %3030 = vmatpush1.bf16.msra.mxu0 %v2779
    %3031 = vmatprep.subr.bf16.mxu0 %v2784
    %3032 = vmatpush1.bf16.msra.mxu0 %v2783
    %3033 = vmatprep.mubr.bf16.mxu0 %v2716
    %3034 = vmatmul.mubr.bf16.gmra.mrb[0].mxu0 %v2715
    %v3035 = vpop.f32.mrb[0].mxu0
    %v3036 = vadd.f32 %v2984, %v3035
    %v3037 = vpop.f32.mrb[0].mxu0
    %v3038 = vadd.f32 %v2988, %v3037
    %v3039 = vpop.f32.mrb[0].mxu0
    %v3040 = vpop.f32.mrb[0].mxu0
    %3041 = vdwg.mxu0
    %3042 = vmatprep.subr.bf16.mxu0 %v2788
    %3043 = vmatpush1.bf16.msra.mxu0 %v2787
    %3044 = vmatprep.subr.bf16.mxu0 %v2792
    %3045 = vmatpush1.bf16.msra.mxu0 %v2791
    %3046 = vmatprep.subr.bf16.mxu0 %v2796
    %3047 = vmatpush1.bf16.msra.mxu0 %v2795
    %3048 = vmatprep.subr.bf16.mxu0 %v2800
    %3049 = vmatpush1.bf16.msra.mxu0 %v2799
    %3050 = vmatprep.subr.bf16.mxu0 %v2804
    %3051 = vmatpush1.bf16.msra.mxu0 %v2803
    %3052 = vmatprep.subr.bf16.mxu0 %v2808
    %3053 = vmatpush1.bf16.msra.mxu0 %v2807
    %3054 = vmatprep.subr.bf16.mxu0 %v2812
    %3055 = vmatpush1.bf16.msra.mxu0 %v2811
    %3056 = vmatprep.subr.bf16.mxu0 %v2816
    %3057 = vmatpush1.bf16.msra.mxu0 %v2815
    %3058 = vmatprep.subr.bf16.mxu0 %v2820
    %3059 = vmatpush1.bf16.msra.mxu0 %v2819
    %3060 = vmatprep.subr.bf16.mxu0 %v2824
    %3061 = vmatpush1.bf16.msra.mxu0 %v2823
    %3062 = vmatprep.subr.bf16.mxu0 %v2828
    %3063 = vmatpush1.bf16.msra.mxu0 %v2827
    %3064 = vmatprep.subr.bf16.mxu0 %v2832
    %3065 = vmatpush1.bf16.msra.mxu0 %v2831
    %3066 = vmatprep.subr.bf16.mxu0 %v2836
    %3067 = vmatpush1.bf16.msra.mxu0 %v2835
    %3068 = vmatprep.subr.bf16.mxu0 %v2840
    %3069 = vmatpush1.bf16.msra.mxu0 %v2839
    %3070 = vmatprep.subr.bf16.mxu0 %v2844
    %3071 = vmatpush1.bf16.msra.mxu0 %v2843
    %3072 = vmatprep.subr.bf16.mxu0 %v2848
    %3073 = vmatpush1.bf16.msra.mxu0 %v2847
    %3074 = vmatprep.mubr.bf16.mxu0 %v2718
    %3075 = vmatmul.mubr.bf16.gmra.mrb[0].mxu0 %v2717
    %v3076 = vpop.f32.mrb[0].mxu0
    %v3077 = vadd.f32 %v3036, %v3076
    %v3078 = vpop.f32.mrb[0].mxu0
    %v3079 = vadd.f32 %v3038, %v3078
    %v3080 = vpop.f32.mrb[0].mxu0
    %v3081 = vpop.f32.mrb[0].mxu0
    %3082 = vdwg.mxu0
    %3083 = vmatprep.subr.bf16.mxu0 %v2852
    %3084 = vmatpush1.bf16.msra.mxu0 %v2851
    %3085 = vmatprep.subr.bf16.mxu0 %v2856
    %3086 = vmatpush1.bf16.msra.mxu0 %v2855
    %3087 = vmatprep.subr.bf16.mxu0 %v2860
    %3088 = vmatpush1.bf16.msra.mxu0 %v2859
    %3089 = vmatprep.subr.bf16.mxu0 %v2864
    %3090 = vmatpush1.bf16.msra.mxu0 %v2863
    %3091 = vmatprep.subr.bf16.mxu0 %v2868
    %3092 = vmatpush1.bf16.msra.mxu0 %v2867
    %3093 = vmatprep.subr.bf16.mxu0 %v2872
    %3094 = vmatpush1.bf16.msra.mxu0 %v2871
    %3095 = vmatprep.subr.bf16.mxu0 %v2876
    %3096 = vmatpush1.bf16.msra.mxu0 %v2875
    %3097 = vmatprep.subr.bf16.mxu0 %v2880
    %3098 = vmatpush1.bf16.msra.mxu0 %v2879
    %3099 = vmatprep.subr.bf16.mxu0 %v2884
    %3100 = vmatpush1.bf16.msra.mxu0 %v2883
    %3101 = vmatprep.subr.bf16.mxu0 %v2888
    %3102 = vmatpush1.bf16.msra.mxu0 %v2887
    %3103 = vmatprep.subr.bf16.mxu0 %v2892
    %3104 = vmatpush1.bf16.msra.mxu0 %v2891
    %3105 = vmatprep.subr.bf16.mxu0 %v2896
    %3106 = vmatpush1.bf16.msra.mxu0 %v2895
    %3107 = vmatprep.subr.bf16.mxu0 %v2900
    %3108 = vmatpush1.bf16.msra.mxu0 %v2899
    %3109 = vmatprep.subr.bf16.mxu0 %v2904
    %3110 = vmatpush1.bf16.msra.mxu0 %v2903
    %3111 = vmatprep.subr.bf16.mxu0 %v2908
    %3112 = vmatpush1.bf16.msra.mxu0 %v2907
    %3113 = vmatprep.subr.bf16.mxu0 %v2912
    %3114 = vmatpush1.bf16.msra.mxu0 %v2911
    %3115 = vmatprep.mubr.bf16.mxu0 %v2720
    %3116 = vmatmul.mubr.bf16.gmra.mrb[0].mxu0 %v2719
    %v3117 = vpop.f32.mrb[0].mxu0
    %v3118 = vadd.f32 %v3077, %v3117
    %v3119 = vpop.f32.mrb[0].mxu0
    %v3120 = vadd.f32 %v3079, %v3119
    %v3121 = vpop.f32.mrb[0].mxu0
    %v3122 = vpop.f32.mrb[0].mxu0
    %3123 = vdwg.mxu0
    %3124 = vmatprep.subr.bf16.mxu0 %v2916
    %3125 = vmatpush1.bf16.msra.mxu0 %v2915
    %3126 = vmatprep.subr.bf16.mxu0 %v2920
    %3127 = vmatpush1.bf16.msra.mxu0 %v2919
    %3128 = vmatprep.subr.bf16.mxu0 %v2924
    %3129 = vmatpush1.bf16.msra.mxu0 %v2923
    %3130 = vmatprep.subr.bf16.mxu0 %v2928
    %3131 = vmatpush1.bf16.msra.mxu0 %v2927
    %3132 = vmatprep.subr.bf16.mxu0 %v2932
    %3133 = vmatpush1.bf16.msra.mxu0 %v2931
    %3134 = vmatprep.subr.bf16.mxu0 %v2936
    %3135 = vmatpush1.bf16.msra.mxu0 %v2935
    %3136 = vmatprep.subr.bf16.mxu0 %v2940
    %3137 = vmatpush1.bf16.msra.mxu0 %v2939
    %3138 = vmatprep.subr.bf16.mxu0 %v2944
    %3139 = vmatpush1.bf16.msra.mxu0 %v2943
    %3140 = vmatprep.subr.bf16.mxu0 %v2948
    %3141 = vmatpush1.bf16.msra.mxu0 %v2947
    %3142 = vmatprep.subr.bf16.mxu0 %v2952
    %3143 = vmatpush1.bf16.msra.mxu0 %v2951
    %3144 = vmatprep.subr.bf16.mxu0 %v2956
    %3145 = vmatpush1.bf16.msra.mxu0 %v2955
    %3146 = vmatprep.subr.bf16.mxu0 %v2960
    %3147 = vmatpush1.bf16.msra.mxu0 %v2959
    %3148 = vmatprep.subr.bf16.mxu0 %v2964
    %3149 = vmatpush1.bf16.msra.mxu0 %v2963
    %3150 = vmatprep.subr.bf16.mxu0 %v2968
    %3151 = vmatpush1.bf16.msra.mxu0 %v2967
    %3152 = vmatprep.subr.bf16.mxu0 %v2972
    %3153 = vmatpush1.bf16.msra.mxu0 %v2971
    %3154 = vmatprep.subr.bf16.mxu0 %v2976
    %3155 = vmatpush1.bf16.msra.mxu0 %v2975
    %3156 = vmatprep.mubr.bf16.mxu0 %v2722
    %3157 = vmatmul.mubr.bf16.gmra.mrb[0].mxu0 %v2721
    %v3158 = vpop.f32.mrb[0].mxu0
    %v3159 = vadd.f32 %v3118, %v3158
    %v3160 = vpop.f32.mrb[0].mxu0
    %v3161 = vadd.f32 %v3120, %v3160
    %v3162 = vpop.f32.mrb[0].mxu0
    %v3163 = vpop.f32.mrb[0].mxu0
    %3164 = vdwg.mxu0
    %3165 = vmatprep.subr.bf16.mxu0 %v2726
    %3166 = vmatpush1.bf16.msra.mxu0 %v2725
    %3167 = vmatprep.subr.bf16.mxu0 %v2730
    %3168 = vmatpush1.bf16.msra.mxu0 %v2729
    %3169 = vmatprep.subr.bf16.mxu0 %v2734
    %3170 = vmatpush1.bf16.msra.mxu0 %v2733
    %3171 = vmatprep.subr.bf16.mxu0 %v2738
    %3172 = vmatpush1.bf16.msra.mxu0 %v2737
    %3173 = vmatprep.subr.bf16.mxu0 %v2742
    %3174 = vmatpush1.bf16.msra.mxu0 %v2741
    %3175 = vmatprep.subr.bf16.mxu0 %v2746
    %3176 = vmatpush1.bf16.msra.mxu0 %v2745
    %3177 = vmatprep.subr.bf16.mxu0 %v2750
    %3178 = vmatpush1.bf16.msra.mxu0 %v2749
    %3179 = vmatprep.subr.bf16.mxu0 %v2754
    %3180 = vmatpush1.bf16.msra.mxu0 %v2753
    %3181 = vmatprep.subr.bf16.mxu0 %v2758
    %3182 = vmatpush1.bf16.msra.mxu0 %v2757
    %3183 = vmatprep.subr.bf16.mxu0 %v2762
    %3184 = vmatpush1.bf16.msra.mxu0 %v2761
    %3185 = vmatprep.subr.bf16.mxu0 %v2766
    %3186 = vmatpush1.bf16.msra.mxu0 %v2765
    %3187 = vmatprep.subr.bf16.mxu0 %v2770
    %3188 = vmatpush1.bf16.msra.mxu0 %v2769
    %3189 = vmatprep.subr.bf16.mxu0 %v2774
    %3190 = vmatpush1.bf16.msra.mxu0 %v2773
    %3191 = vmatprep.subr.bf16.mxu0 %v2778
    %3192 = vmatpush1.bf16.msra.mxu0 %v2777
    %3193 = vmatprep.subr.bf16.mxu0 %v2782
    %3194 = vmatpush1.bf16.msra.mxu0 %v2781
    %3195 = vmatprep.subr.bf16.mxu0 %v2786
    %3196 = vmatpush1.bf16.msra.mxu0 %v2785
    %3197 = vmatprep.mubr.bf16.mxu0 %v2716
    %3198 = vmatmul.mubr.bf16.gmra.mrb[0].mxu0 %v2715
    %v3199 = vpop.f32.mrb[0].mxu0
    %v3200 = vadd.f32 %v2992, %v3199
    %v3201 = vpop.f32.mrb[0].mxu0
    %v3202 = vadd.f32 %v2996, %v3201
    %v3203 = vpop.f32.mrb[0].mxu0
    %v3204 = vpop.f32.mrb[0].mxu0
    %3205 = vdwg.mxu0
    %3206 = vmatprep.subr.bf16.mxu0 %v2790
    %3207 = vmatpush1.bf16.msra.mxu0 %v2789
    %3208 = vmatprep.subr.bf16.mxu0 %v2794
    %3209 = vmatpush1.bf16.msra.mxu0 %v2793
    %3210 = vmatprep.subr.bf16.mxu0 %v2798
    %3211 = vmatpush1.bf16.msra.mxu0 %v2797
    %3212 = vmatprep.subr.bf16.mxu0 %v2802
    %3213 = vmatpush1.bf16.msra.mxu0 %v2801
    %3214 = vmatprep.subr.bf16.mxu0 %v2806
    %3215 = vmatpush1.bf16.msra.mxu0 %v2805
    %3216 = vmatprep.subr.bf16.mxu0 %v2810
    %3217 = vmatpush1.bf16.msra.mxu0 %v2809
    %3218 = vmatprep.subr.bf16.mxu0 %v2814
    %3219 = vmatpush1.bf16.msra.mxu0 %v2813
    %3220 = vmatprep.subr.bf16.mxu0 %v2818
    %3221 = vmatpush1.bf16.msra.mxu0 %v2817
    %3222 = vmatprep.subr.bf16.mxu0 %v2822
    %3223 = vmatpush1.bf16.msra.mxu0 %v2821
    %3224 = vmatprep.subr.bf16.mxu0 %v2826
    %3225 = vmatpush1.bf16.msra.mxu0 %v2825
    %3226 = vmatprep.subr.bf16.mxu0 %v2830
    %3227 = vmatpush1.bf16.msra.mxu0 %v2829
    %3228 = vmatprep.subr.bf16.mxu0 %v2834
    %3229 = vmatpush1.bf16.msra.mxu0 %v2833
    %3230 = vmatprep.subr.bf16.mxu0 %v2838
    %3231 = vmatpush1.bf16.msra.mxu0 %v2837
    %3232 = vmatprep.subr.bf16.mxu0 %v2842
    %3233 = vmatpush1.bf16.msra.mxu0 %v2841
    %3234 = vmatprep.subr.bf16.mxu0 %v2846
    %3235 = vmatpush1.bf16.msra.mxu0 %v2845
    %3236 = vmatprep.subr.bf16.mxu0 %v2850
    %3237 = vmatpush1.bf16.msra.mxu0 %v2849
    %3238 = vmatprep.mubr.bf16.mxu0 %v2718
    %3239 = vmatmul.mubr.bf16.gmra.mrb[0].mxu0 %v2717
    %v3240 = vpop.f32.mrb[0].mxu0
    %v3241 = vadd.f32 %v3200, %v3240
    %v3242 = vpop.f32.mrb[0].mxu0
    %v3243 = vadd.f32 %v3202, %v3242
    %v3244 = vpop.f32.mrb[0].mxu0
    %v3245 = vpop.f32.mrb[0].mxu0
    %3246 = vdwg.mxu0
    %3247 = vmatprep.subr.bf16.mxu0 %v2854
    %3248 = vmatpush1.bf16.msra.mxu0 %v2853
    %3249 = vmatprep.subr.bf16.mxu0 %v2858
    %3250 = vmatpush1.bf16.msra.mxu0 %v2857
    %3251 = vmatprep.subr.bf16.mxu0 %v2862
    %3252 = vmatpush1.bf16.msra.mxu0 %v2861
    %3253 = vmatprep.subr.bf16.mxu0 %v2866
    %3254 = vmatpush1.bf16.msra.mxu0 %v2865
    %3255 = vmatprep.subr.bf16.mxu0 %v2870
    %3256 = vmatpush1.bf16.msra.mxu0 %v2869
    %3257 = vmatprep.subr.bf16.mxu0 %v2874
    %3258 = vmatpush1.bf16.msra.mxu0 %v2873
    %3259 = vmatprep.subr.bf16.mxu0 %v2878
    %3260 = vmatpush1.bf16.msra.mxu0 %v2877
    %3261 = vmatprep.subr.bf16.mxu0 %v2882
    %3262 = vmatpush1.bf16.msra.mxu0 %v2881
    %3263 = vmatprep.subr.bf16.mxu0 %v2886
    %3264 = vmatpush1.bf16.msra.mxu0 %v2885
    %3265 = vmatprep.subr.bf16.mxu0 %v2890
    %3266 = vmatpush1.bf16.msra.mxu0 %v2889
    %3267 = vmatprep.subr.bf16.mxu0 %v2894
    %3268 = vmatpush1.bf16.msra.mxu0 %v2893
    %3269 = vmatprep.subr.bf16.mxu0 %v2898
    %3270 = vmatpush1.bf16.msra.mxu0 %v2897
    %3271 = vmatprep.subr.bf16.mxu0 %v2902
    %3272 = vmatpush1.bf16.msra.mxu0 %v2901
    %3273 = vmatprep.subr.bf16.mxu0 %v2906
    %3274 = vmatpush1.bf16.msra.mxu0 %v2905
    %3275 = vmatprep.subr.bf16.mxu0 %v2910
    %3276 = vmatpush1.bf16.msra.mxu0 %v2909
    %3277 = vmatprep.subr.bf16.mxu0 %v2914
    %3278 = vmatpush1.bf16.msra.mxu0 %v2913
    %3279 = vmatprep.mubr.bf16.mxu0 %v2720
    %3280 = vmatmul.mubr.bf16.gmra.mrb[0].mxu0 %v2719
    %v3281 = vpop.f32.mrb[0].mxu0
    %v3282 = vadd.f32 %v3241, %v3281
    %v3283 = vpop.f32.mrb[0].mxu0
    %v3284 = vadd.f32 %v3243, %v3283
    %v3285 = vpop.f32.mrb[0].mxu0
    %v3286 = vpop.f32.mrb[0].mxu0
    %3287 = vdwg.mxu0
    %3288 = vmatprep.subr.bf16.mxu0 %v2918
    %3289 = vmatpush1.bf16.msra.mxu0 %v2917
    %3290 = vmatprep.subr.bf16.mxu0 %v2922
    %3291 = vmatpush1.bf16.msra.mxu0 %v2921
    %3292 = vmatprep.subr.bf16.mxu0 %v2926
    %3293 = vmatpush1.bf16.msra.mxu0 %v2925
    %3294 = vmatprep.subr.bf16.mxu0 %v2930
    %3295 = vmatpush1.bf16.msra.mxu0 %v2929
    %3296 = vmatprep.subr.bf16.mxu0 %v2934
    %3297 = vmatpush1.bf16.msra.mxu0 %v2933
    %3298 = vmatprep.subr.bf16.mxu0 %v2938
    %3299 = vmatpush1.bf16.msra.mxu0 %v2937
    %3300 = vmatprep.subr.bf16.mxu0 %v2942
    %3301 = vmatpush1.bf16.msra.mxu0 %v2941
    %3302 = vmatprep.subr.bf16.mxu0 %v2946
    %3303 = vmatpush1.bf16.msra.mxu0 %v2945
    %3304 = vmatprep.subr.bf16.mxu0 %v2950
    %3305 = vmatpush1.bf16.msra.mxu0 %v2949
    %3306 = vmatprep.subr.bf16.mxu0 %v2954
    %3307 = vmatpush1.bf16.msra.mxu0 %v2953
    %3308 = vmatprep.subr.bf16.mxu0 %v2958
    %3309 = vmatpush1.bf16.msra.mxu0 %v2957
    %3310 = vmatprep.subr.bf16.mxu0 %v2962
    %3311 = vmatpush1.bf16.msra.mxu0 %v2961
    %3312 = vmatprep.subr.bf16.mxu0 %v2966
    %3313 = vmatpush1.bf16.msra.mxu0 %v2965
    %3314 = vmatprep.subr.bf16.mxu0 %v2970
    %3315 = vmatpush1.bf16.msra.mxu0 %v2969
    %3316 = vmatprep.subr.bf16.mxu0 %v2974
    %3317 = vmatpush1.bf16.msra.mxu0 %v2973
    %3318 = vmatprep.subr.bf16.mxu0 %v2978
    %3319 = vmatpush1.bf16.msra.mxu0 %v2977
    %3320 = vmatprep.mubr.bf16.mxu0 %v2722
    %3321 = vmatmul.mubr.bf16.gmra.mrb[0].mxu0 %v2721
    %v3322 = vpop.f32.mrb[0].mxu0
    %v3323 = vadd.f32 %v3282, %v3322
    %v3324 = vpop.f32.mrb[0].mxu0
    %v3325 = vadd.f32 %v3284, %v3324
    %v3326 = vpop.f32.mrb[0].mxu0
    %v3327 = vpop.f32.mrb[0].mxu0
    %3328 = vdwg.mxu0
    %v3329 = vmax.f32 %v3159, 0.0
    %v3330 = vmax.f32 %v3161, 0.0
    %v3331 = vmax.f32 %v3323, 0.0
    %v3332 = vmax.f32 %v3325, 0.0
    %v3333 = vpack.c.bf16 %v3329, %v3329
    %v3334 = vpack.c.bf16 %v3330, %v3330
    %v3335 = vpack.c.bf16 %v3331, %v3331
    %v3336 = vpack.c.bf16 %v3332, %v3332
    %s3337 = smul.u32 4, 64
    %s3338 = smul.u32 %s3337, 5
    %s3339 = sshll.u32 %s3338, 4
    %3340 = dma.done %s125, %s3339
    %v3341 = vld [vmem:[#allocation4] sm:$0xff]
    %v3342 = vld [vmem:[#allocation4 + $0x8] sm:$0xff]
    %v3343 = vld [vmem:[#allocation4 + $0x10] sm:$0xff]
    %v3344 = vld [vmem:[#allocation4 + $0x18] sm:$0xff]
    %v3345 = vld [vmem:[#allocation4 + $0x20] sm:$0xff]
    %v3346 = vld [vmem:[#allocation4 + $0x28] sm:$0xff]
    %v3347 = vld [vmem:[#allocation4 + $0x30] sm:$0xff]
    %v3348 = vld [vmem:[#allocation4 + $0x38] sm:$0xff]
    %v3349 = vld [vmem:[#allocation4 + $0x40] sm:$0xff]
    %v3350 = vld [vmem:[#allocation4 + $0x48] sm:$0xff]
    %v3351 = vld [vmem:[#allocation4 + $0x50] sm:$0xff]
    %v3352 = vld [vmem:[#allocation4 + $0x58] sm:$0xff]
    %v3353 = vld [vmem:[#allocation4 + $0x60] sm:$0xff]
    %v3354 = vld [vmem:[#allocation4 + $0x68] sm:$0xff]
    %v3355 = vld [vmem:[#allocation4 + $0x70] sm:$0xff]
    %v3356 = vld [vmem:[#allocation4 + $0x78] sm:$0xff]
    %v3357 = vld [vmem:[#allocation4 + $0x80] sm:$0xff]
    %v3358 = vld [vmem:[#allocation4 + $0x88] sm:$0xff]
    %v3359 = vld [vmem:[#allocation4 + $0x90] sm:$0xff]
    %v3360 = vld [vmem:[#allocation4 + $0x98] sm:$0xff]
    %v3361 = vld [vmem:[#allocation4 + $0xa0] sm:$0xff]
    %v3362 = vld [vmem:[#allocation4 + $0xa8] sm:$0xff]
    %v3363 = vld [vmem:[#allocation4 + $0xb0] sm:$0xff]
    %v3364 = vld [vmem:[#allocation4 + $0xb8] sm:$0xff]
    %v3365 = vld [vmem:[#allocation4 + $0xc0] sm:$0xff]
    %v3366 = vld [vmem:[#allocation4 + $0xc8] sm:$0xff]
    %v3367 = vld [vmem:[#allocation4 + $0xd0] sm:$0xff]
    %v3368 = vld [vmem:[#allocation4 + $0xd8] sm:$0xff]
    %v3369 = vld [vmem:[#allocation4 + $0xe0] sm:$0xff]
    %v3370 = vld [vmem:[#allocation4 + $0xe8] sm:$0xff]
    %v3371 = vld [vmem:[#allocation4 + $0xf0] sm:$0xff]
    %v3372 = vld [vmem:[#allocation4 + $0xf8] sm:$0xff]
    %v3373 = vld [vmem:[#allocation4 + $0x100] sm:$0xff]
    %v3374 = vld [vmem:[#allocation4 + $0x108] sm:$0xff]
    %v3375 = vld [vmem:[#allocation4 + $0x110] sm:$0xff]
    %v3376 = vld [vmem:[#allocation4 + $0x118] sm:$0xff]
    %v3377 = vld [vmem:[#allocation4 + $0x120] sm:$0xff]
    %v3378 = vld [vmem:[#allocation4 + $0x128] sm:$0xff]
    %v3379 = vld [vmem:[#allocation4 + $0x130] sm:$0xff]
    %v3380 = vld [vmem:[#allocation4 + $0x138] sm:$0xff]
    %v3381 = vld [vmem:[#allocation4 + $0x140] sm:$0xff]
    %v3382 = vld [vmem:[#allocation4 + $0x148] sm:$0xff]
    %v3383 = vld [vmem:[#allocation4 + $0x150] sm:$0xff]
    %v3384 = vld [vmem:[#allocation4 + $0x158] sm:$0xff]
    %v3385 = vld [vmem:[#allocation4 + $0x160] sm:$0xff]
    %v3386 = vld [vmem:[#allocation4 + $0x168] sm:$0xff]
    %v3387 = vld [vmem:[#allocation4 + $0x170] sm:$0xff]
    %v3388 = vld [vmem:[#allocation4 + $0x178] sm:$0xff]
    %v3389 = vld [vmem:[#allocation4 + $0x180] sm:$0xff]
    %v3390 = vld [vmem:[#allocation4 + $0x188] sm:$0xff]
    %v3391 = vld [vmem:[#allocation4 + $0x190] sm:$0xff]
    %v3392 = vld [vmem:[#allocation4 + $0x198] sm:$0xff]
    %v3393 = vld [vmem:[#allocation4 + $0x1a0] sm:$0xff]
    %v3394 = vld [vmem:[#allocation4 + $0x1a8] sm:$0xff]
    %v3395 = vld [vmem:[#allocation4 + $0x1b0] sm:$0xff]
    %v3396 = vld [vmem:[#allocation4 + $0x1b8] sm:$0xff]
    %v3397 = vld [vmem:[#allocation4 + $0x1c0] sm:$0xff]
    %v3398 = vld [vmem:[#allocation4 + $0x1c8] sm:$0xff]
    %v3399 = vld [vmem:[#allocation4 + $0x1d0] sm:$0xff]
    %v3400 = vld [vmem:[#allocation4 + $0x1d8] sm:$0xff]
    %v3401 = vld [vmem:[#allocation4 + $0x1e0] sm:$0xff]
    %v3402 = vld [vmem:[#allocation4 + $0x1e8] sm:$0xff]
    %v3403 = vld [vmem:[#allocation4 + $0x1f0] sm:$0xff]
    %v3404 = vld [vmem:[#allocation4 + $0x1f8] sm:$0xff]
    %v3405 = vld [vmem:[#allocation4 + $0x200] sm:$0xff]
    %v3406 = vld [vmem:[#allocation4 + $0x208] sm:$0xff]
    %v3407 = vld [vmem:[#allocation4 + $0x210] sm:$0xff]
    %v3408 = vld [vmem:[#allocation4 + $0x218] sm:$0xff]
    %v3409 = vld [vmem:[#allocation4 + $0x220] sm:$0xff]
    %v3410 = vld [vmem:[#allocation4 + $0x228] sm:$0xff]
    %v3411 = vld [vmem:[#allocation4 + $0x230] sm:$0xff]
    %v3412 = vld [vmem:[#allocation4 + $0x238] sm:$0xff]
    %v3413 = vld [vmem:[#allocation4 + $0x240] sm:$0xff]
    %v3414 = vld [vmem:[#allocation4 + $0x248] sm:$0xff]
    %v3415 = vld [vmem:[#allocation4 + $0x250] sm:$0xff]
    %v3416 = vld [vmem:[#allocation4 + $0x258] sm:$0xff]
    %v3417 = vld [vmem:[#allocation4 + $0x260] sm:$0xff]
    %v3418 = vld [vmem:[#allocation4 + $0x268] sm:$0xff]
    %v3419 = vld [vmem:[#allocation4 + $0x270] sm:$0xff]
    %v3420 = vld [vmem:[#allocation4 + $0x278] sm:$0xff]
    %v3421 = vld [vmem:[#allocation4 + $0x280] sm:$0xff]
    %v3422 = vld [vmem:[#allocation4 + $0x288] sm:$0xff]
    %v3423 = vld [vmem:[#allocation4 + $0x290] sm:$0xff]
    %v3424 = vld [vmem:[#allocation4 + $0x298] sm:$0xff]
    %v3425 = vld [vmem:[#allocation4 + $0x2a0] sm:$0xff]
    %v3426 = vld [vmem:[#allocation4 + $0x2a8] sm:$0xff]
    %v3427 = vld [vmem:[#allocation4 + $0x2b0] sm:$0xff]
    %v3428 = vld [vmem:[#allocation4 + $0x2b8] sm:$0xff]
    %v3429 = vld [vmem:[#allocation4 + $0x2c0] sm:$0xff]
    %v3430 = vld [vmem:[#allocation4 + $0x2c8] sm:$0xff]
    %v3431 = vld [vmem:[#allocation4 + $0x2d0] sm:$0xff]
    %v3432 = vld [vmem:[#allocation4 + $0x2d8] sm:$0xff]
    %v3433 = vld [vmem:[#allocation4 + $0x2e0] sm:$0xff]
    %v3434 = vld [vmem:[#allocation4 + $0x2e8] sm:$0xff]
    %v3435 = vld [vmem:[#allocation4 + $0x2f0] sm:$0xff]
    %v3436 = vld [vmem:[#allocation4 + $0x2f8] sm:$0xff]
    %v3437 = vld [vmem:[#allocation4 + $0x300] sm:$0xff]
    %v3438 = vld [vmem:[#allocation4 + $0x308] sm:$0xff]
    %v3439 = vld [vmem:[#allocation4 + $0x310] sm:$0xff]
    %v3440 = vld [vmem:[#allocation4 + $0x318] sm:$0xff]
    %v3441 = vld [vmem:[#allocation4 + $0x320] sm:$0xff]
    %v3442 = vld [vmem:[#allocation4 + $0x328] sm:$0xff]
    %v3443 = vld [vmem:[#allocation4 + $0x330] sm:$0xff]
    %v3444 = vld [vmem:[#allocation4 + $0x338] sm:$0xff]
    %v3445 = vld [vmem:[#allocation4 + $0x340] sm:$0xff]
    %v3446 = vld [vmem:[#allocation4 + $0x348] sm:$0xff]
    %v3447 = vld [vmem:[#allocation4 + $0x350] sm:$0xff]
    %v3448 = vld [vmem:[#allocation4 + $0x358] sm:$0xff]
    %v3449 = vld [vmem:[#allocation4 + $0x360] sm:$0xff]
    %v3450 = vld [vmem:[#allocation4 + $0x368] sm:$0xff]
    %v3451 = vld [vmem:[#allocation4 + $0x370] sm:$0xff]
    %v3452 = vld [vmem:[#allocation4 + $0x378] sm:$0xff]
    %v3453 = vld [vmem:[#allocation4 + $0x380] sm:$0xff]
    %v3454 = vld [vmem:[#allocation4 + $0x388] sm:$0xff]
    %v3455 = vld [vmem:[#allocation4 + $0x390] sm:$0xff]
    %v3456 = vld [vmem:[#allocation4 + $0x398] sm:$0xff]
    %v3457 = vld [vmem:[#allocation4 + $0x3a0] sm:$0xff]
    %v3458 = vld [vmem:[#allocation4 + $0x3a8] sm:$0xff]
    %v3459 = vld [vmem:[#allocation4 + $0x3b0] sm:$0xff]
    %v3460 = vld [vmem:[#allocation4 + $0x3b8] sm:$0xff]
    %v3461 = vld [vmem:[#allocation4 + $0x3c0] sm:$0xff]
    %v3462 = vld [vmem:[#allocation4 + $0x3c8] sm:$0xff]
    %v3463 = vld [vmem:[#allocation4 + $0x3d0] sm:$0xff]
    %v3464 = vld [vmem:[#allocation4 + $0x3d8] sm:$0xff]
    %v3465 = vld [vmem:[#allocation4 + $0x3e0] sm:$0xff]
    %v3466 = vld [vmem:[#allocation4 + $0x3e8] sm:$0xff]
    %v3467 = vld [vmem:[#allocation4 + $0x3f0] sm:$0xff]
    %v3468 = vld [vmem:[#allocation4 + $0x3f8] sm:$0xff]
    %v3469 = vld [vmem:[#allocation4 + $0x400] sm:$0xff]
    %v3470 = vld [vmem:[#allocation4 + $0x408] sm:$0xff]
    %v3471 = vld [vmem:[#allocation4 + $0x410] sm:$0xff]
    %v3472 = vld [vmem:[#allocation4 + $0x418] sm:$0xff]
    %v3473 = vld [vmem:[#allocation4 + $0x420] sm:$0xff]
    %v3474 = vld [vmem:[#allocation4 + $0x428] sm:$0xff]
    %v3475 = vld [vmem:[#allocation4 + $0x430] sm:$0xff]
    %v3476 = vld [vmem:[#allocation4 + $0x438] sm:$0xff]
    %v3477 = vld [vmem:[#allocation4 + $0x440] sm:$0xff]
    %v3478 = vld [vmem:[#allocation4 + $0x448] sm:$0xff]
    %v3479 = vld [vmem:[#allocation4 + $0x450] sm:$0xff]
    %v3480 = vld [vmem:[#allocation4 + $0x458] sm:$0xff]
    %v3481 = vld [vmem:[#allocation4 + $0x460] sm:$0xff]
    %v3482 = vld [vmem:[#allocation4 + $0x468] sm:$0xff]
    %v3483 = vld [vmem:[#allocation4 + $0x470] sm:$0xff]
    %v3484 = vld [vmem:[#allocation4 + $0x478] sm:$0xff]
    %v3485 = vld [vmem:[#allocation4 + $0x480] sm:$0xff]
    %v3486 = vld [vmem:[#allocation4 + $0x488] sm:$0xff]
    %v3487 = vld [vmem:[#allocation4 + $0x490] sm:$0xff]
    %v3488 = vld [vmem:[#allocation4 + $0x498] sm:$0xff]
    %v3489 = vld [vmem:[#allocation4 + $0x4a0] sm:$0xff]
    %v3490 = vld [vmem:[#allocation4 + $0x4a8] sm:$0xff]
    %v3491 = vld [vmem:[#allocation4 + $0x4b0] sm:$0xff]
    %v3492 = vld [vmem:[#allocation4 + $0x4b8] sm:$0xff]
    %v3493 = vld [vmem:[#allocation4 + $0x4c0] sm:$0xff]
    %v3494 = vld [vmem:[#allocation4 + $0x4c8] sm:$0xff]
    %v3495 = vld [vmem:[#allocation4 + $0x4d0] sm:$0xff]
    %v3496 = vld [vmem:[#allocation4 + $0x4d8] sm:$0xff]
    %v3497 = vld [vmem:[#allocation4 + $0x4e0] sm:$0xff]
    %v3498 = vld [vmem:[#allocation4 + $0x4e8] sm:$0xff]
    %v3499 = vld [vmem:[#allocation4 + $0x4f0] sm:$0xff]
    %v3500 = vld [vmem:[#allocation4 + $0x4f8] sm:$0xff]
    %v3501 = vld [vmem:[%s14] sm:$0x1f]
    %v3503 = vlaneseq
    %v3504 = vshrl.u32 %v3503, 7
    %v3505 = vsub.s32 0, %v3504
    %v3506 = vrot.slane %v3501, %v3505
    %v3507 = vlaneseq
    %v3508 = vshrl.u32 %v3507, 7
    %v3509 = vsub.s32 1, %v3508
    %v3510 = vrot.slane %v3501, %v3509
    %v3511 = vlaneseq
    %v3512 = vshrl.u32 %v3511, 7
    %v3513 = vsub.s32 2, %v3512
    %v3514 = vrot.slane %v3501, %v3513
    %v3515 = vlaneseq
    %v3516 = vshrl.u32 %v3515, 7
    %v3517 = vsub.s32 3, %v3516
    %v3518 = vrot.slane %v3501, %v3517
    %v3519 = vlaneseq
    %v3520 = vshrl.u32 %v3519, 7
    %v3521 = vsub.s32 4, %v3520
    %v3522 = vrot.slane %v3501, %v3521
    %3528 = vmatprep.subr.bf16.mxu0 %v3342
    %3529 = vmatpush1.bf16.msra.mxu0 %v3341
    %3530 = vmatprep.subr.bf16.mxu0 %v3347
    %3531 = vmatpush1.bf16.msra.mxu0 %v3346
    %3532 = vmatprep.subr.bf16.mxu0 %v3352
    %3533 = vmatpush1.bf16.msra.mxu0 %v3351
    %3534 = vmatprep.subr.bf16.mxu0 %v3357
    %3535 = vmatpush1.bf16.msra.mxu0 %v3356
    %3536 = vmatprep.subr.bf16.mxu0 %v3362
    %3537 = vmatpush1.bf16.msra.mxu0 %v3361
    %3538 = vmatprep.subr.bf16.mxu0 %v3367
    %3539 = vmatpush1.bf16.msra.mxu0 %v3366
    %3540 = vmatprep.subr.bf16.mxu0 %v3372
    %3541 = vmatpush1.bf16.msra.mxu0 %v3371
    %3542 = vmatprep.subr.bf16.mxu0 %v3377
    %3543 = vmatpush1.bf16.msra.mxu0 %v3376
    %3544 = vmatprep.subr.bf16.mxu0 %v3382
    %3545 = vmatpush1.bf16.msra.mxu0 %v3381
    %3546 = vmatprep.subr.bf16.mxu0 %v3387
    %3547 = vmatpush1.bf16.msra.mxu0 %v3386
    %3548 = vmatprep.subr.bf16.mxu0 %v3392
    %3549 = vmatpush1.bf16.msra.mxu0 %v3391
    %3550 = vmatprep.subr.bf16.mxu0 %v3397
    %3551 = vmatpush1.bf16.msra.mxu0 %v3396
    %3552 = vmatprep.subr.bf16.mxu0 %v3402
    %3553 = vmatpush1.bf16.msra.mxu0 %v3401
    %3554 = vmatprep.subr.bf16.mxu0 %v3407
    %3555 = vmatpush1.bf16.msra.mxu0 %v3406
    %3556 = vmatprep.subr.bf16.mxu0 %v3412
    %3557 = vmatpush1.bf16.msra.mxu0 %v3411
    %3558 = vmatprep.subr.bf16.mxu0 %v3417
    %3559 = vmatpush1.bf16.msra.mxu0 %v3416
    %3560 = vmatprep.mubr.bf16.mxu0 %v3334
    %3561 = vmatmul.mubr.bf16.gmra.mrb[0].mxu0 %v3333
    %v3562 = vpop.f32.mrb[0].mxu0
    %v3563 = vadd.f32 %v3506, %v3562
    %v3564 = vpop.f32.mrb[0].mxu0
    %v3565 = vadd.f32 %v3510, %v3564
    %v3566 = vpop.f32.mrb[0].mxu0
    %v3567 = vpop.f32.mrb[0].mxu0
    %3568 = vdwg.mxu0
    %3569 = vmatprep.subr.bf16.mxu0 %v3422
    %3570 = vmatpush1.bf16.msra.mxu0 %v3421
    %3571 = vmatprep.subr.bf16.mxu0 %v3427
    %3572 = vmatpush1.bf16.msra.mxu0 %v3426
    %3573 = vmatprep.subr.bf16.mxu0 %v3432
    %3574 = vmatpush1.bf16.msra.mxu0 %v3431
    %3575 = vmatprep.subr.bf16.mxu0 %v3437
    %3576 = vmatpush1.bf16.msra.mxu0 %v3436
    %3577 = vmatprep.subr.bf16.mxu0 %v3442
    %3578 = vmatpush1.bf16.msra.mxu0 %v3441
    %3579 = vmatprep.subr.bf16.mxu0 %v3447
    %3580 = vmatpush1.bf16.msra.mxu0 %v3446
    %3581 = vmatprep.subr.bf16.mxu0 %v3452
    %3582 = vmatpush1.bf16.msra.mxu0 %v3451
    %3583 = vmatprep.subr.bf16.mxu0 %v3457
    %3584 = vmatpush1.bf16.msra.mxu0 %v3456
    %3585 = vmatprep.subr.bf16.mxu0 %v3462
    %3586 = vmatpush1.bf16.msra.mxu0 %v3461
    %3587 = vmatprep.subr.bf16.mxu0 %v3467
    %3588 = vmatpush1.bf16.msra.mxu0 %v3466
    %3589 = vmatprep.subr.bf16.mxu0 %v3472
    %3590 = vmatpush1.bf16.msra.mxu0 %v3471
    %3591 = vmatprep.subr.bf16.mxu0 %v3477
    %3592 = vmatpush1.bf16.msra.mxu0 %v3476
    %3593 = vmatprep.subr.bf16.mxu0 %v3482
    %3594 = vmatpush1.bf16.msra.mxu0 %v3481
    %3595 = vmatprep.subr.bf16.mxu0 %v3487
    %3596 = vmatpush1.bf16.msra.mxu0 %v3486
    %3597 = vmatprep.subr.bf16.mxu0 %v3492
    %3598 = vmatpush1.bf16.msra.mxu0 %v3491
    %3599 = vmatprep.subr.bf16.mxu0 %v3497
    %3600 = vmatpush1.bf16.msra.mxu0 %v3496
    %3601 = vmatprep.mubr.bf16.mxu0 %v3336
    %3602 = vmatmul.mubr.bf16.gmra.mrb[0].mxu0 %v3335
    %v3603 = vpop.f32.mrb[0].mxu0
    %v3604 = vadd.f32 %v3563, %v3603
    %v3605 = vpop.f32.mrb[0].mxu0
    %v3606 = vadd.f32 %v3565, %v3605
    %v3607 = vpop.f32.mrb[0].mxu0
    %v3608 = vpop.f32.mrb[0].mxu0
    %3609 = vdwg.mxu0
    %3610 = vmatprep.subr.bf16.mxu0 %v3344
    %3611 = vmatpush1.bf16.msra.mxu0 %v3343
    %3612 = vmatprep.subr.bf16.mxu0 %v3349
    %3613 = vmatpush1.bf16.msra.mxu0 %v3348
    %3614 = vmatprep.subr.bf16.mxu0 %v3354
    %3615 = vmatpush1.bf16.msra.mxu0 %v3353
    %3616 = vmatprep.subr.bf16.mxu0 %v3359
    %3617 = vmatpush1.bf16.msra.mxu0 %v3358
    %3618 = vmatprep.subr.bf16.mxu0 %v3364
    %3619 = vmatpush1.bf16.msra.mxu0 %v3363
    %3620 = vmatprep.subr.bf16.mxu0 %v3369
    %3621 = vmatpush1.bf16.msra.mxu0 %v3368
    %3622 = vmatprep.subr.bf16.mxu0 %v3374
    %3623 = vmatpush1.bf16.msra.mxu0 %v3373
    %3624 = vmatprep.subr.bf16.mxu0 %v3379
    %3625 = vmatpush1.bf16.msra.mxu0 %v3378
    %3626 = vmatprep.subr.bf16.mxu0 %v3384
    %3627 = vmatpush1.bf16.msra.mxu0 %v3383
    %3628 = vmatprep.subr.bf16.mxu0 %v3389
    %3629 = vmatpush1.bf16.msra.mxu0 %v3388
    %3630 = vmatprep.subr.bf16.mxu0 %v3394
    %3631 = vmatpush1.bf16.msra.mxu0 %v3393
    %3632 = vmatprep.subr.bf16.mxu0 %v3399
    %3633 = vmatpush1.bf16.msra.mxu0 %v3398
    %3634 = vmatprep.subr.bf16.mxu0 %v3404
    %3635 = vmatpush1.bf16.msra.mxu0 %v3403
    %3636 = vmatprep.subr.bf16.mxu0 %v3409
    %3637 = vmatpush1.bf16.msra.mxu0 %v3408
    %3638 = vmatprep.subr.bf16.mxu0 %v3414
    %3639 = vmatpush1.bf16.msra.mxu0 %v3413
    %3640 = vmatprep.subr.bf16.mxu0 %v3419
    %3641 = vmatpush1.bf16.msra.mxu0 %v3418
    %3642 = vmatprep.mubr.bf16.mxu0 %v3334
    %3643 = vmatmul.mubr.bf16.gmra.mrb[0].mxu0 %v3333
    %v3644 = vpop.f32.mrb[0].mxu0
    %v3645 = vadd.f32 %v3514, %v3644
    %v3646 = vpop.f32.mrb[0].mxu0
    %v3647 = vadd.f32 %v3518, %v3646
    %v3648 = vpop.f32.mrb[0].mxu0
    %v3649 = vpop.f32.mrb[0].mxu0
    %3650 = vdwg.mxu0
    %3651 = vmatprep.subr.bf16.mxu0 %v3424
    %3652 = vmatpush1.bf16.msra.mxu0 %v3423
    %3653 = vmatprep.subr.bf16.mxu0 %v3429
    %3654 = vmatpush1.bf16.msra.mxu0 %v3428
    %3655 = vmatprep.subr.bf16.mxu0 %v3434
    %3656 = vmatpush1.bf16.msra.mxu0 %v3433
    %3657 = vmatprep.subr.bf16.mxu0 %v3439
    %3658 = vmatpush1.bf16.msra.mxu0 %v3438
    %3659 = vmatprep.subr.bf16.mxu0 %v3444
    %3660 = vmatpush1.bf16.msra.mxu0 %v3443
    %3661 = vmatprep.subr.bf16.mxu0 %v3449
    %3662 = vmatpush1.bf16.msra.mxu0 %v3448
    %3663 = vmatprep.subr.bf16.mxu0 %v3454
    %3664 = vmatpush1.bf16.msra.mxu0 %v3453
    %3665 = vmatprep.subr.bf16.mxu0 %v3459
    %3666 = vmatpush1.bf16.msra.mxu0 %v3458
    %3667 = vmatprep.subr.bf16.mxu0 %v3464
    %3668 = vmatpush1.bf16.msra.mxu0 %v3463
    %3669 = vmatprep.subr.bf16.mxu0 %v3469
    %3670 = vmatpush1.bf16.msra.mxu0 %v3468
    %3671 = vmatprep.subr.bf16.mxu0 %v3474
    %3672 = vmatpush1.bf16.msra.mxu0 %v3473
    %3673 = vmatprep.subr.bf16.mxu0 %v3479
    %3674 = vmatpush1.bf16.msra.mxu0 %v3478
    %3675 = vmatprep.subr.bf16.mxu0 %v3484
    %3676 = vmatpush1.bf16.msra.mxu0 %v3483
    %3677 = vmatprep.subr.bf16.mxu0 %v3489
    %3678 = vmatpush1.bf16.msra.mxu0 %v3488
    %3679 = vmatprep.subr.bf16.mxu0 %v3494
    %3680 = vmatpush1.bf16.msra.mxu0 %v3493
    %3681 = vmatprep.subr.bf16.mxu0 %v3499
    %3682 = vmatpush1.bf16.msra.mxu0 %v3498
    %3683 = vmatprep.mubr.bf16.mxu0 %v3336
    %3684 = vmatmul.mubr.bf16.gmra.mrb[0].mxu0 %v3335
    %v3685 = vpop.f32.mrb[0].mxu0
    %v3686 = vadd.f32 %v3645, %v3685
    %v3687 = vpop.f32.mrb[0].mxu0
    %v3688 = vadd.f32 %v3647, %v3687
    %v3689 = vpop.f32.mrb[0].mxu0
    %v3690 = vpop.f32.mrb[0].mxu0
    %3691 = vdwg.mxu0
    %3692 = vmatprep.subr.bf16.mxu0 0
    %3693 = vmatpush1.bf16.msra.mxu0 %v3345
    %3694 = vmatprep.subr.bf16.mxu0 0
    %3695 = vmatpush1.bf16.msra.mxu0 %v3350
    %3696 = vmatprep.subr.bf16.mxu0 0
    %3697 = vmatpush1.bf16.msra.mxu0 %v3355
    %3698 = vmatprep.subr.bf16.mxu0 0
    %3699 = vmatpush1.bf16.msra.mxu0 %v3360
    %3700 = vmatprep.subr.bf16.mxu0 0
    %3701 = vmatpush1.bf16.msra.mxu0 %v3365
    %3702 = vmatprep.subr.bf16.mxu0 0
    %3703 = vmatpush1.bf16.msra.mxu0 %v3370
    %3704 = vmatprep.subr.bf16.mxu0 0
    %3705 = vmatpush1.bf16.msra.mxu0 %v3375
    %3706 = vmatprep.subr.bf16.mxu0 0
    %3707 = vmatpush1.bf16.msra.mxu0 %v3380
    %3708 = vmatprep.subr.bf16.mxu0 0
    %3709 = vmatpush1.bf16.msra.mxu0 %v3385
    %3710 = vmatprep.subr.bf16.mxu0 0
    %3711 = vmatpush1.bf16.msra.mxu0 %v3390
    %3712 = vmatprep.subr.bf16.mxu0 0
    %3713 = vmatpush1.bf16.msra.mxu0 %v3395
    %3714 = vmatprep.subr.bf16.mxu0 0
    %3715 = vmatpush1.bf16.msra.mxu0 %v3400
    %3716 = vmatprep.subr.bf16.mxu0 0
    %3717 = vmatpush1.bf16.msra.mxu0 %v3405
    %3718 = vmatprep.subr.bf16.mxu0 0
    %3719 = vmatpush1.bf16.msra.mxu0 %v3410
    %3720 = vmatprep.subr.bf16.mxu0 0
    %3721 = vmatpush1.bf16.msra.mxu0 %v3415
    %3722 = vmatprep.subr.bf16.mxu0 0
    %3723 = vmatpush1.bf16.msra.mxu0 %v3420
    %3724 = vmatprep.mubr.bf16.mxu0 %v3334
    %3725 = vmatmul.mubr.bf16.gmra.mrb[0].mxu0 %v3333
    %v3726 = vpop.f32.mrb[0].mxu0
    %v3727 = vadd.f32 %v3522, %v3726
    %v3728 = vpop.f32.mrb[0].mxu0
    %v3729 = vpop.f32.mrb[0].mxu0
    %v3730 = vpop.f32.mrb[0].mxu0
    %3731 = vdwg.mxu0
    %3732 = vmatprep.subr.bf16.mxu0 0
    %3733 = vmatpush1.bf16.msra.mxu0 %v3425
    %3734 = vmatprep.subr.bf16.mxu0 0
    %3735 = vmatpush1.bf16.msra.mxu0 %v3430
    %3736 = vmatprep.subr.bf16.mxu0 0
    %3737 = vmatpush1.bf16.msra.mxu0 %v3435
    %3738 = vmatprep.subr.bf16.mxu0 0
    %3739 = vmatpush1.bf16.msra.mxu0 %v3440
    %3740 = vmatprep.subr.bf16.mxu0 0
    %3741 = vmatpush1.bf16.msra.mxu0 %v3445
    %3742 = vmatprep.subr.bf16.mxu0 0
    %3743 = vmatpush1.bf16.msra.mxu0 %v3450
    %3744 = vmatprep.subr.bf16.mxu0 0
    %3745 = vmatpush1.bf16.msra.mxu0 %v3455
    %3746 = vmatprep.subr.bf16.mxu0 0
    %3747 = vmatpush1.bf16.msra.mxu0 %v3460
    %3748 = vmatprep.subr.bf16.mxu0 0
    %3749 = vmatpush1.bf16.msra.mxu0 %v3465
    %3750 = vmatprep.subr.bf16.mxu0 0
    %3751 = vmatpush1.bf16.msra.mxu0 %v3470
    %3752 = vmatprep.subr.bf16.mxu0 0
    %3753 = vmatpush1.bf16.msra.mxu0 %v3475
    %3754 = vmatprep.subr.bf16.mxu0 0
    %3755 = vmatpush1.bf16.msra.mxu0 %v3480
    %3756 = vmatprep.subr.bf16.mxu0 0
    %3757 = vmatpush1.bf16.msra.mxu0 %v3485
    %3758 = vmatprep.subr.bf16.mxu0 0
    %3759 = vmatpush1.bf16.msra.mxu0 %v3490
    %3760 = vmatprep.subr.bf16.mxu0 0
    %3761 = vmatpush1.bf16.msra.mxu0 %v3495
    %3762 = vmatprep.subr.bf16.mxu0 0
    %3763 = vmatpush1.bf16.msra.mxu0 %v3500
    %3764 = vmatprep.mubr.bf16.mxu0 %v3336
    %3765 = vmatmul.mubr.bf16.gmra.mrb[0].mxu0 %v3335
    %v3766 = vpop.f32.mrb[0].mxu0
    %v3767 = vadd.f32 %v3727, %v3766
    %v3768 = vpop.f32.mrb[0].mxu0
    %v3769 = vpop.f32.mrb[0].mxu0
    %v3770 = vpop.f32.mrb[0].mxu0
    %3771 = vdwg.mxu0
    %v3772 = vmax.f32 %v3604, 0.0
    %v3773 = vmax.f32 %v3606, 0.0
    %v3774 = vmax.f32 %v3686, 0.0
    %v3775 = vmax.f32 %v3688, 0.0
    %s3776 = smul.u32 %s3337, 2
    %s3777 = sshll.u32 %s3776, 4
    %3778 = dma.done %s160, %s3777
    %v3779 = vpack.c.bf16 %v3772, %v3772
    %v3780 = vpack.c.bf16 %v3773, %v3773
    %v3781 = vpack.c.bf16 %v3774, %v3774
    %v3782 = vpack.c.bf16 %v3775, %v3775
    %v3783 = vld [vmem:[#allocation5] sm:$0xff]
    %v3784 = vld [vmem:[#allocation5 + $0x8] sm:$0xff]
    %v3785 = vld [vmem:[#allocation5 + $0x10] sm:$0xff]
    %v3786 = vld [vmem:[#allocation5 + $0x18] sm:$0xff]
    %v3787 = vld [vmem:[#allocation5 + $0x20] sm:$0xff]
    %v3788 = vld [vmem:[#allocation5 + $0x28] sm:$0xff]
    %v3789 = vld [vmem:[#allocation5 + $0x30] sm:$0xff]
    %v3790 = vld [vmem:[#allocation5 + $0x38] sm:$0xff]
    %v3791 = vld [vmem:[#allocation5 + $0x40] sm:$0xff]
    %v3792 = vld [vmem:[#allocation5 + $0x48] sm:$0xff]
    %v3793 = vld [vmem:[#allocation5 + $0x50] sm:$0xff]
    %v3794 = vld [vmem:[#allocation5 + $0x58] sm:$0xff]
    %v3795 = vld [vmem:[#allocation5 + $0x60] sm:$0xff]
    %v3796 = vld [vmem:[#allocation5 + $0x68] sm:$0xff]
    %v3797 = vld [vmem:[#allocation5 + $0x70] sm:$0xff]
    %v3798 = vld [vmem:[#allocation5 + $0x78] sm:$0xff]
    %v3799 = vld [vmem:[#allocation5 + $0x80] sm:$0xff]
    %v3800 = vld [vmem:[#allocation5 + $0x88] sm:$0xff]
    %v3801 = vld [vmem:[#allocation5 + $0x90] sm:$0xff]
    %v3802 = vld [vmem:[#allocation5 + $0x98] sm:$0xff]
    %v3803 = vld [vmem:[#allocation5 + $0xa0] sm:$0xff]
    %v3804 = vld [vmem:[#allocation5 + $0xa8] sm:$0xff]
    %v3805 = vld [vmem:[#allocation5 + $0xb0] sm:$0xff]
    %v3806 = vld [vmem:[#allocation5 + $0xb8] sm:$0xff]
    %v3807 = vld [vmem:[#allocation5 + $0xc0] sm:$0xff]
    %v3808 = vld [vmem:[#allocation5 + $0xc8] sm:$0xff]
    %v3809 = vld [vmem:[#allocation5 + $0xd0] sm:$0xff]
    %v3810 = vld [vmem:[#allocation5 + $0xd8] sm:$0xff]
    %v3811 = vld [vmem:[#allocation5 + $0xe0] sm:$0xff]
    %v3812 = vld [vmem:[#allocation5 + $0xe8] sm:$0xff]
    %v3813 = vld [vmem:[#allocation5 + $0xf0] sm:$0xff]
    %v3814 = vld [vmem:[#allocation5 + $0xf8] sm:$0xff]
    %v3815 = vld [vmem:[#allocation5 + $0x100] sm:$0xff]
    %v3816 = vld [vmem:[#allocation5 + $0x108] sm:$0xff]
    %v3817 = vld [vmem:[#allocation5 + $0x110] sm:$0xff]
    %v3818 = vld [vmem:[#allocation5 + $0x118] sm:$0xff]
    %v3819 = vld [vmem:[#allocation5 + $0x120] sm:$0xff]
    %v3820 = vld [vmem:[#allocation5 + $0x128] sm:$0xff]
    %v3821 = vld [vmem:[#allocation5 + $0x130] sm:$0xff]
    %v3822 = vld [vmem:[#allocation5 + $0x138] sm:$0xff]
    %v3823 = vld [vmem:[#allocation5 + $0x140] sm:$0xff]
    %v3824 = vld [vmem:[#allocation5 + $0x148] sm:$0xff]
    %v3825 = vld [vmem:[#allocation5 + $0x150] sm:$0xff]
    %v3826 = vld [vmem:[#allocation5 + $0x158] sm:$0xff]
    %v3827 = vld [vmem:[#allocation5 + $0x160] sm:$0xff]
    %v3828 = vld [vmem:[#allocation5 + $0x168] sm:$0xff]
    %v3829 = vld [vmem:[#allocation5 + $0x170] sm:$0xff]
    %v3830 = vld [vmem:[#allocation5 + $0x178] sm:$0xff]
    %v3831 = vld [vmem:[#allocation5 + $0x180] sm:$0xff]
    %v3832 = vld [vmem:[#allocation5 + $0x188] sm:$0xff]
    %v3833 = vld [vmem:[#allocation5 + $0x190] sm:$0xff]
    %v3834 = vld [vmem:[#allocation5 + $0x198] sm:$0xff]
    %v3835 = vld [vmem:[#allocation5 + $0x1a0] sm:$0xff]
    %v3836 = vld [vmem:[#allocation5 + $0x1a8] sm:$0xff]
    %v3837 = vld [vmem:[#allocation5 + $0x1b0] sm:$0xff]
    %v3838 = vld [vmem:[#allocation5 + $0x1b8] sm:$0xff]
    %v3839 = vld [vmem:[#allocation5 + $0x1c0] sm:$0xff]
    %v3840 = vld [vmem:[#allocation5 + $0x1c8] sm:$0xff]
    %v3841 = vld [vmem:[#allocation5 + $0x1d0] sm:$0xff]
    %v3842 = vld [vmem:[#allocation5 + $0x1d8] sm:$0xff]
    %v3843 = vld [vmem:[#allocation5 + $0x1e0] sm:$0xff]
    %v3844 = vld [vmem:[#allocation5 + $0x1e8] sm:$0xff]
    %v3845 = vld [vmem:[#allocation5 + $0x1f0] sm:$0xff]
    %v3846 = vld [vmem:[#allocation5 + $0x1f8] sm:$0xff]
    %v3847 = vld [vmem:[%s16] sm:$0x3]
    %v3849 = vlaneseq
    %v3850 = vshrl.u32 %v3849, 7
    %v3851 = vsub.s32 0, %v3850
    %v3852 = vrot.slane %v3847, %v3851
    %v3853 = vlaneseq
    %v3854 = vshrl.u32 %v3853, 7
    %v3855 = vsub.s32 1, %v3854
    %v3856 = vrot.slane %v3847, %v3855
    %3859 = vmatprep.subr.bf16.mxu0 %v3784
    %3860 = vmatpush1.bf16.msra.mxu0 %v3783
    %3861 = vmatprep.subr.bf16.mxu0 %v3786
    %3862 = vmatpush1.bf16.msra.mxu0 %v3785
    %3863 = vmatprep.subr.bf16.mxu0 %v3788
    %3864 = vmatpush1.bf16.msra.mxu0 %v3787
    %3865 = vmatprep.subr.bf16.mxu0 %v3790
    %3866 = vmatpush1.bf16.msra.mxu0 %v3789
    %3867 = vmatprep.subr.bf16.mxu0 %v3792
    %3868 = vmatpush1.bf16.msra.mxu0 %v3791
    %3869 = vmatprep.subr.bf16.mxu0 %v3794
    %3870 = vmatpush1.bf16.msra.mxu0 %v3793
    %3871 = vmatprep.subr.bf16.mxu0 %v3796
    %3872 = vmatpush1.bf16.msra.mxu0 %v3795
    %3873 = vmatprep.subr.bf16.mxu0 %v3798
    %3874 = vmatpush1.bf16.msra.mxu0 %v3797
    %3875 = vmatprep.subr.bf16.mxu0 %v3800
    %3876 = vmatpush1.bf16.msra.mxu0 %v3799
    %3877 = vmatprep.subr.bf16.mxu0 %v3802
    %3878 = vmatpush1.bf16.msra.mxu0 %v3801
    %3879 = vmatprep.subr.bf16.mxu0 %v3804
    %3880 = vmatpush1.bf16.msra.mxu0 %v3803
    %3881 = vmatprep.subr.bf16.mxu0 %v3806
    %3882 = vmatpush1.bf16.msra.mxu0 %v3805
    %3883 = vmatprep.subr.bf16.mxu0 %v3808
    %3884 = vmatpush1.bf16.msra.mxu0 %v3807
    %3885 = vmatprep.subr.bf16.mxu0 %v3810
    %3886 = vmatpush1.bf16.msra.mxu0 %v3809
    %3887 = vmatprep.subr.bf16.mxu0 %v3812
    %3888 = vmatpush1.bf16.msra.mxu0 %v3811
    %3889 = vmatprep.subr.bf16.mxu0 %v3814
    %3890 = vmatpush1.bf16.msra.mxu0 %v3813
    %3891 = vmatprep.mubr.bf16.mxu0 %v3780
    %3892 = vmatmul.mubr.bf16.gmra.mrb[0].mxu0 %v3779
    %v3893 = vpop.f32.mrb[0].mxu0
    %v3894 = vadd.f32 %v3852, %v3893
    %v3895 = vpop.f32.mrb[0].mxu0
    %v3896 = vadd.f32 %v3856, %v3895
    %v3897 = vpop.f32.mrb[0].mxu0
    %v3898 = vpop.f32.mrb[0].mxu0
    %3899 = vdwg.mxu0
    %3900 = vmatprep.subr.bf16.mxu0 %v3816
    %3901 = vmatpush1.bf16.msra.mxu0 %v3815
    %3902 = vmatprep.subr.bf16.mxu0 %v3818
    %3903 = vmatpush1.bf16.msra.mxu0 %v3817
    %3904 = vmatprep.subr.bf16.mxu0 %v3820
    %3905 = vmatpush1.bf16.msra.mxu0 %v3819
    %3906 = vmatprep.subr.bf16.mxu0 %v3822
    %3907 = vmatpush1.bf16.msra.mxu0 %v3821
    %3908 = vmatprep.subr.bf16.mxu0 %v3824
    %3909 = vmatpush1.bf16.msra.mxu0 %v3823
    %3910 = vmatprep.subr.bf16.mxu0 %v3826
    %3911 = vmatpush1.bf16.msra.mxu0 %v3825
    %3912 = vmatprep.subr.bf16.mxu0 %v3828
    %3913 = vmatpush1.bf16.msra.mxu0 %v3827
    %3914 = vmatprep.subr.bf16.mxu0 %v3830
    %3915 = vmatpush1.bf16.msra.mxu0 %v3829
    %3916 = vmatprep.subr.bf16.mxu0 %v3832
    %3917 = vmatpush1.bf16.msra.mxu0 %v3831
    %3918 = vmatprep.subr.bf16.mxu0 %v3834
    %3919 = vmatpush1.bf16.msra.mxu0 %v3833
    %3920 = vmatprep.subr.bf16.mxu0 %v3836
    %3921 = vmatpush1.bf16.msra.mxu0 %v3835
    %3922 = vmatprep.subr.bf16.mxu0 %v3838
    %3923 = vmatpush1.bf16.msra.mxu0 %v3837
    %3924 = vmatprep.subr.bf16.mxu0 %v3840
    %3925 = vmatpush1.bf16.msra.mxu0 %v3839
    %3926 = vmatprep.subr.bf16.mxu0 %v3842
    %3927 = vmatpush1.bf16.msra.mxu0 %v3841
    %3928 = vmatprep.subr.bf16.mxu0 %v3844
    %3929 = vmatpush1.bf16.msra.mxu0 %v3843
    %3930 = vmatprep.subr.bf16.mxu0 %v3846
    %3931 = vmatpush1.bf16.msra.mxu0 %v3845
    %3932 = vmatprep.mubr.bf16.mxu0 %v3782
    %3933 = vmatmul.mubr.bf16.gmra.mrb[0].mxu0 %v3781
    %v3934 = vpop.f32.mrb[0].mxu0
    %v3935 = vadd.f32 %v3894, %v3934
    %v3936 = vpop.f32.mrb[0].mxu0
    %v3937 = vadd.f32 %v3896, %v3936
    %v3938 = vpop.f32.mrb[0].mxu0
    %v3939 = vpop.f32.mrb[0].mxu0
    %3940 = vdwg.mxu0
    %v3941 = vmax.f32 %v3935, 0.0
    %v3942 = vmax.f32 %v3937, 0.0
    %v3943 = vpack.c.bf16 %v3941, %v3941
    %v3944 = vpack.c.bf16 %v3942, %v3942
    %v3945 = vld [vmem:[%s17] sm:$0xf]
    %v3946 = vld [vmem:[%s17 + $0x4] sm:$0xf]
    %v3947 = vld [vmem:[%s17 + $0x8] sm:$0xf]
    %v3948 = vld [vmem:[%s17 + $0xc] sm:$0xf]
    %v3949 = vld [vmem:[%s17 + $0x10] sm:$0xf]
    %v3950 = vld [vmem:[%s17 + $0x14] sm:$0xf]
    %v3951 = vld [vmem:[%s17 + $0x18] sm:$0xf]
    %v3952 = vld [vmem:[%s17 + $0x1c] sm:$0xf]
    %v3953 = vld [vmem:[%s17 + $0x20] sm:$0xf]
    %v3954 = vld [vmem:[%s17 + $0x24] sm:$0xf]
    %v3955 = vld [vmem:[%s17 + $0x28] sm:$0xf]
    %v3956 = vld [vmem:[%s17 + $0x2c] sm:$0xf]
    %v3957 = vld [vmem:[%s17 + $0x30] sm:$0xf]
    %v3958 = vld [vmem:[%s17 + $0x34] sm:$0xf]
    %v3959 = vld [vmem:[%s17 + $0x38] sm:$0xf]
    %v3960 = vld [vmem:[%s17 + $0x3c] sm:$0xf]
    %v3961 = vld [vmem:[%s17 + $0x40] sm:$0xf]
    %v3962 = vld [vmem:[%s17 + $0x44] sm:$0xf]
    %v3963 = vld [vmem:[%s17 + $0x48] sm:$0xf]
    %v3964 = vld [vmem:[%s17 + $0x4c] sm:$0xf]
    %v3965 = vld [vmem:[%s17 + $0x50] sm:$0xf]
    %v3966 = vld [vmem:[%s17 + $0x54] sm:$0xf]
    %v3967 = vld [vmem:[%s17 + $0x58] sm:$0xf]
    %v3968 = vld [vmem:[%s17 + $0x5c] sm:$0xf]
    %v3969 = vld [vmem:[%s17 + $0x60] sm:$0xf]
    %v3970 = vld [vmem:[%s17 + $0x64] sm:$0xf]
    %v3971 = vld [vmem:[%s17 + $0x68] sm:$0xf]
    %v3972 = vld [vmem:[%s17 + $0x6c] sm:$0xf]
    %v3973 = vld [vmem:[%s17 + $0x70] sm:$0xf]
    %v3974 = vld [vmem:[%s17 + $0x74] sm:$0xf]
    %v3975 = vld [vmem:[%s17 + $0x78] sm:$0xf]
    %v3976 = vld [vmem:[%s17 + $0x7c] sm:$0xf]
    %v3977 = vld [vmem:[%s18] sm:$0x1]
    %v3979 = vlaneseq
    %v3980 = vshrl.u32 %v3979, 7
    %v3981 = vsub.s32 0, %v3980
    %v3982 = vrot.slane %v3977, %v3981
    %v4016 = vunpack.c.l.b16 %v3945
    %v4017 = vunpack.c.l.b16 %v3946
    %v4018 = vunpack.c.l.b16 %v3947
    %v4019 = vunpack.c.l.b16 %v3948
    %v4020 = vunpack.c.l.b16 %v3949
    %v4021 = vunpack.c.l.b16 %v3950
    %v4022 = vunpack.c.l.b16 %v3951
    %v4023 = vunpack.c.l.b16 %v3952
    %v4024 = vunpack.c.l.b16 %v3953
    %v4025 = vunpack.c.l.b16 %v3954
    %v4026 = vunpack.c.l.b16 %v3955
    %v4027 = vunpack.c.l.b16 %v3956
    %v4028 = vunpack.c.l.b16 %v3957
    %v4029 = vunpack.c.l.b16 %v3958
    %v4030 = vunpack.c.l.b16 %v3959
    %v4031 = vunpack.c.l.b16 %v3960
    %v4032 = vunpack.c.l.b16 %v3961
    %v4033 = vunpack.c.l.b16 %v3962
    %v4034 = vunpack.c.l.b16 %v3963
    %v4035 = vunpack.c.l.b16 %v3964
    %v4036 = vunpack.c.l.b16 %v3965
    %v4037 = vunpack.c.l.b16 %v3966
    %v4038 = vunpack.c.l.b16 %v3967
    %v4039 = vunpack.c.l.b16 %v3968
    %v4040 = vunpack.c.l.b16 %v3969
    %v4041 = vunpack.c.l.b16 %v3970
    %v4042 = vunpack.c.l.b16 %v3971
    %v4043 = vunpack.c.l.b16 %v3972
    %v4044 = vunpack.c.l.b16 %v3973
    %v4045 = vunpack.c.l.b16 %v3974
    %v4046 = vunpack.c.l.b16 %v3975
    %v4047 = vunpack.c.l.b16 %v3976
    %v4048 = vpack.c.b16 %v4017, %v4016
    %v4049 = vpack.c.b16 %v4019, %v4018
    %v4050 = vpack.c.b16 %v4021, %v4020
    %v4051 = vpack.c.b16 %v4023, %v4022
    %v4052 = vpack.c.b16 %v4025, %v4024
    %v4053 = vpack.c.b16 %v4027, %v4026
    %v4054 = vpack.c.b16 %v4029, %v4028
    %v4055 = vpack.c.b16 %v4031, %v4030
    %v4056 = vpack.c.b16 %v4033, %v4032
    %v4057 = vpack.c.b16 %v4035, %v4034
    %v4058 = vpack.c.b16 %v4037, %v4036
    %v4059 = vpack.c.b16 %v4039, %v4038
    %v4060 = vpack.c.b16 %v4041, %v4040
    %v4061 = vpack.c.b16 %v4043, %v4042
    %v4062 = vpack.c.b16 %v4045, %v4044
    %v4063 = vpack.c.b16 %v4047, %v4046
    %4080 = vmatprep.subr.bf16.mxu0 0
    %4081 = vmatpush1.bf16.msra.mxu0 %v4048
    %4082 = vmatprep.subr.bf16.mxu0 0
    %4083 = vmatpush1.bf16.msra.mxu0 %v4049
    %4084 = vmatprep.subr.bf16.mxu0 0
    %4085 = vmatpush1.bf16.msra.mxu0 %v4050
    %4086 = vmatprep.subr.bf16.mxu0 0
    %4087 = vmatpush1.bf16.msra.mxu0 %v4051
    %4088 = vmatprep.subr.bf16.mxu0 0
    %4089 = vmatpush1.bf16.msra.mxu0 %v4052
    %4090 = vmatprep.subr.bf16.mxu0 0
    %4091 = vmatpush1.bf16.msra.mxu0 %v4053
    %4092 = vmatprep.subr.bf16.mxu0 0
    %4093 = vmatpush1.bf16.msra.mxu0 %v4054
    %4094 = vmatprep.subr.bf16.mxu0 0
    %4095 = vmatpush1.bf16.msra.mxu0 %v4055
    %4096 = vmatprep.subr.bf16.mxu0 0
    %4097 = vmatpush1.bf16.msra.mxu0 %v4056
    %4098 = vmatprep.subr.bf16.mxu0 0
    %4099 = vmatpush1.bf16.msra.mxu0 %v4057
    %4100 = vmatprep.subr.bf16.mxu0 0
    %4101 = vmatpush1.bf16.msra.mxu0 %v4058
    %4102 = vmatprep.subr.bf16.mxu0 0
    %4103 = vmatpush1.bf16.msra.mxu0 %v4059
    %4104 = vmatprep.subr.bf16.mxu0 0
    %4105 = vmatpush1.bf16.msra.mxu0 %v4060
    %4106 = vmatprep.subr.bf16.mxu0 0
    %4107 = vmatpush1.bf16.msra.mxu0 %v4061
    %4108 = vmatprep.subr.bf16.mxu0 0
    %4109 = vmatpush1.bf16.msra.mxu0 %v4062
    %4110 = vmatprep.subr.bf16.mxu0 0
    %4111 = vmatpush1.bf16.msra.mxu0 %v4063
    %4112 = vmatprep.mubr.bf16.mxu0 %v3944
    %4113 = vmatmul.mubr.bf16.gmra.mrb[0].mxu0 %v3943
    %v4114 = vpop.f32.mrb[0].mxu0
    %v4115 = vadd.f32 %v3982, %v4114
    %v4116 = vpop.f32.mrb[0].mxu0
    %v4117 = vpop.f32.mrb[0].mxu0
    %v4118 = vpop.f32.mrb[0].mxu0
    %4119 = vdwg.mxu0
    %v4120 = vlaneseq
    %v4121 = vand.u32 %v4120, 127
    %vm4122 = vcmp.ge.s32.totalorder %v4121, 1
    %vm4123 = vcmp.le.s32.totalorder %v4121, 4
    %vm4124 = vmand %vm4122, %vm4123
    %v4125 = vmul.f32 %v4115, %v4115
    %v4126 = vsel %vm4124, 1, 0
    %vm4127 = vcmp.eq.s32.totalorder %v4126, 1
    %v4128 = vsel %vm4127, %v4125, 0.0
    %vm4129 = vcmask 60416
    %v4130 = vsel %vm4129, %v4128, 0.0
    %4131 = vadd.xlane.f32.xlu0 %v4130
    %v4132 = vpop.xlane.xlu0 %4131
    %v4133 = vrsqrt.pop %v4132
    %v4134 = vmul.f32 %v4132, %v4133
    %vm4135 = vcmp.eq.f32.partialorder %v4132, inf
    %v4136 = vsel %vm4135, %v4132, %v4134
    %vm4137 = vcmp.eq.f32.partialorder %v4132, 0.0
    %v4138 = vand.u32 %v4132, 2147483648
    %v4139 = vsel %vm4137, %v4138, %v4136
    %v4140 = vmax.f32 %v4139, 1e-12
    %v4141 = vrcp.pop %v4140
    %v4142 = vmul.f32 1.0, %v4141
    %v4143 = vsel %vm4127, %v4142, 1.0
    %v4144 = vmul.f32 %v4115, %v4143
    %vm4145 = vcmp.eq.s32.totalorder %v4121, 5
    %v4146 = vsel %vm4145, 1, 0
    %vm4147 = vcmp.eq.s32.totalorder %v4146, 1
    %4149 = vset.pattern.permute.xlu0 0
    %4150 = vperm.xlu0 %4149, %v3767
    %v4151 = vpop.permute.xlu0 %4150
    %v4153 = vsel %vm4147, %v4151, %v4144
    %4154 = vst.msk [vmem:[%s19] sm:$0xf] %vm4129, %v4153
    // Predicated region
    $region62: #{traj_forward.1} parent=1 // pred_check
      _
    $region63: #{traj_forward.1} parent=1 // pred_check_branch
      %4156 = sbr.rel (0) target = $region65
    $region64: #{traj_forward.1} parent=1 // pred_region
      _
    $region65: #{traj_forward.1} parent=1 // pred_fallthru
      _
    // Predicated region
    $region66: #{traj_forward.1} parent=1 // pred_check
      _
    $region67: #{traj_forward.1} parent=1 // pred_check_branch
      %4158 = sbr.rel (0) target = $region69
    $region68: #{traj_forward.1} parent=1 // pred_region
      _
    $region69: #{traj_forward.1} parent=1 // pred_fallthru
      _
  %4159 = vsyncmov [#allocation7]
  %s4160 = vpop.sfrf %4159
  %p4161 = scmp.eq.s32.totalorder %s4160, 0
  %p4162 = pneg %p4161
  %4164 = shalt.err (%p4162)
  %s4165 = scalar_lea.sflag [#allocation7], 1
  %4166 = vsyncmov %s4165
  %s4167 = vpop.sfrf %4166
  %p4168 = scmp.eq.s32.totalorder %s4167, 0
  %p4169 = pneg %p4168
  %4171 = shalt.err (%p4169)
  %s4172 = scalar_lea.sflag [#allocation7], 2
  %4173 = vsyncmov %s4172
  %s4174 = vpop.sfrf %4173
  %p4175 = scmp.eq.s32.totalorder %s4174, 0
  %p4176 = pneg %p4175
  %4178 = shalt.err (%p4176)
  %s4179 = scalar_lea.sflag [#allocation7], 3
  %4180 = vsyncmov %s4179
  %s4181 = vpop.sfrf %4180
  %p4182 = scmp.eq.s32.totalorder %s4181, 0
  %p4183 = pneg %p4182
  %4185 = shalt.err (%p4183)

</llo_original>
